<compile_context>
chip_gen: v6e
topology: v6e:2x2x1
jax: 0.10.0
libtpu: 0.0.40
codegen_flags: <defaults>
</compile_context>

<pallas_src>
import functools
import math

import jax
import jax.numpy as jnp
from jax import lax
from jax.experimental import pallas as pl
from jax.experimental.pallas import tpu as pltpu


def mha_kernel(q_ref, k_ref, wq_ref, wk_ref, woT_ref, bo_ref, o_ref, *, H, D,
               use_bf16_mxu):
    """One batch element per grid step; everything resident in VMEM.

    q_ref:   (Sq, E)    query rows for this batch (E = H*D, head-interleaved lanes)
    k_ref:   (Sk, E)    key rows
    wq_ref:  (E, E)     block-diagonal per-head Wq^T  (kron(I_H, Wq^T))
    wk_ref:  (E, E)     block-diagonal per-head Wk^T
    woT_ref: (H*Sk, E)  output projection, wo.T  (== (E, E) since Sk == D)
    bo_ref:  (1, E)     output bias
    o_ref:   (Sq, E)    lane-dense output block
    """
    def mx(x):  # optional bf16 MXU operands (v6e/v7x); accumulation stays f32.
        return x.astype(jnp.bfloat16) if use_bf16_mxu else x

    # Lane-dense per-head input projections: (S, E) @ block-diag (E, E).
    qp = jnp.dot(mx(q_ref[...]), mx(wq_ref[...]),
                 preferred_element_type=jnp.float32)                  # (Sq, E)
    kp = jnp.dot(mx(k_ref[...]), mx(wk_ref[...]),
                 preferred_element_type=jnp.float32)                  # (Sk, E)

    # Regroup interleaved head lanes into a head batch dim (layout glue only;
    # the trace-time Python loop produces a single stack op, no per-head matmuls).
    qph = jnp.stack([qp[:, h * D:(h + 1) * D] for h in range(H)], axis=0)  # (H, Sq, D)
    kph = jnp.stack([kp[:, h * D:(h + 1) * D] for h in range(H)], axis=0)  # (H, Sk, D)

    # Scaled dot-product scores + numerically stable softmax over keys (f32 path).
    prod = jnp.einsum('hqd,hkd->hqk', mx(qph), mx(kph),
                      preferred_element_type=jnp.float32)             # (H, Sq, Sk)
    prod = prod * (1.0 / math.sqrt(D))
    m = jnp.max(prod, axis=-1, keepdims=True)
    ex = jnp.exp(prod - m)
    denom = jnp.sum(ex, axis=-1, keepdims=True)
    scores = ex * pl.reciprocal(denom, approx=False)                  # exact 1/x

    # `concat` layout of the original module: (Sq, H*Sk), column index h*Sk + k.
    concat = jnp.concatenate([scores[h] for h in range(H)], axis=-1)  # (Sq, H*Sk)

    # Output projection: ONE K = H*Sk matmul (no Wo broadcast, no per-head sum).
    out = jnp.dot(mx(concat), mx(woT_ref[...]),
                  preferred_element_type=jnp.float32)                 # (Sq, E)
    out = out + bo_ref[...]
    o_ref[...] = out.astype(o_ref.dtype)                              # lane-dense store


def multi_head_attention(key, query, value, params, n_heads, mask=None,
                         use_bf16_mxu=False):
    """key/query/value: (B, S, E) float32.  Returns (B, Sq, E)."""
    assert mask is None  # TODO(synk): mask support (fill BEFORE 1/sqrt(d) scaling)
    del value            # computed-but-unused in the original forward
    wq, wk, _wv, wo, bo = params

    B, Sk, E = key.shape
    Sq = query.shape[1]
    H = n_heads
    D = E // H
    # Required by the original module's view of scores into `concat`.
    assert Sk == D, "original module requires key seq_length == single_head_dim"

    # Host-side, one-time glue on small weights only (activations are untouched):
    eye_h = jnp.eye(H, dtype=wq.dtype)
    wq_bd = jnp.kron(eye_h, wq.T)        # (E, E) block-diagonal per-head Wq^T
    wk_bd = jnp.kron(eye_h, wk.T)        # (E, E)
    woT = wo.T                           # (H*Sk, E)
    bo2 = bo.reshape(1, E)

    kernel = functools.partial(mha_kernel, H=H, D=D, use_bf16_mxu=use_bf16_mxu)

    # Per-step VMEM: 3 x (E,E) f32 weights (~3 MiB) + q/k/out blocks (~0.4 MiB) plus
    # double buffering -> well under every generation's scoped-VMEM default.
    # TODO(synk): for long sequences also tile Sq (extra grid axis) to keep the
    # (H, Sq, Sk) score tensor bounded.
    out = pl.pallas_call(
        kernel,
        out_shape=jax.ShapeDtypeStruct((B, Sq, E), query.dtype),
        grid=(B,),
        in_specs=[
            pl.BlockSpec((None, Sq, E), lambda b: (b, 0, 0)),   # query (one batch)
            pl.BlockSpec((None, Sk, E), lambda b: (b, 0, 0)),   # key   (one batch)
            pl.BlockSpec((E, E), lambda b: (0, 0)),             # block-diag Wq^T
            pl.BlockSpec((E, E), lambda b: (0, 0)),             # block-diag Wk^T
            pl.BlockSpec((E, E), lambda b: (0, 0)),             # Wo^T
            pl.BlockSpec((1, E), lambda b: (0, 0)),             # bias
        ],
        out_specs=pl.BlockSpec((None, Sq, E), lambda b: (b, 0, 0)),
        compiler_params=pltpu.CompilerParams(
            dimension_semantics=("parallel",),                   # v7x: 2 TCs share B
        ),
    )(query, key, wq_bd, wk_bd, woT, bo2)
    return out


def ref_forward(key, query, value, params, n_heads):
    """Pure-JAX reference replicating the PyTorch forward exactly (mask=None)."""
    wq, wk, _wv, wo, bo = params
    B, Sk, E = key.shape
    Sq = query.shape[1]
    D = E // n_heads
    hp = lax.Precision.HIGHEST
    k = jnp.matmul(key.reshape(B, Sk, n_heads, D), wk.T, precision=hp)
    q = jnp.matmul(query.reshape(B, Sq, n_heads, D), wq.T, precision=hp)
    q = jnp.transpose(q, (0, 2, 1, 3))
    k = jnp.transpose(k, (0, 2, 1, 3))
    prod = jnp.einsum('bhqd,bhkd->bhqk', q, k, precision=hp) / math.sqrt(D)
    scores = jax.nn.softmax(prod, axis=-1)
    concat = jnp.transpose(scores, (0, 2, 1, 3)).reshape(B, Sq, n_heads * Sk)
    return jnp.matmul(concat, wo.T, precision=hp) + bo


if __name__ == "__main__":
    # Module defaults: embed_dim=512, n_heads=8 -> single_head_dim=64; the original
    # forward's scores->concat view then requires seq_len == 64.  batch=2.
    B, E, H = 2, 512, 8
    D = E // H
    S = D  # == 64

    root = jax.random.PRNGKey(0)
    k_q, k_key, k_v, k_wq, k_wk, k_wv, k_wo, k_bo = jax.random.split(root, 8)

    query = jax.random.normal(k_q, (B, S, E), dtype=jnp.float32)
    key = jax.random.normal(k_key, (B, S, E), dtype=jnp.float32)
    value = jax.random.normal(k_v, (B, S, E), dtype=jnp.float32)

    # Deterministic synthetic parameters (torch nn.Linear layout: (out, in)).
    wq = 0.1 * jax.random.normal(k_wq, (D, D), dtype=jnp.float32)
    wk = 0.1 * jax.random.normal(k_wk, (D, D), dtype=jnp.float32)
    wv = 0.1 * jax.random.normal(k_wv, (D, D), dtype=jnp.float32)  # unused by forward
    wo = 0.1 * jax.random.normal(k_wo, (E, H * D), dtype=jnp.float32)
    bo = 0.1 * jax.random.normal(k_bo, (E,), dtype=jnp.float32)
    params = (wq, wk, wv, wo, bo)

    out = jax.block_until_ready(
        multi_head_attention(key, query, value, params, n_heads=H))
    ref = jax.block_until_ready(ref_forward(key, query, value, params, n_heads=H))

    assert out.shape == (B, S, E)
    # f32 MXU pass/accumulation order differs slightly from the XLA reference.
    max_err = float(jnp.max(jnp.abs(out - ref)))
    assert jnp.allclose(out, ref, atol=1e-4, rtol=1e-4), f"max abs err {max_err}"

    print("KERNEL_OK")
</pallas_src>

<mosaic_0001>
module attributes {stable_mosaic.version = 11 : i64} {
  func.func @mha_kernel(%arg0: i32, %arg1: memref<1x64x512xf32, #tpu.memory_space<vmem>>, %arg2: memref<1x64x512xf32, #tpu.memory_space<vmem>>, %arg3: memref<512x512xf32, #tpu.memory_space<vmem>>, %arg4: memref<512x512xf32, #tpu.memory_space<vmem>>, %arg5: memref<512x512xf32, #tpu.memory_space<vmem>>, %arg6: memref<1x512xf32, #tpu.memory_space<vmem>>, %arg7: memref<1x64x512xf32, #tpu.memory_space<vmem>>) attributes {dimension_semantics = [#tpu.dimension_semantics<parallel>], iteration_bounds = array<i64: 2>, scalar_prefetch = 0 : i64, scratch_operands = 0 : i64, tpu.core_type = #tpu.core_type<tc>, window_params = [{transform_indices = @transform_0, window_bounds = array<i64: 1, 64, 512>}, {transform_indices = @transform_1, window_bounds = array<i64: 1, 64, 512>}, {pipeline_mode = #tpu.pipeline_mode<synchronous>, transform_indices = @transform_2, window_bounds = array<i64: 512, 512>}, {pipeline_mode = #tpu.pipeline_mode<synchronous>, transform_indices = @transform_3, window_bounds = array<i64: 512, 512>}, {pipeline_mode = #tpu.pipeline_mode<synchronous>, transform_indices = @transform_4, window_bounds = array<i64: 512, 512>}, {pipeline_mode = #tpu.pipeline_mode<synchronous>, transform_indices = @transform_5, window_bounds = array<i64: 1, 512>}, {transform_indices = @transform_6, window_bounds = array<i64: 1, 64, 512>}]} {
    %c0 = arith.constant 0 : index
    %c0_0 = arith.constant 0 : index
    %c0_1 = arith.constant 0 : index
    %0 = vector.load %arg1[%c0, %c0_0, %c0_1] : memref<1x64x512xf32, #tpu.memory_space<vmem>>, vector<1x64x512xf32>
    %1 = vector.shape_cast %0 : vector<1x64x512xf32> to vector<64x512xf32>
    %c0_2 = arith.constant 0 : index
    %c0_3 = arith.constant 0 : index
    %2 = vector.load %arg3[%c0_2, %c0_3] : memref<512x512xf32, #tpu.memory_space<vmem>>, vector<512x512xf32>
    %cst = arith.constant dense<0.000000e+00> : vector<64x512xf32>
    %3 = tpu.matmul %1, %2, %cst {dimension_numbers = #tpu.dot_dimension_numbers<[1], [0], [0], [1], [0, 0, 1, 1], [], []>} : vector<64x512xf32>, vector<512x512xf32>, vector<64x512xf32> -> vector<64x512xf32>
    %c0_4 = arith.constant 0 : index
    %c0_5 = arith.constant 0 : index
    %c0_6 = arith.constant 0 : index
    %4 = vector.load %arg2[%c0_4, %c0_5, %c0_6] : memref<1x64x512xf32, #tpu.memory_space<vmem>>, vector<1x64x512xf32>
    %5 = vector.shape_cast %4 : vector<1x64x512xf32> to vector<64x512xf32>
    %c0_7 = arith.constant 0 : index
    %c0_8 = arith.constant 0 : index
    %6 = vector.load %arg4[%c0_7, %c0_8] : memref<512x512xf32, #tpu.memory_space<vmem>>, vector<512x512xf32>
    %cst_9 = arith.constant dense<0.000000e+00> : vector<64x512xf32>
    %7 = tpu.matmul %5, %6, %cst_9 {dimension_numbers = #tpu.dot_dimension_numbers<[1], [0], [0], [1], [0, 0, 1, 1], [], []>} : vector<64x512xf32>, vector<512x512xf32>, vector<64x512xf32> -> vector<64x512xf32>
    %8 = vector.extract_strided_slice %3 {offsets = [0, 0], sizes = [64, 64], strides = [1, 1]} : vector<64x512xf32> to vector<64x64xf32>
    %9 = vector.extract_strided_slice %3 {offsets = [0, 64], sizes = [64, 64], strides = [1, 1]} : vector<64x512xf32> to vector<64x64xf32>
    %10 = vector.extract_strided_slice %3 {offsets = [0, 128], sizes = [64, 64], strides = [1, 1]} : vector<64x512xf32> to vector<64x64xf32>
    %11 = vector.extract_strided_slice %3 {offsets = [0, 192], sizes = [64, 64], strides = [1, 1]} : vector<64x512xf32> to vector<64x64xf32>
    %12 = vector.extract_strided_slice %3 {offsets = [0, 256], sizes = [64, 64], strides = [1, 1]} : vector<64x512xf32> to vector<64x64xf32>
    %13 = vector.extract_strided_slice %3 {offsets = [0, 320], sizes = [64, 64], strides = [1, 1]} : vector<64x512xf32> to vector<64x64xf32>
    %14 = vector.extract_strided_slice %3 {offsets = [0, 384], sizes = [64, 64], strides = [1, 1]} : vector<64x512xf32> to vector<64x64xf32>
    %15 = vector.extract_strided_slice %3 {offsets = [0, 448], sizes = [64, 64], strides = [1, 1]} : vector<64x512xf32> to vector<64x64xf32>
    %16 = vector.shape_cast %8 : vector<64x64xf32> to vector<1x64x64xf32>
    %17 = vector.shape_cast %9 : vector<64x64xf32> to vector<1x64x64xf32>
    %18 = vector.shape_cast %10 : vector<64x64xf32> to vector<1x64x64xf32>
    %19 = vector.shape_cast %11 : vector<64x64xf32> to vector<1x64x64xf32>
    %20 = vector.shape_cast %12 : vector<64x64xf32> to vector<1x64x64xf32>
    %21 = vector.shape_cast %13 : vector<64x64xf32> to vector<1x64x64xf32>
    %22 = vector.shape_cast %14 : vector<64x64xf32> to vector<1x64x64xf32>
    %23 = vector.shape_cast %15 : vector<64x64xf32> to vector<1x64x64xf32>
    %24 = tpu.concatenate %16, %17, %18, %19, %20, %21, %22, %23 in 0 : vector<1x64x64xf32>, vector<1x64x64xf32>, vector<1x64x64xf32>, vector<1x64x64xf32>, vector<1x64x64xf32>, vector<1x64x64xf32>, vector<1x64x64xf32>, vector<1x64x64xf32> -> vector<8x64x64xf32>
    %25 = vector.extract_strided_slice %7 {offsets = [0, 0], sizes = [64, 64], strides = [1, 1]} : vector<64x512xf32> to vector<64x64xf32>
    %26 = vector.extract_strided_slice %7 {offsets = [0, 64], sizes = [64, 64], strides = [1, 1]} : vector<64x512xf32> to vector<64x64xf32>
    %27 = vector.extract_strided_slice %7 {offsets = [0, 128], sizes = [64, 64], strides = [1, 1]} : vector<64x512xf32> to vector<64x64xf32>
    %28 = vector.extract_strided_slice %7 {offsets = [0, 192], sizes = [64, 64], strides = [1, 1]} : vector<64x512xf32> to vector<64x64xf32>
    %29 = vector.extract_strided_slice %7 {offsets = [0, 256], sizes = [64, 64], strides = [1, 1]} : vector<64x512xf32> to vector<64x64xf32>
    %30 = vector.extract_strided_slice %7 {offsets = [0, 320], sizes = [64, 64], strides = [1, 1]} : vector<64x512xf32> to vector<64x64xf32>
    %31 = vector.extract_strided_slice %7 {offsets = [0, 384], sizes = [64, 64], strides = [1, 1]} : vector<64x512xf32> to vector<64x64xf32>
    %32 = vector.extract_strided_slice %7 {offsets = [0, 448], sizes = [64, 64], strides = [1, 1]} : vector<64x512xf32> to vector<64x64xf32>
    %33 = vector.shape_cast %25 : vector<64x64xf32> to vector<1x64x64xf32>
    %34 = vector.shape_cast %26 : vector<64x64xf32> to vector<1x64x64xf32>
    %35 = vector.shape_cast %27 : vector<64x64xf32> to vector<1x64x64xf32>
    %36 = vector.shape_cast %28 : vector<64x64xf32> to vector<1x64x64xf32>
    %37 = vector.shape_cast %29 : vector<64x64xf32> to vector<1x64x64xf32>
    %38 = vector.shape_cast %30 : vector<64x64xf32> to vector<1x64x64xf32>
    %39 = vector.shape_cast %31 : vector<64x64xf32> to vector<1x64x64xf32>
    %40 = vector.shape_cast %32 : vector<64x64xf32> to vector<1x64x64xf32>
    %41 = tpu.concatenate %33, %34, %35, %36, %37, %38, %39, %40 in 0 : vector<1x64x64xf32>, vector<1x64x64xf32>, vector<1x64x64xf32>, vector<1x64x64xf32>, vector<1x64x64xf32>, vector<1x64x64xf32>, vector<1x64x64xf32>, vector<1x64x64xf32> -> vector<8x64x64xf32>
    "tpu.trace_start"() <{level = 10 : i32, message = "hqd,hkd->hqk"}> : () -> ()
    %cst_10 = arith.constant dense<0.000000e+00> : vector<8x64x64xf32>
    %42 = tpu.matmul %24, %41, %cst_10 {dimension_numbers = #tpu.dot_dimension_numbers<[2], [2], [1], [1], [0, 0, 0, 1, 1, 1], [0], [0]>} : vector<8x64x64xf32>, vector<8x64x64xf32>, vector<8x64x64xf32> -> vector<8x64x64xf32>
    "tpu.trace_stop"() : () -> ()
    %cst_11 = arith.constant 1.250000e-01 : f32
    %43 = vector.broadcast %cst_11 : f32 to vector<8x64x64xf32>
    %44 = arith.mulf %42, %43 : vector<8x64x64xf32>
    %cst_12 = arith.constant dense<0xFF800000> : vector<8x64xf32>
    %45 = vector.multi_reduction <maximumf>, %44, %cst_12 [2] : vector<8x64x64xf32> to vector<8x64xf32>
    %46 = vector.shape_cast %45 : vector<8x64xf32> to vector<8x64x1xf32>
    %47 = vector.broadcast %46 : vector<8x64x1xf32> to vector<8x64x64xf32>
    %48 = arith.subf %44, %47 : vector<8x64x64xf32>
    %49 = math.exp %48 : vector<8x64x64xf32>
    %cst_13 = arith.constant dense<0.000000e+00> : vector<8x64xf32>
    %50 = vector.multi_reduction <add>, %49, %cst_13 [2] : vector<8x64x64xf32> to vector<8x64xf32>
    %51 = vector.shape_cast %50 : vector<8x64xf32> to vector<8x64x1xf32>
    %52 = tpu.reciprocal %51 : vector<8x64x1xf32> -> vector<8x64x1xf32>
    %53 = vector.broadcast %52 : vector<8x64x1xf32> to vector<8x64x64xf32>
    %54 = arith.mulf %49, %53 : vector<8x64x64xf32>
    %55 = vector.extract_strided_slice %54 {offsets = [0, 0, 0], sizes = [1, 64, 64], strides = [1, 1, 1]} : vector<8x64x64xf32> to vector<1x64x64xf32>
    %56 = vector.shape_cast %55 : vector<1x64x64xf32> to vector<64x64xf32>
    %57 = vector.extract_strided_slice %54 {offsets = [1, 0, 0], sizes = [1, 64, 64], strides = [1, 1, 1]} : vector<8x64x64xf32> to vector<1x64x64xf32>
    %58 = vector.shape_cast %57 : vector<1x64x64xf32> to vector<64x64xf32>
    %59 = vector.extract_strided_slice %54 {offsets = [2, 0, 0], sizes = [1, 64, 64], strides = [1, 1, 1]} : vector<8x64x64xf32> to vector<1x64x64xf32>
    %60 = vector.shape_cast %59 : vector<1x64x64xf32> to vector<64x64xf32>
    %61 = vector.extract_strided_slice %54 {offsets = [3, 0, 0], sizes = [1, 64, 64], strides = [1, 1, 1]} : vector<8x64x64xf32> to vector<1x64x64xf32>
    %62 = vector.shape_cast %61 : vector<1x64x64xf32> to vector<64x64xf32>
    %63 = vector.extract_strided_slice %54 {offsets = [4, 0, 0], sizes = [1, 64, 64], strides = [1, 1, 1]} : vector<8x64x64xf32> to vector<1x64x64xf32>
    %64 = vector.shape_cast %63 : vector<1x64x64xf32> to vector<64x64xf32>
    %65 = vector.extract_strided_slice %54 {offsets = [5, 0, 0], sizes = [1, 64, 64], strides = [1, 1, 1]} : vector<8x64x64xf32> to vector<1x64x64xf32>
    %66 = vector.shape_cast %65 : vector<1x64x64xf32> to vector<64x64xf32>
    %67 = vector.extract_strided_slice %54 {offsets = [6, 0, 0], sizes = [1, 64, 64], strides = [1, 1, 1]} : vector<8x64x64xf32> to vector<1x64x64xf32>
    %68 = vector.shape_cast %67 : vector<1x64x64xf32> to vector<64x64xf32>
    %69 = vector.extract_strided_slice %54 {offsets = [7, 0, 0], sizes = [1, 64, 64], strides = [1, 1, 1]} : vector<8x64x64xf32> to vector<1x64x64xf32>
    %70 = vector.shape_cast %69 : vector<1x64x64xf32> to vector<64x64xf32>
    %71 = tpu.concatenate %56, %58, %60, %62, %64, %66, %68, %70 in 1 : vector<64x64xf32>, vector<64x64xf32>, vector<64x64xf32>, vector<64x64xf32>, vector<64x64xf32>, vector<64x64xf32>, vector<64x64xf32>, vector<64x64xf32> -> vector<64x512xf32>
    %c0_14 = arith.constant 0 : index
    %c0_15 = arith.constant 0 : index
    %72 = vector.load %arg5[%c0_14, %c0_15] : memref<512x512xf32, #tpu.memory_space<vmem>>, vector<512x512xf32>
    %cst_16 = arith.constant dense<0.000000e+00> : vector<64x512xf32>
    %73 = tpu.matmul %71, %72, %cst_16 {dimension_numbers = #tpu.dot_dimension_numbers<[1], [0], [0], [1], [0, 0, 1, 1], [], []>} : vector<64x512xf32>, vector<512x512xf32>, vector<64x512xf32> -> vector<64x512xf32>
    %c0_17 = arith.constant 0 : index
    %c0_18 = arith.constant 0 : index
    %74 = vector.load %arg6[%c0_17, %c0_18] : memref<1x512xf32, #tpu.memory_space<vmem>>, vector<1x512xf32>
    %75 = vector.broadcast %74 : vector<1x512xf32> to vector<64x512xf32>
    %76 = arith.addf %73, %75 : vector<64x512xf32>
    %c0_19 = arith.constant 0 : index
    %c0_20 = arith.constant 0 : index
    %c0_21 = arith.constant 0 : index
    %77 = vector.load %arg7[%c0_19, %c0_20, %c0_21] : memref<1x64x512xf32, #tpu.memory_space<vmem>>, vector<1x64x512xf32>
    %78 = vector.shape_cast %77 : vector<1x64x512xf32> to vector<64x512xf32>
    %79 = vector.shape_cast %76 : vector<64x512xf32> to vector<1x64x512xf32>
    tpu.vector_store %arg7[%c0_19, %c0_20, %c0_21], %79 {strides = array<i32>} : memref<1x64x512xf32, #tpu.memory_space<vmem>>, vector<1x64x512xf32>,
    return
  }
  func.func @transform_0(%arg0: i32) -> (i32, i32, i32) {
    %c0_i32 = arith.constant 0 : i32
    %c0_i32_0 = arith.constant 0 : i32
    %c0_i32_1 = arith.constant 0 : i32
    return %arg0, %c0_i32, %c0_i32_0 : i32, i32, i32
  }
  func.func @transform_1(%arg0: i32) -> (i32, i32, i32) {
    %c0_i32 = arith.constant 0 : i32
    %c0_i32_0 = arith.constant 0 : i32
    %c0_i32_1 = arith.constant 0 : i32
    return %arg0, %c0_i32, %c0_i32_0 : i32, i32, i32
  }
  func.func @transform_2(%arg0: i32) -> (i32, i32) {
    %c0_i32 = arith.constant 0 : i32
    %c0_i32_0 = arith.constant 0 : i32
    %c0_i32_1 = arith.constant 0 : i32
    return %c0_i32, %c0_i32_0 : i32, i32
  }
  func.func @transform_3(%arg0: i32) -> (i32, i32) {
    %c0_i32 = arith.constant 0 : i32
    %c0_i32_0 = arith.constant 0 : i32
    %c0_i32_1 = arith.constant 0 : i32
    return %c0_i32, %c0_i32_0 : i32, i32
  }
  func.func @transform_4(%arg0: i32) -> (i32, i32) {
    %c0_i32 = arith.constant 0 : i32
    %c0_i32_0 = arith.constant 0 : i32
    %c0_i32_1 = arith.constant 0 : i32
    return %c0_i32, %c0_i32_0 : i32, i32
  }
  func.func @transform_5(%arg0: i32) -> (i32, i32) {
    %c0_i32 = arith.constant 0 : i32
    %c0_i32_0 = arith.constant 0 : i32
    %c0_i32_1 = arith.constant 0 : i32
    return %c0_i32, %c0_i32_0 : i32, i32
  }
  func.func @transform_6(%arg0: i32) -> (i32, i32, i32) {
    %c0_i32 = arith.constant 0 : i32
    %c0_i32_0 = arith.constant 0 : i32
    %c0_i32_1 = arith.constant 0 : i32
    return %arg0, %c0_i32, %c0_i32_0 : i32, i32, i32
  }
}

</mosaic_0001>

<llo_original>
// kernel: tpu_custom_call.1
$region0: #{tpu_custom_call.1}
  #allocation0 [shape = 'u32[]', space=smem, size = 0x4, offset = 0x4, fixed_abs, tag = 'smem constant byte address 0x4 - core index']
  #allocation1 [shape = 'u32[144,128]{1,0:T(1,128)}', space=vmem, size = 0x12000, scoped, tag = 'internal scratch']
  %s0 = inlined_call_operand.hbm [shape: f32[2,64,512], index: 0, kind: input, shape index: {}]
  %s1 = inlined_call_operand.hbm [shape: f32[2,64,512], index: 1, kind: input, shape index: {}]
  %s2 = inlined_call_operand.hbm [shape: f32[512,512], index: 2, kind: input, shape index: {}]
  %s3 = inlined_call_operand.hbm [shape: f32[512,512], index: 3, kind: input, shape index: {}]
  %s4 = inlined_call_operand.hbm [shape: f32[512,512], index: 4, kind: input, shape index: {}]
  %s5 = inlined_call_operand.vmem [shape: f32[1,512], index: 5, kind: input, shape index: {}]
  %s6 = inlined_call_operand.hbm [shape: f32[2,64,512], index: 6, kind: output, shape index: {}]
  %s7 = sld [smem:[#allocation0]]
  $region77: #{tpu_custom_call.1} parent=0
    _
  %s9 = ssub.s32 1, %s7
  %s10 = scalar_select 0, %s9, %s7
  $region1: #{tpu_custom_call.1} parent=0
    #allocation2 [shape = 'u8[262144]{0}', space=vmem, size = 0x40000, scoped, tag = 'input window, operand 0']
    #allocation3 [shape = 's32[2]{0}', space=sflag, size = 0x8, scoped, tag = 'scoped memory for tpu_custom_call.1']
    #allocation4 [shape = 's32[2]{0}', space=sflag, size = 0x8, scoped, tag = 'scoped memory for tpu_custom_call.1']
    #allocation5 [shape = 'u8[262144]{0}', space=vmem, size = 0x40000, scoped, tag = 'input window, operand 1']
    #allocation6 [shape = 's32[2]{0}', space=sflag, size = 0x8, scoped, tag = 'scoped memory for tpu_custom_call.1']
    #allocation7 [shape = 'u8[1048576]{0}', space=vmem, size = 0x100000, scoped, tag = 'input window, operand 2, single buffered']
    #allocation8 [shape = 'u8[1048576]{0}', space=vmem, size = 0x100000, scoped, tag = 'input window, operand 3, single buffered']
    #allocation9 [shape = 's32[1]{0}', space=sflag, size = 0x4, scoped, tag = 'scoped memory for tpu_custom_call.1']
    #allocation10 [shape = 'u8[1048576]{0}', space=vmem, size = 0x100000, scoped, tag = 'input window, operand 4, single buffered']
    #allocation11 [shape = 'u8[262144]{0}', space=vmem, size = 0x40000, scoped, tag = 'output window, operand 0']
    %11 = vsyncpa [#allocation3], 0
    %s12 = scalar_lea.sflag [#allocation3], 1
    %13 = vsyncpa %s12, 0
    %14 = vsyncpa [#allocation6], 0
    %s15 = scalar_lea.sflag [#allocation6], 1
    %16 = vsyncpa %s15, 0
    %17 = vsyncpa [#allocation9], 0
    %18 = vsyncpa [#allocation4], 0
    %s19 = scalar_lea.sflag [#allocation4], 1
    %20 = vsyncpa %s19, 0
    loop: start=0, step=1, limit=4
    $region2: #{tpu_custom_call.1} parent=1 // loop_pre_header
      _
    $region3: #{tpu_custom_call.1} parent=1 // loop_header
      %s22 = sphi 0, %s26
      %p23 = scmp.ge.s32.totalorder %s22, 4
      %s32 = sphi 0, %s34
      %s35 = sphi 0, %s32
      %s36 = sphi 0, %s35
      %s52 = sphi 0, %s36
      %s58 = sphi 0, %s60
      %s61 = sphi 0, %s58
      %s62 = sphi 0, %s61
      %s78 = sphi 0, %s62
      %s82 = sphi 0, %s82
      %s84 = sphi 0, %s82
      %s85 = sphi 0, %s84
      %s99 = sphi 0, %s85
      %s103 = sphi 0, %s103
      %s105 = sphi 0, %s103
      %s106 = sphi 0, %s105
      %s120 = sphi 0, %s106
      %s124 = sphi 0, %s124
      %s126 = sphi 0, %s124
      %s127 = sphi 0, %s126
      %s141 = sphi 0, %s127
      %s145 = sphi 0, %s145
      %s147 = sphi 0, %s145
      %s148 = sphi 0, %s147
      %s162 = sphi 0, %s148
      %s168 = sphi 0, %s170
      %s171 = sphi 0, %s168
      %s172 = sphi 0, %s171
      %s188 = sphi 0, %s172
    $region4: #{tpu_custom_call.1} parent=1 // loop_header_branch
      %25 = sbr.rel (%p23) target = $region8
    $region5: #{tpu_custom_call.1} parent=1 // loop_body
      %s27 = ssub.s32 %s22, 1
      %s28 = ssub.s32 %s22, 2
      %s29 = sadd.s32 %s22, 1
      %s30 = ssub.s32 %s22, %s29
      %p31 = scmp.eq.s32.totalorder %s30, 0
      %s33 = sadd.s32 %s32, 1
      %s34 = scalar_select %p31, %s32, %s33
      %p37 = pneg %p31
      %p38 = scmp.eq.s32.totalorder %s22, 1
      %p39 = por %p37, %p38
      %p40 = scmp.ne.s32.totalorder %s32, %s35
      %p41 = scmp.eq.s32.totalorder %s22, 0
      %p42 = por %p40, %p41
      %p43 = scmp.ne.s32.totalorder %s32, %s35
      %p44 = scmp.eq.s32.totalorder %s27, 1
      %p45 = por %p43, %p44
      %p46 = scmp.ne.s32.totalorder %s35, %s36
      %p47 = scmp.eq.s32.totalorder %s27, 0
      %p48 = por %p46, %p47
      %p49 = scmp.ne.s32.totalorder %s35, %s36
      %p50 = scmp.eq.s32.totalorder %s28, 1
      %p51 = por %p49, %p50
      %p53 = scmp.ne.s32.totalorder %s36, %s52
      %p54 = scmp.eq.s32.totalorder %s28, 0
      %p55 = por %p53, %p54
      %s56 = ssub.s32 %s22, %s29
      %p57 = scmp.eq.s32.totalorder %s56, 0
      %s59 = sadd.s32 %s58, 1
      %s60 = scalar_select %p57, %s58, %s59
      %p63 = pneg %p57
      %p64 = scmp.eq.s32.totalorder %s22, 1
      %p65 = por %p63, %p64
      %p66 = scmp.ne.s32.totalorder %s58, %s61
      %p67 = scmp.eq.s32.totalorder %s22, 0
      %p68 = por %p66, %p67
      %p69 = scmp.ne.s32.totalorder %s58, %s61
      %p70 = scmp.eq.s32.totalorder %s27, 1
      %p71 = por %p69, %p70
      %p72 = scmp.ne.s32.totalorder %s61, %s62
      %p73 = scmp.eq.s32.totalorder %s27, 0
      %p74 = por %p72, %p73
      %p75 = scmp.ne.s32.totalorder %s61, %s62
      %p76 = scmp.eq.s32.totalorder %s28, 1
      %p77 = por %p75, %p76
      %p79 = scmp.ne.s32.totalorder %s62, %s78
      %p80 = scmp.eq.s32.totalorder %s28, 0
      %p81 = por %p79, %p80
      %s83 = sadd.s32 %s82, 1
      %p86 = scmp.eq.s32.totalorder %s22, 1
      %p87 = scmp.ne.s32.totalorder %s82, %s84
      %p88 = scmp.eq.s32.totalorder %s22, 0
      %p89 = por %p87, %p88
      %p90 = scmp.ne.s32.totalorder %s82, %s84
      %p91 = scmp.eq.s32.totalorder %s27, 1
      %p92 = por %p90, %p91
      %p93 = scmp.ne.s32.totalorder %s84, %s85
      %p94 = scmp.eq.s32.totalorder %s27, 0
      %p95 = por %p93, %p94
      %p96 = scmp.ne.s32.totalorder %s84, %s85
      %p97 = scmp.eq.s32.totalorder %s28, 1
      %p98 = por %p96, %p97
      %p100 = scmp.ne.s32.totalorder %s85, %s99
      %p101 = scmp.eq.s32.totalorder %s28, 0
      %p102 = por %p100, %p101
      %s104 = sadd.s32 %s103, 1
      %p107 = scmp.eq.s32.totalorder %s22, 1
      %p108 = scmp.ne.s32.totalorder %s103, %s105
      %p109 = scmp.eq.s32.totalorder %s22, 0
      %p110 = por %p108, %p109
      %p111 = scmp.ne.s32.totalorder %s103, %s105
      %p112 = scmp.eq.s32.totalorder %s27, 1
      %p113 = por %p111, %p112
      %p114 = scmp.ne.s32.totalorder %s105, %s106
      %p115 = scmp.eq.s32.totalorder %s27, 0
      %p116 = por %p114, %p115
      %p117 = scmp.ne.s32.totalorder %s105, %s106
      %p118 = scmp.eq.s32.totalorder %s28, 1
      %p119 = por %p117, %p118
      %p121 = scmp.ne.s32.totalorder %s106, %s120
      %p122 = scmp.eq.s32.totalorder %s28, 0
      %p123 = por %p121, %p122
      %s125 = sadd.s32 %s124, 1
      %p128 = scmp.eq.s32.totalorder %s22, 1
      %p129 = scmp.ne.s32.totalorder %s124, %s126
      %p130 = scmp.eq.s32.totalorder %s22, 0
      %p131 = por %p129, %p130
      %p132 = scmp.ne.s32.totalorder %s124, %s126
      %p133 = scmp.eq.s32.totalorder %s27, 1
      %p134 = por %p132, %p133
      %p135 = scmp.ne.s32.totalorder %s126, %s127
      %p136 = scmp.eq.s32.totalorder %s27, 0
      %p137 = por %p135, %p136
      %p138 = scmp.ne.s32.totalorder %s126, %s127
      %p139 = scmp.eq.s32.totalorder %s28, 1
      %p140 = por %p138, %p139
      %p142 = scmp.ne.s32.totalorder %s127, %s141
      %p143 = scmp.eq.s32.totalorder %s28, 0
      %p144 = por %p142, %p143
      %s146 = sadd.s32 %s145, 1
      %p149 = scmp.eq.s32.totalorder %s22, 1
      %p150 = scmp.ne.s32.totalorder %s145, %s147
      %p151 = scmp.eq.s32.totalorder %s22, 0
      %p152 = por %p150, %p151
      %p153 = scmp.ne.s32.totalorder %s145, %s147
      %p154 = scmp.eq.s32.totalorder %s27, 1
      %p155 = por %p153, %p154
      %p156 = scmp.ne.s32.totalorder %s147, %s148
      %p157 = scmp.eq.s32.totalorder %s27, 0
      %p158 = por %p156, %p157
      %p159 = scmp.ne.s32.totalorder %s147, %s148
      %p160 = scmp.eq.s32.totalorder %s28, 1
      %p161 = por %p159, %p160
      %p163 = scmp.ne.s32.totalorder %s148, %s162
      %p164 = scmp.eq.s32.totalorder %s28, 0
      %p165 = por %p163, %p164
      %s166 = ssub.s32 %s22, %s29
      %p167 = scmp.eq.s32.totalorder %s166, 0
      %s169 = sadd.s32 %s168, 1
      %s170 = scalar_select %p167, %s168, %s169
      %p173 = pneg %p167
      %p174 = scmp.eq.s32.totalorder %s22, 1
      %p175 = por %p173, %p174
      %p176 = scmp.ne.s32.totalorder %s168, %s171
      %p177 = scmp.eq.s32.totalorder %s22, 0
      %p178 = por %p176, %p177
      %p179 = scmp.ne.s32.totalorder %s168, %s171
      %p180 = scmp.eq.s32.totalorder %s27, 1
      %p181 = por %p179, %p180
      %p182 = scmp.ne.s32.totalorder %s171, %s172
      %p183 = scmp.eq.s32.totalorder %s27, 0
      %p184 = por %p182, %p183
      %p185 = scmp.ne.s32.totalorder %s171, %s172
      %p186 = scmp.eq.s32.totalorder %s28, 1
      %p187 = por %p185, %p186
      %p189 = scmp.ne.s32.totalorder %s172, %s188
      %p190 = scmp.eq.s32.totalorder %s28, 0
      %p191 = por %p189, %p190
      %p192 = scmp.le.s32.totalorder 1, %s22
      %p193 = scmp.lt.s32.totalorder %s22, 3
      %p194 = pnand %p192, %p193
      %p195 = pneg %p194
      // Predicated region
      $region9: #{tpu_custom_call.1} parent=5 // pred_check
        _
      $region10: #{tpu_custom_call.1} parent=5 // pred_check_branch
        %197 = sbr.rel (%p194) target = $region12
      $region11: #{tpu_custom_call.1} parent=5 // pred_region
        %s198 = ssub.s32 %s22, 1
        // Predicated region
        $region13: #{tpu_custom_call.1} parent=11 // pred_check
          %p199 = pneg %p95
        $region14: #{tpu_custom_call.1} parent=11 // pred_check_branch
          %201 = sbr.rel (%p199) target = $region16
        $region15: #{tpu_custom_call.1} parent=11 // pred_region
          %s203 = ssub.s32 32768, 32768
          %204 = vsyncadd [#allocation6], %s203
          %s205 = sshll.u32 [#allocation7], 4
          %s206 = int_to_ptr.vmem [resolvable:$true] %s205
          %211 = dma.hbm_to_vmem [thread:$0]  %s2, 32768, %s206, [#allocation6], 512, 512, 32
        $region16: #{tpu_custom_call.1} parent=11 // pred_fallthru
          _
        // Predicated region
        $region17: #{tpu_custom_call.1} parent=11 // pred_check
          %p212 = pneg %p116
        $region18: #{tpu_custom_call.1} parent=11 // pred_check_branch
          %214 = sbr.rel (%p212) target = $region20
        $region19: #{tpu_custom_call.1} parent=11 // pred_region
          %s216 = ssub.s32 32768, 32768
          %217 = vsyncadd [#allocation9], %s216
          %s218 = sshll.u32 [#allocation8], 4
          %s219 = int_to_ptr.vmem [resolvable:$true] %s218
          %224 = dma.hbm_to_vmem [thread:$0]  %s3, 32768, %s219, [#allocation9], 512, 512, 32
        $region20: #{tpu_custom_call.1} parent=11 // pred_fallthru
          _
        // Predicated region
        $region21: #{tpu_custom_call.1} parent=11 // pred_check
          %p225 = pneg %p137
        $region22: #{tpu_custom_call.1} parent=11 // pred_check_branch
          %227 = sbr.rel (%p225) target = $region24
        $region23: #{tpu_custom_call.1} parent=11 // pred_region
          %s229 = ssub.s32 32768, 32768
          %230 = vsyncadd [#allocation9], %s229
          %s231 = sshll.u32 [#allocation10], 4
          %s232 = int_to_ptr.vmem [resolvable:$true] %s231
          %237 = dma.hbm_to_vmem [thread:$0]  %s4, 32768, %s232, [#allocation9], 512, 512, 32
        $region24: #{tpu_custom_call.1} parent=11 // pred_fallthru
          _
        // Predicated region
        $region25: #{tpu_custom_call.1} parent=11 // pred_check
          %p238 = pneg %p158
        $region26: #{tpu_custom_call.1} parent=11 // pred_check_branch
          %240 = sbr.rel (%p238) target = $region28
        $region27: #{tpu_custom_call.1} parent=11 // pred_region
          _
        $region28: #{tpu_custom_call.1} parent=11 // pred_fallthru
          _
      $region12: #{tpu_custom_call.1} parent=5 // pred_fallthru
        _
      %p241 = scmp.lt.s32.totalorder %s22, 2
      // Predicated region
      $region29: #{tpu_custom_call.1} parent=5 // pred_check
        %p242 = pneg %p241
      $region30: #{tpu_custom_call.1} parent=5 // pred_check_branch
        %244 = sbr.rel (%p242) target = $region32
      $region31: #{tpu_custom_call.1} parent=5 // pred_region
        // Predicated region
        $region33: #{tpu_custom_call.1} parent=31 // pred_check
          %p245 = pneg %p42
        $region34: #{tpu_custom_call.1} parent=31 // pred_check_branch
          %247 = sbr.rel (%p245) target = $region36
        $region35: #{tpu_custom_call.1} parent=31 // pred_region
          %s248 = sand.u32 %s32, 1
          %s249 = scalar_lea.sflag [#allocation3], %s248
          %s250 = sand.u32 %s32, 1
          %s251 = smul.addr %s250, 256
          %s252 = scalar_lea.vmem [#allocation2], %s251
          %s254 = ssub.s32 4096, 4096
          %255 = vsyncadd %s249, %s254
          %s256 = smul.addr %s22, 32
          %s257 = smul.addr %s256, 128
          %s258 = scalar_lea.hbm %s0, %s257
          %s259 = sshll.u32 %s252, 4
          %s260 = int_to_ptr.vmem [resolvable:$true] %s259
          %265 = dma.hbm_to_vmem [thread:$0]  %s258, 4096, %s260, %s249, 512, 512, 32
        $region36: #{tpu_custom_call.1} parent=31 // pred_fallthru
          _
        // Predicated region
        $region37: #{tpu_custom_call.1} parent=31 // pred_check
          %p266 = pneg %p68
        $region38: #{tpu_custom_call.1} parent=31 // pred_check_branch
          %268 = sbr.rel (%p266) target = $region40
        $region39: #{tpu_custom_call.1} parent=31 // pred_region
          %s269 = sand.u32 %s22, 1
          %s270 = scalar_lea.sflag [#allocation6], %s269
          %s271 = sand.u32 %s58, 1
          %s272 = smul.addr %s271, 256
          %s273 = scalar_lea.vmem [#allocation5], %s272
          %s275 = ssub.s32 4096, 4096
          %276 = vsyncadd %s270, %s275
          %s277 = smul.addr %s22, 32
          %s278 = smul.addr %s277, 128
          %s279 = scalar_lea.hbm %s1, %s278
          %s280 = sshll.u32 %s273, 4
          %s281 = int_to_ptr.vmem [resolvable:$true] %s280
          %286 = dma.hbm_to_vmem [thread:$0]  %s279, 4096, %s281, %s270, 512, 512, 32
        $region40: #{tpu_custom_call.1} parent=31 // pred_fallthru
          _
      $region32: #{tpu_custom_call.1} parent=5 // pred_fallthru
        _
      %p287 = scmp.le.s32.totalorder 1, %s22
      %p288 = scmp.lt.s32.totalorder %s22, 3
      %p289 = pnand %p287, %p288
      %p290 = pneg %p289
      // Predicated region
      $region41: #{tpu_custom_call.1} parent=5 // pred_check
        _
      $region42: #{tpu_custom_call.1} parent=5 // pred_check_branch
        %292 = sbr.rel (%p289) target = $region44
      $region43: #{tpu_custom_call.1} parent=5 // pred_region
        %s293 = ssub.s32 %s22, 1
        %s294 = sand.u32 %s35, 1
        %s295 = scalar_lea.sflag [#allocation3], %s294
        %s296 = sand.u32 %s35, 1
        %s297 = smul.addr %s296, 256
        %s298 = scalar_lea.vmem [#allocation2], %s297
        // Predicated region
        $region45: #{tpu_custom_call.1} parent=43 // pred_check
          %p299 = pneg %p48
        $region46: #{tpu_custom_call.1} parent=43 // pred_check_branch
          %301 = sbr.rel (%p299) target = $region48
        $region47: #{tpu_custom_call.1} parent=43 // pred_region
          %302 = dma.done %s295, 4096
        $region48: #{tpu_custom_call.1} parent=43 // pred_fallthru
          _
        %s303 = sand.u32 %s27, 1
        %s304 = scalar_lea.sflag [#allocation6], %s303
        %s305 = sand.u32 %s61, 1
        %s306 = smul.addr %s305, 256
        %s307 = scalar_lea.vmem [#allocation5], %s306
        // Predicated region
        $region49: #{tpu_custom_call.1} parent=43 // pred_check
          %p308 = pneg %p74
        $region50: #{tpu_custom_call.1} parent=43 // pred_check_branch
          %310 = sbr.rel (%p308) target = $region52
        $region51: #{tpu_custom_call.1} parent=43 // pred_region
          %311 = dma.done %s304, 4096
        $region52: #{tpu_custom_call.1} parent=43 // pred_fallthru
          _
        // Predicated region
        $region53: #{tpu_custom_call.1} parent=43 // pred_check
          %p312 = pneg %p95
        $region54: #{tpu_custom_call.1} parent=43 // pred_check_branch
          %314 = sbr.rel (%p312) target = $region56
        $region55: #{tpu_custom_call.1} parent=43 // pred_region
          %315 = dma.done [#allocation6], 32768
        $region56: #{tpu_custom_call.1} parent=43 // pred_fallthru
          _
        // Predicated region
        $region57: #{tpu_custom_call.1} parent=43 // pred_check
          %p316 = pneg %p116
        $region58: #{tpu_custom_call.1} parent=43 // pred_check_branch
          %318 = sbr.rel (%p316) target = $region60
        $region59: #{tpu_custom_call.1} parent=43 // pred_region
          %319 = dma.done [#allocation9], 32768
        $region60: #{tpu_custom_call.1} parent=43 // pred_fallthru
          _
        // Predicated region
        $region61: #{tpu_custom_call.1} parent=43 // pred_check
          %p320 = pneg %p137
        $region62: #{tpu_custom_call.1} parent=43 // pred_check_branch
          %322 = sbr.rel (%p320) target = $region64
        $region63: #{tpu_custom_call.1} parent=43 // pred_region
          %323 = dma.done [#allocation9], 32768
        $region64: #{tpu_custom_call.1} parent=43 // pred_fallthru
          _
        %s324 = sand.u32 %s35, 1
        %s325 = scalar_lea.sflag [#allocation3], %s324
        %s326 = sand.u32 %s35, 1
        %s327 = smul.addr %s326, 256
        %s328 = scalar_lea.vmem [#allocation2], %s327
        %p329 = pneg %p48
        %p330 = pneg %p45
        %s331 = sand.u32 %s27, 1
        %s332 = scalar_lea.sflag [#allocation6], %s331
        %s333 = sand.u32 %s61, 1
        %s334 = smul.addr %s333, 256
        %s335 = scalar_lea.vmem [#allocation5], %s334
        %p336 = pneg %p74
        %p337 = pneg %p71
        %p338 = pneg %p95
        %p339 = pneg %p92
        %p340 = pneg %p116
        %p341 = pneg %p113
        %p342 = pneg %p137
        %p343 = pneg %p134
        %p344 = pneg %p158
        %p345 = pneg %p155
        %p346 = pneg %p184
        %p347 = pneg %p181
        %s348 = sand.u32 %s171, 1
        %s349 = scalar_lea.sflag [#allocation4], %s348
        %s350 = sand.u32 %s171, 1
        %s351 = smul.addr %s350, 256
        %s352 = scalar_lea.vmem [#allocation11], %s351
        %v353 = vld [vmem:[%s298] sm:$0xff]
        %v354 = vld [vmem:[%s298 + $0x8] sm:$0xff]
        %v355 = vld [vmem:[%s298 + $0x10] sm:$0xff]
        %v356 = vld [vmem:[%s298 + $0x18] sm:$0xff]
        %v357 = vld [vmem:[%s298 + $0x20] sm:$0xff]
        %v358 = vld [vmem:[%s298 + $0x28] sm:$0xff]
        %v359 = vld [vmem:[%s298 + $0x30] sm:$0xff]
        %v360 = vld [vmem:[%s298 + $0x38] sm:$0xff]
        %v361 = vld [vmem:[%s298 + $0x40] sm:$0xff]
        %v362 = vld [vmem:[%s298 + $0x48] sm:$0xff]
        %v363 = vld [vmem:[%s298 + $0x50] sm:$0xff]
        %v364 = vld [vmem:[%s298 + $0x58] sm:$0xff]
        %v365 = vld [vmem:[%s298 + $0x60] sm:$0xff]
        %v366 = vld [vmem:[%s298 + $0x68] sm:$0xff]
        %v367 = vld [vmem:[%s298 + $0x70] sm:$0xff]
        %v368 = vld [vmem:[%s298 + $0x78] sm:$0xff]
        %v369 = vld [vmem:[%s298 + $0x80] sm:$0xff]
        %v370 = vld [vmem:[%s298 + $0x88] sm:$0xff]
        %v371 = vld [vmem:[%s298 + $0x90] sm:$0xff]
        %v372 = vld [vmem:[%s298 + $0x98] sm:$0xff]
        %v373 = vld [vmem:[%s298 + $0xa0] sm:$0xff]
        %v374 = vld [vmem:[%s298 + $0xa8] sm:$0xff]
        %v375 = vld [vmem:[%s298 + $0xb0] sm:$0xff]
        %v376 = vld [vmem:[%s298 + $0xb8] sm:$0xff]
        %v377 = vld [vmem:[%s298 + $0xc0] sm:$0xff]
        %v378 = vld [vmem:[%s298 + $0xc8] sm:$0xff]
        %v379 = vld [vmem:[%s298 + $0xd0] sm:$0xff]
        %v380 = vld [vmem:[%s298 + $0xd8] sm:$0xff]
        %v381 = vld [vmem:[%s298 + $0xe0] sm:$0xff]
        %v382 = vld [vmem:[%s298 + $0xe8] sm:$0xff]
        %v383 = vld [vmem:[%s298 + $0xf0] sm:$0xff]
        %v384 = vld [vmem:[%s298 + $0xf8] sm:$0xff]
        %v385 = vld [vmem:[#allocation7] sm:$0xff]
        %v386 = vld [vmem:[#allocation7 + $0x8] sm:$0xff]
        %v387 = vld [vmem:[#allocation7 + $0x10] sm:$0xff]
        %v388 = vld [vmem:[#allocation7 + $0x18] sm:$0xff]
        %v389 = vld [vmem:[#allocation7 + $0x20] sm:$0xff]
        %v390 = vld [vmem:[#allocation7 + $0x28] sm:$0xff]
        %v391 = vld [vmem:[#allocation7 + $0x30] sm:$0xff]
        %v392 = vld [vmem:[#allocation7 + $0x38] sm:$0xff]
        %v393 = vld [vmem:[#allocation7 + $0x40] sm:$0xff]
        %v394 = vld [vmem:[#allocation7 + $0x48] sm:$0xff]
        %v395 = vld [vmem:[#allocation7 + $0x50] sm:$0xff]
        %v396 = vld [vmem:[#allocation7 + $0x58] sm:$0xff]
        %v397 = vld [vmem:[#allocation7 + $0x60] sm:$0xff]
        %v398 = vld [vmem:[#allocation7 + $0x68] sm:$0xff]
        %v399 = vld [vmem:[#allocation7 + $0x70] sm:$0xff]
        %v400 = vld [vmem:[#allocation7 + $0x78] sm:$0xff]
        %v401 = vld [vmem:[#allocation7 + $0x80] sm:$0xff]
        %v402 = vld [vmem:[#allocation7 + $0x88] sm:$0xff]
        %v403 = vld [vmem:[#allocation7 + $0x90] sm:$0xff]
        %v404 = vld [vmem:[#allocation7 + $0x98] sm:$0xff]
        %v405 = vld [vmem:[#allocation7 + $0xa0] sm:$0xff]
        %v406 = vld [vmem:[#allocation7 + $0xa8] sm:$0xff]
        %v407 = vld [vmem:[#allocation7 + $0xb0] sm:$0xff]
        %v408 = vld [vmem:[#allocation7 + $0xb8] sm:$0xff]
        %v409 = vld [vmem:[#allocation7 + $0xc0] sm:$0xff]
        %v410 = vld [vmem:[#allocation7 + $0xc8] sm:$0xff]
        %v411 = vld [vmem:[#allocation7 + $0xd0] sm:$0xff]
        %v412 = vld [vmem:[#allocation7 + $0xd8] sm:$0xff]
        %v413 = vld [vmem:[#allocation7 + $0xe0] sm:$0xff]
        %v414 = vld [vmem:[#allocation7 + $0xe8] sm:$0xff]
        %v415 = vld [vmem:[#allocation7 + $0xf0] sm:$0xff]
        %v416 = vld [vmem:[#allocation7 + $0xf8] sm:$0xff]
        %v417 = vld [vmem:[#allocation7 + $0x100] sm:$0xff]
        %v418 = vld [vmem:[#allocation7 + $0x108] sm:$0xff]
        %v419 = vld [vmem:[#allocation7 + $0x110] sm:$0xff]
        %v420 = vld [vmem:[#allocation7 + $0x118] sm:$0xff]
        %v421 = vld [vmem:[#allocation7 + $0x120] sm:$0xff]
        %v422 = vld [vmem:[#allocation7 + $0x128] sm:$0xff]
        %v423 = vld [vmem:[#allocation7 + $0x130] sm:$0xff]
        %v424 = vld [vmem:[#allocation7 + $0x138] sm:$0xff]
        %v425 = vld [vmem:[#allocation7 + $0x140] sm:$0xff]
        %v426 = vld [vmem:[#allocation7 + $0x148] sm:$0xff]
        %v427 = vld [vmem:[#allocation7 + $0x150] sm:$0xff]
        %v428 = vld [vmem:[#allocation7 + $0x158] sm:$0xff]
        %v429 = vld [vmem:[#allocation7 + $0x160] sm:$0xff]
        %v430 = vld [vmem:[#allocation7 + $0x168] sm:$0xff]
        %v431 = vld [vmem:[#allocation7 + $0x170] sm:$0xff]
        %v432 = vld [vmem:[#allocation7 + $0x178] sm:$0xff]
        %v433 = vld [vmem:[#allocation7 + $0x180] sm:$0xff]
        %v434 = vld [vmem:[#allocation7 + $0x188] sm:$0xff]
        %v435 = vld [vmem:[#allocation7 + $0x190] sm:$0xff]
        %v436 = vld [vmem:[#allocation7 + $0x198] sm:$0xff]
        %v437 = vld [vmem:[#allocation7 + $0x1a0] sm:$0xff]
        %v438 = vld [vmem:[#allocation7 + $0x1a8] sm:$0xff]
        %v439 = vld [vmem:[#allocation7 + $0x1b0] sm:$0xff]
        %v440 = vld [vmem:[#allocation7 + $0x1b8] sm:$0xff]
        %v441 = vld [vmem:[#allocation7 + $0x1c0] sm:$0xff]
        %v442 = vld [vmem:[#allocation7 + $0x1c8] sm:$0xff]
        %v443 = vld [vmem:[#allocation7 + $0x1d0] sm:$0xff]
        %v444 = vld [vmem:[#allocation7 + $0x1d8] sm:$0xff]
        %v445 = vld [vmem:[#allocation7 + $0x1e0] sm:$0xff]
        %v446 = vld [vmem:[#allocation7 + $0x1e8] sm:$0xff]
        %v447 = vld [vmem:[#allocation7 + $0x1f0] sm:$0xff]
        %v448 = vld [vmem:[#allocation7 + $0x1f8] sm:$0xff]
        %v449 = vld [vmem:[#allocation7 + $0x200] sm:$0xff]
        %v450 = vld [vmem:[#allocation7 + $0x208] sm:$0xff]
        %v451 = vld [vmem:[#allocation7 + $0x210] sm:$0xff]
        %v452 = vld [vmem:[#allocation7 + $0x218] sm:$0xff]
        %v453 = vld [vmem:[#allocation7 + $0x220] sm:$0xff]
        %v454 = vld [vmem:[#allocation7 + $0x228] sm:$0xff]
        %v455 = vld [vmem:[#allocation7 + $0x230] sm:$0xff]
        %v456 = vld [vmem:[#allocation7 + $0x238] sm:$0xff]
        %v457 = vld [vmem:[#allocation7 + $0x240] sm:$0xff]
        %v458 = vld [vmem:[#allocation7 + $0x248] sm:$0xff]
        %v459 = vld [vmem:[#allocation7 + $0x250] sm:$0xff]
        %v460 = vld [vmem:[#allocation7 + $0x258] sm:$0xff]
        %v461 = vld [vmem:[#allocation7 + $0x260] sm:$0xff]
        %v462 = vld [vmem:[#allocation7 + $0x268] sm:$0xff]
        %v463 = vld [vmem:[#allocation7 + $0x270] sm:$0xff]
        %v464 = vld [vmem:[#allocation7 + $0x278] sm:$0xff]
        %v465 = vld [vmem:[#allocation7 + $0x280] sm:$0xff]
        %v466 = vld [vmem:[#allocation7 + $0x288] sm:$0xff]
        %v467 = vld [vmem:[#allocation7 + $0x290] sm:$0xff]
        %v468 = vld [vmem:[#allocation7 + $0x298] sm:$0xff]
        %v469 = vld [vmem:[#allocation7 + $0x2a0] sm:$0xff]
        %v470 = vld [vmem:[#allocation7 + $0x2a8] sm:$0xff]
        %v471 = vld [vmem:[#allocation7 + $0x2b0] sm:$0xff]
        %v472 = vld [vmem:[#allocation7 + $0x2b8] sm:$0xff]
        %v473 = vld [vmem:[#allocation7 + $0x2c0] sm:$0xff]
        %v474 = vld [vmem:[#allocation7 + $0x2c8] sm:$0xff]
        %v475 = vld [vmem:[#allocation7 + $0x2d0] sm:$0xff]
        %v476 = vld [vmem:[#allocation7 + $0x2d8] sm:$0xff]
        %v477 = vld [vmem:[#allocation7 + $0x2e0] sm:$0xff]
        %v478 = vld [vmem:[#allocation7 + $0x2e8] sm:$0xff]
        %v479 = vld [vmem:[#allocation7 + $0x2f0] sm:$0xff]
        %v480 = vld [vmem:[#allocation7 + $0x2f8] sm:$0xff]
        %v481 = vld [vmem:[#allocation7 + $0x300] sm:$0xff]
        %v482 = vld [vmem:[#allocation7 + $0x308] sm:$0xff]
        %v483 = vld [vmem:[#allocation7 + $0x310] sm:$0xff]
        %v484 = vld [vmem:[#allocation7 + $0x318] sm:$0xff]
        %v485 = vld [vmem:[#allocation7 + $0x320] sm:$0xff]
        %v486 = vld [vmem:[#allocation7 + $0x328] sm:$0xff]
        %v487 = vld [vmem:[#allocation7 + $0x330] sm:$0xff]
        %v488 = vld [vmem:[#allocation7 + $0x338] sm:$0xff]
        %v489 = vld [vmem:[#allocation7 + $0x340] sm:$0xff]
        %v490 = vld [vmem:[#allocation7 + $0x348] sm:$0xff]
        %v491 = vld [vmem:[#allocation7 + $0x350] sm:$0xff]
        %v492 = vld [vmem:[#allocation7 + $0x358] sm:$0xff]
        %v493 = vld [vmem:[#allocation7 + $0x360] sm:$0xff]
        %v494 = vld [vmem:[#allocation7 + $0x368] sm:$0xff]
        %v495 = vld [vmem:[#allocation7 + $0x370] sm:$0xff]
        %v496 = vld [vmem:[#allocation7 + $0x378] sm:$0xff]
        %v497 = vld [vmem:[#allocation7 + $0x380] sm:$0xff]
        %v498 = vld [vmem:[#allocation7 + $0x388] sm:$0xff]
        %v499 = vld [vmem:[#allocation7 + $0x390] sm:$0xff]
        %v500 = vld [vmem:[#allocation7 + $0x398] sm:$0xff]
        %v501 = vld [vmem:[#allocation7 + $0x3a0] sm:$0xff]
        %v502 = vld [vmem:[#allocation7 + $0x3a8] sm:$0xff]
        %v503 = vld [vmem:[#allocation7 + $0x3b0] sm:$0xff]
        %v504 = vld [vmem:[#allocation7 + $0x3b8] sm:$0xff]
        %v505 = vld [vmem:[#allocation7 + $0x3c0] sm:$0xff]
        %v506 = vld [vmem:[#allocation7 + $0x3c8] sm:$0xff]
        %v507 = vld [vmem:[#allocation7 + $0x3d0] sm:$0xff]
        %v508 = vld [vmem:[#allocation7 + $0x3d8] sm:$0xff]
        %v509 = vld [vmem:[#allocation7 + $0x3e0] sm:$0xff]
        %v510 = vld [vmem:[#allocation7 + $0x3e8] sm:$0xff]
        %v511 = vld [vmem:[#allocation7 + $0x3f0] sm:$0xff]
        %v512 = vld [vmem:[#allocation7 + $0x3f8] sm:$0xff]
        %v513 = vld [vmem:[#allocation7 + $0x400] sm:$0xff]
        %v514 = vld [vmem:[#allocation7 + $0x408] sm:$0xff]
        %v515 = vld [vmem:[#allocation7 + $0x410] sm:$0xff]
        %v516 = vld [vmem:[#allocation7 + $0x418] sm:$0xff]
        %v517 = vld [vmem:[#allocation7 + $0x420] sm:$0xff]
        %v518 = vld [vmem:[#allocation7 + $0x428] sm:$0xff]
        %v519 = vld [vmem:[#allocation7 + $0x430] sm:$0xff]
        %v520 = vld [vmem:[#allocation7 + $0x438] sm:$0xff]
        %v521 = vld [vmem:[#allocation7 + $0x440] sm:$0xff]
        %v522 = vld [vmem:[#allocation7 + $0x448] sm:$0xff]
        %v523 = vld [vmem:[#allocation7 + $0x450] sm:$0xff]
        %v524 = vld [vmem:[#allocation7 + $0x458] sm:$0xff]
        %v525 = vld [vmem:[#allocation7 + $0x460] sm:$0xff]
        %v526 = vld [vmem:[#allocation7 + $0x468] sm:$0xff]
        %v527 = vld [vmem:[#allocation7 + $0x470] sm:$0xff]
        %v528 = vld [vmem:[#allocation7 + $0x478] sm:$0xff]
        %v529 = vld [vmem:[#allocation7 + $0x480] sm:$0xff]
        %v530 = vld [vmem:[#allocation7 + $0x488] sm:$0xff]
        %v531 = vld [vmem:[#allocation7 + $0x490] sm:$0xff]
        %v532 = vld [vmem:[#allocation7 + $0x498] sm:$0xff]
        %v533 = vld [vmem:[#allocation7 + $0x4a0] sm:$0xff]
        %v534 = vld [vmem:[#allocation7 + $0x4a8] sm:$0xff]
        %v535 = vld [vmem:[#allocation7 + $0x4b0] sm:$0xff]
        %v536 = vld [vmem:[#allocation7 + $0x4b8] sm:$0xff]
        %v537 = vld [vmem:[#allocation7 + $0x4c0] sm:$0xff]
        %v538 = vld [vmem:[#allocation7 + $0x4c8] sm:$0xff]
        %v539 = vld [vmem:[#allocation7 + $0x4d0] sm:$0xff]
        %v540 = vld [vmem:[#allocation7 + $0x4d8] sm:$0xff]
        %v541 = vld [vmem:[#allocation7 + $0x4e0] sm:$0xff]
        %v542 = vld [vmem:[#allocation7 + $0x4e8] sm:$0xff]
        %v543 = vld [vmem:[#allocation7 + $0x4f0] sm:$0xff]
        %v544 = vld [vmem:[#allocation7 + $0x4f8] sm:$0xff]
        %v545 = vld [vmem:[#allocation7 + $0x500] sm:$0xff]
        %v546 = vld [vmem:[#allocation7 + $0x508] sm:$0xff]
        %v547 = vld [vmem:[#allocation7 + $0x510] sm:$0xff]
        %v548 = vld [vmem:[#allocation7 + $0x518] sm:$0xff]
        %v549 = vld [vmem:[#allocation7 + $0x520] sm:$0xff]
        %v550 = vld [vmem:[#allocation7 + $0x528] sm:$0xff]
        %v551 = vld [vmem:[#allocation7 + $0x530] sm:$0xff]
        %v552 = vld [vmem:[#allocation7 + $0x538] sm:$0xff]
        %v553 = vld [vmem:[#allocation7 + $0x540] sm:$0xff]
        %v554 = vld [vmem:[#allocation7 + $0x548] sm:$0xff]
        %v555 = vld [vmem:[#allocation7 + $0x550] sm:$0xff]
        %v556 = vld [vmem:[#allocation7 + $0x558] sm:$0xff]
        %v557 = vld [vmem:[#allocation7 + $0x560] sm:$0xff]
        %v558 = vld [vmem:[#allocation7 + $0x568] sm:$0xff]
        %v559 = vld [vmem:[#allocation7 + $0x570] sm:$0xff]
        %v560 = vld [vmem:[#allocation7 + $0x578] sm:$0xff]
        %v561 = vld [vmem:[#allocation7 + $0x580] sm:$0xff]
        %v562 = vld [vmem:[#allocation7 + $0x588] sm:$0xff]
        %v563 = vld [vmem:[#allocation7 + $0x590] sm:$0xff]
        %v564 = vld [vmem:[#allocation7 + $0x598] sm:$0xff]
        %v565 = vld [vmem:[#allocation7 + $0x5a0] sm:$0xff]
        %v566 = vld [vmem:[#allocation7 + $0x5a8] sm:$0xff]
        %v567 = vld [vmem:[#allocation7 + $0x5b0] sm:$0xff]
        %v568 = vld [vmem:[#allocation7 + $0x5b8] sm:$0xff]
        %v569 = vld [vmem:[#allocation7 + $0x5c0] sm:$0xff]
        %v570 = vld [vmem:[#allocation7 + $0x5c8] sm:$0xff]
        %v571 = vld [vmem:[#allocation7 + $0x5d0] sm:$0xff]
        %v572 = vld [vmem:[#allocation7 + $0x5d8] sm:$0xff]
        %v573 = vld [vmem:[#allocation7 + $0x5e0] sm:$0xff]
        %v574 = vld [vmem:[#allocation7 + $0x5e8] sm:$0xff]
        %v575 = vld [vmem:[#allocation7 + $0x5f0] sm:$0xff]
        %v576 = vld [vmem:[#allocation7 + $0x5f8] sm:$0xff]
        %v577 = vld [vmem:[#allocation7 + $0x600] sm:$0xff]
        %v578 = vld [vmem:[#allocation7 + $0x608] sm:$0xff]
        %v579 = vld [vmem:[#allocation7 + $0x610] sm:$0xff]
        %v580 = vld [vmem:[#allocation7 + $0x618] sm:$0xff]
        %v581 = vld [vmem:[#allocation7 + $0x620] sm:$0xff]
        %v582 = vld [vmem:[#allocation7 + $0x628] sm:$0xff]
        %v583 = vld [vmem:[#allocation7 + $0x630] sm:$0xff]
        %v584 = vld [vmem:[#allocation7 + $0x638] sm:$0xff]
        %v585 = vld [vmem:[#allocation7 + $0x640] sm:$0xff]
        %v586 = vld [vmem:[#allocation7 + $0x648] sm:$0xff]
        %v587 = vld [vmem:[#allocation7 + $0x650] sm:$0xff]
        %v588 = vld [vmem:[#allocation7 + $0x658] sm:$0xff]
        %v589 = vld [vmem:[#allocation7 + $0x660] sm:$0xff]
        %v590 = vld [vmem:[#allocation7 + $0x668] sm:$0xff]
        %v591 = vld [vmem:[#allocation7 + $0x670] sm:$0xff]
        %v592 = vld [vmem:[#allocation7 + $0x678] sm:$0xff]
        %v593 = vld [vmem:[#allocation7 + $0x680] sm:$0xff]
        %v594 = vld [vmem:[#allocation7 + $0x688] sm:$0xff]
        %v595 = vld [vmem:[#allocation7 + $0x690] sm:$0xff]
        %v596 = vld [vmem:[#allocation7 + $0x698] sm:$0xff]
        %v597 = vld [vmem:[#allocation7 + $0x6a0] sm:$0xff]
        %v598 = vld [vmem:[#allocation7 + $0x6a8] sm:$0xff]
        %v599 = vld [vmem:[#allocation7 + $0x6b0] sm:$0xff]
        %v600 = vld [vmem:[#allocation7 + $0x6b8] sm:$0xff]
        %v601 = vld [vmem:[#allocation7 + $0x6c0] sm:$0xff]
        %v602 = vld [vmem:[#allocation7 + $0x6c8] sm:$0xff]
        %v603 = vld [vmem:[#allocation7 + $0x6d0] sm:$0xff]
        %v604 = vld [vmem:[#allocation7 + $0x6d8] sm:$0xff]
        %v605 = vld [vmem:[#allocation7 + $0x6e0] sm:$0xff]
        %v606 = vld [vmem:[#allocation7 + $0x6e8] sm:$0xff]
        %v607 = vld [vmem:[#allocation7 + $0x6f0] sm:$0xff]
        %v608 = vld [vmem:[#allocation7 + $0x6f8] sm:$0xff]
        %v609 = vld [vmem:[#allocation7 + $0x700] sm:$0xff]
        %v610 = vld [vmem:[#allocation7 + $0x708] sm:$0xff]
        %v611 = vld [vmem:[#allocation7 + $0x710] sm:$0xff]
        %v612 = vld [vmem:[#allocation7 + $0x718] sm:$0xff]
        %v613 = vld [vmem:[#allocation7 + $0x720] sm:$0xff]
        %v614 = vld [vmem:[#allocation7 + $0x728] sm:$0xff]
        %v615 = vld [vmem:[#allocation7 + $0x730] sm:$0xff]
        %v616 = vld [vmem:[#allocation7 + $0x738] sm:$0xff]
        %v617 = vld [vmem:[#allocation7 + $0x740] sm:$0xff]
        %v618 = vld [vmem:[#allocation7 + $0x748] sm:$0xff]
        %v619 = vld [vmem:[#allocation7 + $0x750] sm:$0xff]
        %v620 = vld [vmem:[#allocation7 + $0x758] sm:$0xff]
        %v621 = vld [vmem:[#allocation7 + $0x760] sm:$0xff]
        %v622 = vld [vmem:[#allocation7 + $0x768] sm:$0xff]
        %v623 = vld [vmem:[#allocation7 + $0x770] sm:$0xff]
        %v624 = vld [vmem:[#allocation7 + $0x778] sm:$0xff]
        %v625 = vld [vmem:[#allocation7 + $0x780] sm:$0xff]
        %v626 = vld [vmem:[#allocation7 + $0x788] sm:$0xff]
        %v627 = vld [vmem:[#allocation7 + $0x790] sm:$0xff]
        %v628 = vld [vmem:[#allocation7 + $0x798] sm:$0xff]
        %v629 = vld [vmem:[#allocation7 + $0x7a0] sm:$0xff]
        %v630 = vld [vmem:[#allocation7 + $0x7a8] sm:$0xff]
        %v631 = vld [vmem:[#allocation7 + $0x7b0] sm:$0xff]
        %v632 = vld [vmem:[#allocation7 + $0x7b8] sm:$0xff]
        %v633 = vld [vmem:[#allocation7 + $0x7c0] sm:$0xff]
        %v634 = vld [vmem:[#allocation7 + $0x7c8] sm:$0xff]
        %v635 = vld [vmem:[#allocation7 + $0x7d0] sm:$0xff]
        %v636 = vld [vmem:[#allocation7 + $0x7d8] sm:$0xff]
        %v637 = vld [vmem:[#allocation7 + $0x7e0] sm:$0xff]
        %v638 = vld [vmem:[#allocation7 + $0x7e8] sm:$0xff]
        %v639 = vld [vmem:[#allocation7 + $0x7f0] sm:$0xff]
        %v640 = vld [vmem:[#allocation7 + $0x7f8] sm:$0xff]
        %641 = vmatprep.subr.mxu0 %v446
        %642 = vmatpush1.msra.mxu0 %v445
        %643 = vmatprep.subr.mxu0 %v442
        %644 = vmatpush1.msra.mxu0 %v441
        %645 = vmatprep.subr.mxu0 %v438
        %646 = vmatpush1.msra.mxu0 %v437
        %647 = vmatprep.subr.mxu0 %v434
        %648 = vmatpush1.msra.mxu0 %v433
        %649 = vmatprep.subr.mxu0 %v430
        %650 = vmatpush1.msra.mxu0 %v429
        %651 = vmatprep.subr.mxu0 %v426
        %652 = vmatpush1.msra.mxu0 %v425
        %653 = vmatprep.subr.mxu0 %v422
        %654 = vmatpush1.msra.mxu0 %v421
        %655 = vmatprep.subr.mxu0 %v418
        %656 = vmatpush1.msra.mxu0 %v417
        %657 = vmatprep.subr.mxu0 %v414
        %658 = vmatpush1.msra.mxu0 %v413
        %659 = vmatprep.subr.mxu0 %v410
        %660 = vmatpush1.msra.mxu0 %v409
        %661 = vmatprep.subr.mxu0 %v406
        %662 = vmatpush1.msra.mxu0 %v405
        %663 = vmatprep.subr.mxu0 %v402
        %664 = vmatpush1.msra.mxu0 %v401
        %665 = vmatprep.subr.mxu0 %v398
        %666 = vmatpush1.msra.mxu0 %v397
        %667 = vmatprep.subr.mxu0 %v394
        %668 = vmatpush1.msra.mxu0 %v393
        %669 = vmatprep.subr.mxu0 %v390
        %670 = vmatpush1.msra.mxu0 %v389
        %671 = vmatprep.subr.mxu0 %v386
        %672 = vmatpush1.msra.mxu0 %v385
        %673 = vmatprep.subr.mxu0 %v510
        %674 = vmatpush2.msra.mxu0 %v509
        %675 = vmatprep.subr.mxu0 %v506
        %676 = vmatpush2.msra.mxu0 %v505
        %677 = vmatprep.subr.mxu0 %v502
        %678 = vmatpush2.msra.mxu0 %v501
        %679 = vmatprep.subr.mxu0 %v498
        %680 = vmatpush2.msra.mxu0 %v497
        %681 = vmatprep.subr.mxu0 %v494
        %682 = vmatpush2.msra.mxu0 %v493
        %683 = vmatprep.subr.mxu0 %v490
        %684 = vmatpush2.msra.mxu0 %v489
        %685 = vmatprep.subr.mxu0 %v486
        %686 = vmatpush2.msra.mxu0 %v485
        %687 = vmatprep.subr.mxu0 %v482
        %688 = vmatpush2.msra.mxu0 %v481
        %689 = vmatprep.subr.mxu0 %v478
        %690 = vmatpush2.msra.mxu0 %v477
        %691 = vmatprep.subr.mxu0 %v474
        %692 = vmatpush2.msra.mxu0 %v473
        %693 = vmatprep.subr.mxu0 %v470
        %694 = vmatpush2.msra.mxu0 %v469
        %695 = vmatprep.subr.mxu0 %v466
        %696 = vmatpush2.msra.mxu0 %v465
        %697 = vmatprep.subr.mxu0 %v462
        %698 = vmatpush2.msra.mxu0 %v461
        %699 = vmatprep.subr.mxu0 %v458
        %700 = vmatpush2.msra.mxu0 %v457
        %701 = vmatprep.subr.mxu0 %v454
        %702 = vmatpush2.msra.mxu0 %v453
        %703 = vmatprep.subr.mxu0 %v450
        %704 = vmatpush2.msra.mxu0 %v449
        %705 = vmatprep.mubr.f32.mxu0 %v354
        %706 = vmatmul.mubr.f32.gmra.mxu0 %v353
        %v707 = vpop.f32.mrf.mxu0
        %v708 = vadd.f32 0.0, %v707
        %v709 = vpop.f32.mrf.mxu0
        %v710 = vadd.f32 0.0, %v709
        %711 = vmatprep.mubr.f32.mxu0 %v358
        %712 = vmatmul.mubr.f32.gmra.mxu0 %v357
        %v713 = vpop.f32.mrf.mxu0
        %v714 = vadd.f32 0.0, %v713
        %v715 = vpop.f32.mrf.mxu0
        %v716 = vadd.f32 0.0, %v715
        %717 = vmatprep.mubr.f32.mxu0 %v362
        %718 = vmatmul.mubr.f32.gmra.mxu0 %v361
        %v719 = vpop.f32.mrf.mxu0
        %v720 = vadd.f32 0.0, %v719
        %v721 = vpop.f32.mrf.mxu0
        %v722 = vadd.f32 0.0, %v721
        %723 = vmatprep.mubr.f32.mxu0 %v366
        %724 = vmatmul.mubr.f32.gmra.mxu0 %v365
        %v725 = vpop.f32.mrf.mxu0
        %v726 = vadd.f32 0.0, %v725
        %v727 = vpop.f32.mrf.mxu0
        %v728 = vadd.f32 0.0, %v727
        %729 = vmatprep.mubr.f32.mxu0 %v370
        %730 = vmatmul.mubr.f32.gmra.mxu0 %v369
        %v731 = vpop.f32.mrf.mxu0
        %v732 = vadd.f32 0.0, %v731
        %v733 = vpop.f32.mrf.mxu0
        %v734 = vadd.f32 0.0, %v733
        %735 = vmatprep.mubr.f32.mxu0 %v374
        %736 = vmatmul.mubr.f32.gmra.mxu0 %v373
        %v737 = vpop.f32.mrf.mxu0
        %v738 = vadd.f32 0.0, %v737
        %v739 = vpop.f32.mrf.mxu0
        %v740 = vadd.f32 0.0, %v739
        %741 = vmatprep.mubr.f32.mxu0 %v378
        %742 = vmatmul.mubr.f32.gmra.mxu0 %v377
        %v743 = vpop.f32.mrf.mxu0
        %v744 = vadd.f32 0.0, %v743
        %v745 = vpop.f32.mrf.mxu0
        %v746 = vadd.f32 0.0, %v745
        %747 = vmatprep.mubr.f32.mxu0 %v382
        %748 = vmatmul.mubr.f32.gmra.mxu0 %v381
        %v749 = vpop.f32.mrf.mxu0
        %v750 = vadd.f32 0.0, %v749
        %v751 = vpop.f32.mrf.mxu0
        %v752 = vadd.f32 0.0, %v751
        %753 = vdwg.mxu0
        %754 = vmatprep.subr.mxu0 %v574
        %755 = vmatpush1.msra.mxu0 %v573
        %756 = vmatprep.subr.mxu0 %v570
        %757 = vmatpush1.msra.mxu0 %v569
        %758 = vmatprep.subr.mxu0 %v566
        %759 = vmatpush1.msra.mxu0 %v565
        %760 = vmatprep.subr.mxu0 %v562
        %761 = vmatpush1.msra.mxu0 %v561
        %762 = vmatprep.subr.mxu0 %v558
        %763 = vmatpush1.msra.mxu0 %v557
        %764 = vmatprep.subr.mxu0 %v554
        %765 = vmatpush1.msra.mxu0 %v553
        %766 = vmatprep.subr.mxu0 %v550
        %767 = vmatpush1.msra.mxu0 %v549
        %768 = vmatprep.subr.mxu0 %v546
        %769 = vmatpush1.msra.mxu0 %v545
        %770 = vmatprep.subr.mxu0 %v542
        %771 = vmatpush1.msra.mxu0 %v541
        %772 = vmatprep.subr.mxu0 %v538
        %773 = vmatpush1.msra.mxu0 %v537
        %774 = vmatprep.subr.mxu0 %v534
        %775 = vmatpush1.msra.mxu0 %v533
        %776 = vmatprep.subr.mxu0 %v530
        %777 = vmatpush1.msra.mxu0 %v529
        %778 = vmatprep.subr.mxu0 %v526
        %779 = vmatpush1.msra.mxu0 %v525
        %780 = vmatprep.subr.mxu0 %v522
        %781 = vmatpush1.msra.mxu0 %v521
        %782 = vmatprep.subr.mxu0 %v518
        %783 = vmatpush1.msra.mxu0 %v517
        %784 = vmatprep.subr.mxu0 %v514
        %785 = vmatpush1.msra.mxu0 %v513
        %786 = vmatprep.subr.mxu0 %v638
        %787 = vmatpush2.msra.mxu0 %v637
        %788 = vmatprep.subr.mxu0 %v634
        %789 = vmatpush2.msra.mxu0 %v633
        %790 = vmatprep.subr.mxu0 %v630
        %791 = vmatpush2.msra.mxu0 %v629
        %792 = vmatprep.subr.mxu0 %v626
        %793 = vmatpush2.msra.mxu0 %v625
        %794 = vmatprep.subr.mxu0 %v622
        %795 = vmatpush2.msra.mxu0 %v621
        %796 = vmatprep.subr.mxu0 %v618
        %797 = vmatpush2.msra.mxu0 %v617
        %798 = vmatprep.subr.mxu0 %v614
        %799 = vmatpush2.msra.mxu0 %v613
        %800 = vmatprep.subr.mxu0 %v610
        %801 = vmatpush2.msra.mxu0 %v609
        %802 = vmatprep.subr.mxu0 %v606
        %803 = vmatpush2.msra.mxu0 %v605
        %804 = vmatprep.subr.mxu0 %v602
        %805 = vmatpush2.msra.mxu0 %v601
        %806 = vmatprep.subr.mxu0 %v598
        %807 = vmatpush2.msra.mxu0 %v597
        %808 = vmatprep.subr.mxu0 %v594
        %809 = vmatpush2.msra.mxu0 %v593
        %810 = vmatprep.subr.mxu0 %v590
        %811 = vmatpush2.msra.mxu0 %v589
        %812 = vmatprep.subr.mxu0 %v586
        %813 = vmatpush2.msra.mxu0 %v585
        %814 = vmatprep.subr.mxu0 %v582
        %815 = vmatpush2.msra.mxu0 %v581
        %816 = vmatprep.subr.mxu0 %v578
        %817 = vmatpush2.msra.mxu0 %v577
        %818 = vmatprep.mubr.f32.mxu0 %v356
        %819 = vmatmul.mubr.f32.gmra.mxu0 %v355
        %v820 = vpop.f32.mrf.mxu0
        %v821 = vadd.f32 %v708, %v820
        %v822 = vpop.f32.mrf.mxu0
        %v823 = vadd.f32 %v710, %v822
        %824 = vmatprep.mubr.f32.mxu0 %v360
        %825 = vmatmul.mubr.f32.gmra.mxu0 %v359
        %v826 = vpop.f32.mrf.mxu0
        %v827 = vadd.f32 %v714, %v826
        %v828 = vpop.f32.mrf.mxu0
        %v829 = vadd.f32 %v716, %v828
        %830 = vmatprep.mubr.f32.mxu0 %v364
        %831 = vmatmul.mubr.f32.gmra.mxu0 %v363
        %v832 = vpop.f32.mrf.mxu0
        %v833 = vadd.f32 %v720, %v832
        %v834 = vpop.f32.mrf.mxu0
        %v835 = vadd.f32 %v722, %v834
        %836 = vmatprep.mubr.f32.mxu0 %v368
        %837 = vmatmul.mubr.f32.gmra.mxu0 %v367
        %v838 = vpop.f32.mrf.mxu0
        %v839 = vadd.f32 %v726, %v838
        %v840 = vpop.f32.mrf.mxu0
        %v841 = vadd.f32 %v728, %v840
        %842 = vmatprep.mubr.f32.mxu0 %v372
        %843 = vmatmul.mubr.f32.gmra.mxu0 %v371
        %v844 = vpop.f32.mrf.mxu0
        %v845 = vadd.f32 %v732, %v844
        %v846 = vpop.f32.mrf.mxu0
        %v847 = vadd.f32 %v734, %v846
        %848 = vmatprep.mubr.f32.mxu0 %v376
        %849 = vmatmul.mubr.f32.gmra.mxu0 %v375
        %v850 = vpop.f32.mrf.mxu0
        %v851 = vadd.f32 %v738, %v850
        %v852 = vpop.f32.mrf.mxu0
        %v853 = vadd.f32 %v740, %v852
        %854 = vmatprep.mubr.f32.mxu0 %v380
        %855 = vmatmul.mubr.f32.gmra.mxu0 %v379
        %v856 = vpop.f32.mrf.mxu0
        %v857 = vadd.f32 %v744, %v856
        %v858 = vpop.f32.mrf.mxu0
        %v859 = vadd.f32 %v746, %v858
        %860 = vmatprep.mubr.f32.mxu0 %v384
        %861 = vmatmul.mubr.f32.gmra.mxu0 %v383
        %v862 = vpop.f32.mrf.mxu0
        %v863 = vadd.f32 %v750, %v862
        %v864 = vpop.f32.mrf.mxu0
        %v865 = vadd.f32 %v752, %v864
        %866 = vdwg.mxu0
        %867 = vmatprep.subr.mxu0 %v448
        %868 = vmatpush1.msra.mxu0 %v447
        %869 = vmatprep.subr.mxu0 %v444
        %870 = vmatpush1.msra.mxu0 %v443
        %871 = vmatprep.subr.mxu0 %v440
        %872 = vmatpush1.msra.mxu0 %v439
        %873 = vmatprep.subr.mxu0 %v436
        %874 = vmatpush1.msra.mxu0 %v435
        %875 = vmatprep.subr.mxu0 %v432
        %876 = vmatpush1.msra.mxu0 %v431
        %877 = vmatprep.subr.mxu0 %v428
        %878 = vmatpush1.msra.mxu0 %v427
        %879 = vmatprep.subr.mxu0 %v424
        %880 = vmatpush1.msra.mxu0 %v423
        %881 = vmatprep.subr.mxu0 %v420
        %882 = vmatpush1.msra.mxu0 %v419
        %883 = vmatprep.subr.mxu0 %v416
        %884 = vmatpush1.msra.mxu0 %v415
        %885 = vmatprep.subr.mxu0 %v412
        %886 = vmatpush1.msra.mxu0 %v411
        %887 = vmatprep.subr.mxu0 %v408
        %888 = vmatpush1.msra.mxu0 %v407
        %889 = vmatprep.subr.mxu0 %v404
        %890 = vmatpush1.msra.mxu0 %v403
        %891 = vmatprep.subr.mxu0 %v400
        %892 = vmatpush1.msra.mxu0 %v399
        %893 = vmatprep.subr.mxu0 %v396
        %894 = vmatpush1.msra.mxu0 %v395
        %895 = vmatprep.subr.mxu0 %v392
        %896 = vmatpush1.msra.mxu0 %v391
        %897 = vmatprep.subr.mxu0 %v388
        %898 = vmatpush1.msra.mxu0 %v387
        %899 = vmatprep.subr.mxu0 %v512
        %900 = vmatpush2.msra.mxu0 %v511
        %901 = vmatprep.subr.mxu0 %v508
        %902 = vmatpush2.msra.mxu0 %v507
        %903 = vmatprep.subr.mxu0 %v504
        %904 = vmatpush2.msra.mxu0 %v503
        %905 = vmatprep.subr.mxu0 %v500
        %906 = vmatpush2.msra.mxu0 %v499
        %907 = vmatprep.subr.mxu0 %v496
        %908 = vmatpush2.msra.mxu0 %v495
        %909 = vmatprep.subr.mxu0 %v492
        %910 = vmatpush2.msra.mxu0 %v491
        %911 = vmatprep.subr.mxu0 %v488
        %912 = vmatpush2.msra.mxu0 %v487
        %913 = vmatprep.subr.mxu0 %v484
        %914 = vmatpush2.msra.mxu0 %v483
        %915 = vmatprep.subr.mxu0 %v480
        %916 = vmatpush2.msra.mxu0 %v479
        %917 = vmatprep.subr.mxu0 %v476
        %918 = vmatpush2.msra.mxu0 %v475
        %919 = vmatprep.subr.mxu0 %v472
        %920 = vmatpush2.msra.mxu0 %v471
        %921 = vmatprep.subr.mxu0 %v468
        %922 = vmatpush2.msra.mxu0 %v467
        %923 = vmatprep.subr.mxu0 %v464
        %924 = vmatpush2.msra.mxu0 %v463
        %925 = vmatprep.subr.mxu0 %v460
        %926 = vmatpush2.msra.mxu0 %v459
        %927 = vmatprep.subr.mxu0 %v456
        %928 = vmatpush2.msra.mxu0 %v455
        %929 = vmatprep.subr.mxu0 %v452
        %930 = vmatpush2.msra.mxu0 %v451
        %931 = vmatprep.mubr.f32.mxu0 %v354
        %932 = vmatmul.mubr.f32.gmra.mxu0 %v353
        %v933 = vpop.f32.mrf.mxu0
        %v934 = vadd.f32 0.0, %v933
        %v935 = vpop.f32.mrf.mxu0
        %v936 = vadd.f32 0.0, %v935
        %937 = vmatprep.mubr.f32.mxu0 %v358
        %938 = vmatmul.mubr.f32.gmra.mxu0 %v357
        %v939 = vpop.f32.mrf.mxu0
        %v940 = vadd.f32 0.0, %v939
        %v941 = vpop.f32.mrf.mxu0
        %v942 = vadd.f32 0.0, %v941
        %943 = vmatprep.mubr.f32.mxu0 %v362
        %944 = vmatmul.mubr.f32.gmra.mxu0 %v361
        %v945 = vpop.f32.mrf.mxu0
        %v946 = vadd.f32 0.0, %v945
        %v947 = vpop.f32.mrf.mxu0
        %v948 = vadd.f32 0.0, %v947
        %949 = vmatprep.mubr.f32.mxu0 %v366
        %950 = vmatmul.mubr.f32.gmra.mxu0 %v365
        %v951 = vpop.f32.mrf.mxu0
        %v952 = vadd.f32 0.0, %v951
        %v953 = vpop.f32.mrf.mxu0
        %v954 = vadd.f32 0.0, %v953
        %955 = vmatprep.mubr.f32.mxu0 %v370
        %956 = vmatmul.mubr.f32.gmra.mxu0 %v369
        %v957 = vpop.f32.mrf.mxu0
        %v958 = vadd.f32 0.0, %v957
        %v959 = vpop.f32.mrf.mxu0
        %v960 = vadd.f32 0.0, %v959
        %961 = vmatprep.mubr.f32.mxu0 %v374
        %962 = vmatmul.mubr.f32.gmra.mxu0 %v373
        %v963 = vpop.f32.mrf.mxu0
        %v964 = vadd.f32 0.0, %v963
        %v965 = vpop.f32.mrf.mxu0
        %v966 = vadd.f32 0.0, %v965
        %967 = vmatprep.mubr.f32.mxu0 %v378
        %968 = vmatmul.mubr.f32.gmra.mxu0 %v377
        %v969 = vpop.f32.mrf.mxu0
        %v970 = vadd.f32 0.0, %v969
        %v971 = vpop.f32.mrf.mxu0
        %v972 = vadd.f32 0.0, %v971
        %973 = vmatprep.mubr.f32.mxu0 %v382
        %974 = vmatmul.mubr.f32.gmra.mxu0 %v381
        %v975 = vpop.f32.mrf.mxu0
        %v976 = vadd.f32 0.0, %v975
        %v977 = vpop.f32.mrf.mxu0
        %v978 = vadd.f32 0.0, %v977
        %979 = vdwg.mxu0
        %980 = vmatprep.subr.mxu0 %v576
        %981 = vmatpush1.msra.mxu0 %v575
        %982 = vmatprep.subr.mxu0 %v572
        %983 = vmatpush1.msra.mxu0 %v571
        %984 = vmatprep.subr.mxu0 %v568
        %985 = vmatpush1.msra.mxu0 %v567
        %986 = vmatprep.subr.mxu0 %v564
        %987 = vmatpush1.msra.mxu0 %v563
        %988 = vmatprep.subr.mxu0 %v560
        %989 = vmatpush1.msra.mxu0 %v559
        %990 = vmatprep.subr.mxu0 %v556
        %991 = vmatpush1.msra.mxu0 %v555
        %992 = vmatprep.subr.mxu0 %v552
        %993 = vmatpush1.msra.mxu0 %v551
        %994 = vmatprep.subr.mxu0 %v548
        %995 = vmatpush1.msra.mxu0 %v547
        %996 = vmatprep.subr.mxu0 %v544
        %997 = vmatpush1.msra.mxu0 %v543
        %998 = vmatprep.subr.mxu0 %v540
        %999 = vmatpush1.msra.mxu0 %v539
        %1000 = vmatprep.subr.mxu0 %v536
        %1001 = vmatpush1.msra.mxu0 %v535
        %1002 = vmatprep.subr.mxu0 %v532
        %1003 = vmatpush1.msra.mxu0 %v531
        %1004 = vmatprep.subr.mxu0 %v528
        %1005 = vmatpush1.msra.mxu0 %v527
        %1006 = vmatprep.subr.mxu0 %v524
        %1007 = vmatpush1.msra.mxu0 %v523
        %1008 = vmatprep.subr.mxu0 %v520
        %1009 = vmatpush1.msra.mxu0 %v519
        %1010 = vmatprep.subr.mxu0 %v516
        %1011 = vmatpush1.msra.mxu0 %v515
        %1012 = vmatprep.subr.mxu0 %v640
        %1013 = vmatpush2.msra.mxu0 %v639
        %1014 = vmatprep.subr.mxu0 %v636
        %1015 = vmatpush2.msra.mxu0 %v635
        %1016 = vmatprep.subr.mxu0 %v632
        %1017 = vmatpush2.msra.mxu0 %v631
        %1018 = vmatprep.subr.mxu0 %v628
        %1019 = vmatpush2.msra.mxu0 %v627
        %1020 = vmatprep.subr.mxu0 %v624
        %1021 = vmatpush2.msra.mxu0 %v623
        %1022 = vmatprep.subr.mxu0 %v620
        %1023 = vmatpush2.msra.mxu0 %v619
        %1024 = vmatprep.subr.mxu0 %v616
        %1025 = vmatpush2.msra.mxu0 %v615
        %1026 = vmatprep.subr.mxu0 %v612
        %1027 = vmatpush2.msra.mxu0 %v611
        %1028 = vmatprep.subr.mxu0 %v608
        %1029 = vmatpush2.msra.mxu0 %v607
        %1030 = vmatprep.subr.mxu0 %v604
        %1031 = vmatpush2.msra.mxu0 %v603
        %1032 = vmatprep.subr.mxu0 %v600
        %1033 = vmatpush2.msra.mxu0 %v599
        %1034 = vmatprep.subr.mxu0 %v596
        %1035 = vmatpush2.msra.mxu0 %v595
        %1036 = vmatprep.subr.mxu0 %v592
        %1037 = vmatpush2.msra.mxu0 %v591
        %1038 = vmatprep.subr.mxu0 %v588
        %1039 = vmatpush2.msra.mxu0 %v587
        %1040 = vmatprep.subr.mxu0 %v584
        %1041 = vmatpush2.msra.mxu0 %v583
        %1042 = vmatprep.subr.mxu0 %v580
        %1043 = vmatpush2.msra.mxu0 %v579
        %1044 = vmatprep.mubr.f32.mxu0 %v356
        %1045 = vmatmul.mubr.f32.gmra.mxu0 %v355
        %v1046 = vpop.f32.mrf.mxu0
        %v1047 = vadd.f32 %v934, %v1046
        %v1048 = vpop.f32.mrf.mxu0
        %v1049 = vadd.f32 %v936, %v1048
        %1050 = vmatprep.mubr.f32.mxu0 %v360
        %1051 = vmatmul.mubr.f32.gmra.mxu0 %v359
        %v1052 = vpop.f32.mrf.mxu0
        %v1053 = vadd.f32 %v940, %v1052
        %v1054 = vpop.f32.mrf.mxu0
        %v1055 = vadd.f32 %v942, %v1054
        %1056 = vmatprep.mubr.f32.mxu0 %v364
        %1057 = vmatmul.mubr.f32.gmra.mxu0 %v363
        %v1058 = vpop.f32.mrf.mxu0
        %v1059 = vadd.f32 %v946, %v1058
        %v1060 = vpop.f32.mrf.mxu0
        %v1061 = vadd.f32 %v948, %v1060
        %1062 = vmatprep.mubr.f32.mxu0 %v368
        %1063 = vmatmul.mubr.f32.gmra.mxu0 %v367
        %v1064 = vpop.f32.mrf.mxu0
        %v1065 = vadd.f32 %v952, %v1064
        %v1066 = vpop.f32.mrf.mxu0
        %v1067 = vadd.f32 %v954, %v1066
        %1068 = vmatprep.mubr.f32.mxu0 %v372
        %1069 = vmatmul.mubr.f32.gmra.mxu0 %v371
        %v1070 = vpop.f32.mrf.mxu0
        %v1071 = vadd.f32 %v958, %v1070
        %v1072 = vpop.f32.mrf.mxu0
        %v1073 = vadd.f32 %v960, %v1072
        %1074 = vmatprep.mubr.f32.mxu0 %v376
        %1075 = vmatmul.mubr.f32.gmra.mxu0 %v375
        %v1076 = vpop.f32.mrf.mxu0
        %v1077 = vadd.f32 %v964, %v1076
        %v1078 = vpop.f32.mrf.mxu0
        %v1079 = vadd.f32 %v966, %v1078
        %1080 = vmatprep.mubr.f32.mxu0 %v380
        %1081 = vmatmul.mubr.f32.gmra.mxu0 %v379
        %v1082 = vpop.f32.mrf.mxu0
        %v1083 = vadd.f32 %v970, %v1082
        %v1084 = vpop.f32.mrf.mxu0
        %v1085 = vadd.f32 %v972, %v1084
        %1086 = vmatprep.mubr.f32.mxu0 %v384
        %1087 = vmatmul.mubr.f32.gmra.mxu0 %v383
        %v1088 = vpop.f32.mrf.mxu0
        %v1089 = vadd.f32 %v976, %v1088
        %v1090 = vpop.f32.mrf.mxu0
        %v1091 = vadd.f32 %v978, %v1090
        %1092 = vdwg.mxu0
        %v1093 = vld [vmem:[%s307] sm:$0xff]
        %v1094 = vld [vmem:[%s307 + $0x8] sm:$0xff]
        %v1095 = vld [vmem:[%s307 + $0x10] sm:$0xff]
        %v1096 = vld [vmem:[%s307 + $0x18] sm:$0xff]
        %v1097 = vld [vmem:[%s307 + $0x20] sm:$0xff]
        %v1098 = vld [vmem:[%s307 + $0x28] sm:$0xff]
        %v1099 = vld [vmem:[%s307 + $0x30] sm:$0xff]
        %v1100 = vld [vmem:[%s307 + $0x38] sm:$0xff]
        %v1101 = vld [vmem:[%s307 + $0x40] sm:$0xff]
        %v1102 = vld [vmem:[%s307 + $0x48] sm:$0xff]
        %v1103 = vld [vmem:[%s307 + $0x50] sm:$0xff]
        %v1104 = vld [vmem:[%s307 + $0x58] sm:$0xff]
        %v1105 = vld [vmem:[%s307 + $0x60] sm:$0xff]
        %v1106 = vld [vmem:[%s307 + $0x68] sm:$0xff]
        %v1107 = vld [vmem:[%s307 + $0x70] sm:$0xff]
        %v1108 = vld [vmem:[%s307 + $0x78] sm:$0xff]
        %v1109 = vld [vmem:[%s307 + $0x80] sm:$0xff]
        %v1110 = vld [vmem:[%s307 + $0x88] sm:$0xff]
        %v1111 = vld [vmem:[%s307 + $0x90] sm:$0xff]
        %v1112 = vld [vmem:[%s307 + $0x98] sm:$0xff]
        %v1113 = vld [vmem:[%s307 + $0xa0] sm:$0xff]
        %v1114 = vld [vmem:[%s307 + $0xa8] sm:$0xff]
        %v1115 = vld [vmem:[%s307 + $0xb0] sm:$0xff]
        %v1116 = vld [vmem:[%s307 + $0xb8] sm:$0xff]
        %v1117 = vld [vmem:[%s307 + $0xc0] sm:$0xff]
        %v1118 = vld [vmem:[%s307 + $0xc8] sm:$0xff]
        %v1119 = vld [vmem:[%s307 + $0xd0] sm:$0xff]
        %v1120 = vld [vmem:[%s307 + $0xd8] sm:$0xff]
        %v1121 = vld [vmem:[%s307 + $0xe0] sm:$0xff]
        %v1122 = vld [vmem:[%s307 + $0xe8] sm:$0xff]
        %v1123 = vld [vmem:[%s307 + $0xf0] sm:$0xff]
        %v1124 = vld [vmem:[%s307 + $0xf8] sm:$0xff]
        %v1125 = vld [vmem:[#allocation8] sm:$0xff]
        %v1126 = vld [vmem:[#allocation8 + $0x8] sm:$0xff]
        %v1127 = vld [vmem:[#allocation8 + $0x10] sm:$0xff]
        %v1128 = vld [vmem:[#allocation8 + $0x18] sm:$0xff]
        %v1129 = vld [vmem:[#allocation8 + $0x20] sm:$0xff]
        %v1130 = vld [vmem:[#allocation8 + $0x28] sm:$0xff]
        %v1131 = vld [vmem:[#allocation8 + $0x30] sm:$0xff]
        %v1132 = vld [vmem:[#allocation8 + $0x38] sm:$0xff]
        %v1133 = vld [vmem:[#allocation8 + $0x40] sm:$0xff]
        %v1134 = vld [vmem:[#allocation8 + $0x48] sm:$0xff]
        %v1135 = vld [vmem:[#allocation8 + $0x50] sm:$0xff]
        %v1136 = vld [vmem:[#allocation8 + $0x58] sm:$0xff]
        %v1137 = vld [vmem:[#allocation8 + $0x60] sm:$0xff]
        %v1138 = vld [vmem:[#allocation8 + $0x68] sm:$0xff]
        %v1139 = vld [vmem:[#allocation8 + $0x70] sm:$0xff]
        %v1140 = vld [vmem:[#allocation8 + $0x78] sm:$0xff]
        %v1141 = vld [vmem:[#allocation8 + $0x80] sm:$0xff]
        %v1142 = vld [vmem:[#allocation8 + $0x88] sm:$0xff]
        %v1143 = vld [vmem:[#allocation8 + $0x90] sm:$0xff]
        %v1144 = vld [vmem:[#allocation8 + $0x98] sm:$0xff]
        %v1145 = vld [vmem:[#allocation8 + $0xa0] sm:$0xff]
        %v1146 = vld [vmem:[#allocation8 + $0xa8] sm:$0xff]
        %v1147 = vld [vmem:[#allocation8 + $0xb0] sm:$0xff]
        %v1148 = vld [vmem:[#allocation8 + $0xb8] sm:$0xff]
        %v1149 = vld [vmem:[#allocation8 + $0xc0] sm:$0xff]
        %v1150 = vld [vmem:[#allocation8 + $0xc8] sm:$0xff]
        %v1151 = vld [vmem:[#allocation8 + $0xd0] sm:$0xff]
        %v1152 = vld [vmem:[#allocation8 + $0xd8] sm:$0xff]
        %v1153 = vld [vmem:[#allocation8 + $0xe0] sm:$0xff]
        %v1154 = vld [vmem:[#allocation8 + $0xe8] sm:$0xff]
        %v1155 = vld [vmem:[#allocation8 + $0xf0] sm:$0xff]
        %v1156 = vld [vmem:[#allocation8 + $0xf8] sm:$0xff]
        %v1157 = vld [vmem:[#allocation8 + $0x100] sm:$0xff]
        %v1158 = vld [vmem:[#allocation8 + $0x108] sm:$0xff]
        %v1159 = vld [vmem:[#allocation8 + $0x110] sm:$0xff]
        %v1160 = vld [vmem:[#allocation8 + $0x118] sm:$0xff]
        %v1161 = vld [vmem:[#allocation8 + $0x120] sm:$0xff]
        %v1162 = vld [vmem:[#allocation8 + $0x128] sm:$0xff]
        %v1163 = vld [vmem:[#allocation8 + $0x130] sm:$0xff]
        %v1164 = vld [vmem:[#allocation8 + $0x138] sm:$0xff]
        %v1165 = vld [vmem:[#allocation8 + $0x140] sm:$0xff]
        %v1166 = vld [vmem:[#allocation8 + $0x148] sm:$0xff]
        %v1167 = vld [vmem:[#allocation8 + $0x150] sm:$0xff]
        %v1168 = vld [vmem:[#allocation8 + $0x158] sm:$0xff]
        %v1169 = vld [vmem:[#allocation8 + $0x160] sm:$0xff]
        %v1170 = vld [vmem:[#allocation8 + $0x168] sm:$0xff]
        %v1171 = vld [vmem:[#allocation8 + $0x170] sm:$0xff]
        %v1172 = vld [vmem:[#allocation8 + $0x178] sm:$0xff]
        %v1173 = vld [vmem:[#allocation8 + $0x180] sm:$0xff]
        %v1174 = vld [vmem:[#allocation8 + $0x188] sm:$0xff]
        %v1175 = vld [vmem:[#allocation8 + $0x190] sm:$0xff]
        %v1176 = vld [vmem:[#allocation8 + $0x198] sm:$0xff]
        %v1177 = vld [vmem:[#allocation8 + $0x1a0] sm:$0xff]
        %v1178 = vld [vmem:[#allocation8 + $0x1a8] sm:$0xff]
        %v1179 = vld [vmem:[#allocation8 + $0x1b0] sm:$0xff]
        %v1180 = vld [vmem:[#allocation8 + $0x1b8] sm:$0xff]
        %v1181 = vld [vmem:[#allocation8 + $0x1c0] sm:$0xff]
        %v1182 = vld [vmem:[#allocation8 + $0x1c8] sm:$0xff]
        %v1183 = vld [vmem:[#allocation8 + $0x1d0] sm:$0xff]
        %v1184 = vld [vmem:[#allocation8 + $0x1d8] sm:$0xff]
        %v1185 = vld [vmem:[#allocation8 + $0x1e0] sm:$0xff]
        %v1186 = vld [vmem:[#allocation8 + $0x1e8] sm:$0xff]
        %v1187 = vld [vmem:[#allocation8 + $0x1f0] sm:$0xff]
        %v1188 = vld [vmem:[#allocation8 + $0x1f8] sm:$0xff]
        %v1189 = vld [vmem:[#allocation8 + $0x200] sm:$0xff]
        %v1190 = vld [vmem:[#allocation8 + $0x208] sm:$0xff]
        %v1191 = vld [vmem:[#allocation8 + $0x210] sm:$0xff]
        %v1192 = vld [vmem:[#allocation8 + $0x218] sm:$0xff]
        %v1193 = vld [vmem:[#allocation8 + $0x220] sm:$0xff]
        %v1194 = vld [vmem:[#allocation8 + $0x228] sm:$0xff]
        %v1195 = vld [vmem:[#allocation8 + $0x230] sm:$0xff]
        %v1196 = vld [vmem:[#allocation8 + $0x238] sm:$0xff]
        %v1197 = vld [vmem:[#allocation8 + $0x240] sm:$0xff]
        %v1198 = vld [vmem:[#allocation8 + $0x248] sm:$0xff]
        %v1199 = vld [vmem:[#allocation8 + $0x250] sm:$0xff]
        %v1200 = vld [vmem:[#allocation8 + $0x258] sm:$0xff]
        %v1201 = vld [vmem:[#allocation8 + $0x260] sm:$0xff]
        %v1202 = vld [vmem:[#allocation8 + $0x268] sm:$0xff]
        %v1203 = vld [vmem:[#allocation8 + $0x270] sm:$0xff]
        %v1204 = vld [vmem:[#allocation8 + $0x278] sm:$0xff]
        %v1205 = vld [vmem:[#allocation8 + $0x280] sm:$0xff]
        %v1206 = vld [vmem:[#allocation8 + $0x288] sm:$0xff]
        %v1207 = vld [vmem:[#allocation8 + $0x290] sm:$0xff]
        %v1208 = vld [vmem:[#allocation8 + $0x298] sm:$0xff]
        %v1209 = vld [vmem:[#allocation8 + $0x2a0] sm:$0xff]
        %v1210 = vld [vmem:[#allocation8 + $0x2a8] sm:$0xff]
        %v1211 = vld [vmem:[#allocation8 + $0x2b0] sm:$0xff]
        %v1212 = vld [vmem:[#allocation8 + $0x2b8] sm:$0xff]
        %v1213 = vld [vmem:[#allocation8 + $0x2c0] sm:$0xff]
        %v1214 = vld [vmem:[#allocation8 + $0x2c8] sm:$0xff]
        %v1215 = vld [vmem:[#allocation8 + $0x2d0] sm:$0xff]
        %v1216 = vld [vmem:[#allocation8 + $0x2d8] sm:$0xff]
        %v1217 = vld [vmem:[#allocation8 + $0x2e0] sm:$0xff]
        %v1218 = vld [vmem:[#allocation8 + $0x2e8] sm:$0xff]
        %v1219 = vld [vmem:[#allocation8 + $0x2f0] sm:$0xff]
        %v1220 = vld [vmem:[#allocation8 + $0x2f8] sm:$0xff]
        %v1221 = vld [vmem:[#allocation8 + $0x300] sm:$0xff]
        %v1222 = vld [vmem:[#allocation8 + $0x308] sm:$0xff]
        %v1223 = vld [vmem:[#allocation8 + $0x310] sm:$0xff]
        %v1224 = vld [vmem:[#allocation8 + $0x318] sm:$0xff]
        %v1225 = vld [vmem:[#allocation8 + $0x320] sm:$0xff]
        %v1226 = vld [vmem:[#allocation8 + $0x328] sm:$0xff]
        %v1227 = vld [vmem:[#allocation8 + $0x330] sm:$0xff]
        %v1228 = vld [vmem:[#allocation8 + $0x338] sm:$0xff]
        %v1229 = vld [vmem:[#allocation8 + $0x340] sm:$0xff]
        %v1230 = vld [vmem:[#allocation8 + $0x348] sm:$0xff]
        %v1231 = vld [vmem:[#allocation8 + $0x350] sm:$0xff]
        %v1232 = vld [vmem:[#allocation8 + $0x358] sm:$0xff]
        %v1233 = vld [vmem:[#allocation8 + $0x360] sm:$0xff]
        %v1234 = vld [vmem:[#allocation8 + $0x368] sm:$0xff]
        %v1235 = vld [vmem:[#allocation8 + $0x370] sm:$0xff]
        %v1236 = vld [vmem:[#allocation8 + $0x378] sm:$0xff]
        %v1237 = vld [vmem:[#allocation8 + $0x380] sm:$0xff]
        %v1238 = vld [vmem:[#allocation8 + $0x388] sm:$0xff]
        %v1239 = vld [vmem:[#allocation8 + $0x390] sm:$0xff]
        %v1240 = vld [vmem:[#allocation8 + $0x398] sm:$0xff]
        %v1241 = vld [vmem:[#allocation8 + $0x3a0] sm:$0xff]
        %v1242 = vld [vmem:[#allocation8 + $0x3a8] sm:$0xff]
        %v1243 = vld [vmem:[#allocation8 + $0x3b0] sm:$0xff]
        %v1244 = vld [vmem:[#allocation8 + $0x3b8] sm:$0xff]
        %v1245 = vld [vmem:[#allocation8 + $0x3c0] sm:$0xff]
        %v1246 = vld [vmem:[#allocation8 + $0x3c8] sm:$0xff]
        %v1247 = vld [vmem:[#allocation8 + $0x3d0] sm:$0xff]
        %v1248 = vld [vmem:[#allocation8 + $0x3d8] sm:$0xff]
        %v1249 = vld [vmem:[#allocation8 + $0x3e0] sm:$0xff]
        %v1250 = vld [vmem:[#allocation8 + $0x3e8] sm:$0xff]
        %v1251 = vld [vmem:[#allocation8 + $0x3f0] sm:$0xff]
        %v1252 = vld [vmem:[#allocation8 + $0x3f8] sm:$0xff]
        %v1253 = vld [vmem:[#allocation8 + $0x400] sm:$0xff]
        %v1254 = vld [vmem:[#allocation8 + $0x408] sm:$0xff]
        %v1255 = vld [vmem:[#allocation8 + $0x410] sm:$0xff]
        %v1256 = vld [vmem:[#allocation8 + $0x418] sm:$0xff]
        %v1257 = vld [vmem:[#allocation8 + $0x420] sm:$0xff]
        %v1258 = vld [vmem:[#allocation8 + $0x428] sm:$0xff]
        %v1259 = vld [vmem:[#allocation8 + $0x430] sm:$0xff]
        %v1260 = vld [vmem:[#allocation8 + $0x438] sm:$0xff]
        %v1261 = vld [vmem:[#allocation8 + $0x440] sm:$0xff]
        %v1262 = vld [vmem:[#allocation8 + $0x448] sm:$0xff]
        %v1263 = vld [vmem:[#allocation8 + $0x450] sm:$0xff]
        %v1264 = vld [vmem:[#allocation8 + $0x458] sm:$0xff]
        %v1265 = vld [vmem:[#allocation8 + $0x460] sm:$0xff]
        %v1266 = vld [vmem:[#allocation8 + $0x468] sm:$0xff]
        %v1267 = vld [vmem:[#allocation8 + $0x470] sm:$0xff]
        %v1268 = vld [vmem:[#allocation8 + $0x478] sm:$0xff]
        %v1269 = vld [vmem:[#allocation8 + $0x480] sm:$0xff]
        %v1270 = vld [vmem:[#allocation8 + $0x488] sm:$0xff]
        %v1271 = vld [vmem:[#allocation8 + $0x490] sm:$0xff]
        %v1272 = vld [vmem:[#allocation8 + $0x498] sm:$0xff]
        %v1273 = vld [vmem:[#allocation8 + $0x4a0] sm:$0xff]
        %v1274 = vld [vmem:[#allocation8 + $0x4a8] sm:$0xff]
        %v1275 = vld [vmem:[#allocation8 + $0x4b0] sm:$0xff]
        %v1276 = vld [vmem:[#allocation8 + $0x4b8] sm:$0xff]
        %v1277 = vld [vmem:[#allocation8 + $0x4c0] sm:$0xff]
        %v1278 = vld [vmem:[#allocation8 + $0x4c8] sm:$0xff]
        %v1279 = vld [vmem:[#allocation8 + $0x4d0] sm:$0xff]
        %v1280 = vld [vmem:[#allocation8 + $0x4d8] sm:$0xff]
        %v1281 = vld [vmem:[#allocation8 + $0x4e0] sm:$0xff]
        %v1282 = vld [vmem:[#allocation8 + $0x4e8] sm:$0xff]
        %v1283 = vld [vmem:[#allocation8 + $0x4f0] sm:$0xff]
        %v1284 = vld [vmem:[#allocation8 + $0x4f8] sm:$0xff]
        %v1285 = vld [vmem:[#allocation8 + $0x500] sm:$0xff]
        %v1286 = vld [vmem:[#allocation8 + $0x508] sm:$0xff]
        %v1287 = vld [vmem:[#allocation8 + $0x510] sm:$0xff]
        %v1288 = vld [vmem:[#allocation8 + $0x518] sm:$0xff]
        %v1289 = vld [vmem:[#allocation8 + $0x520] sm:$0xff]
        %v1290 = vld [vmem:[#allocation8 + $0x528] sm:$0xff]
        %v1291 = vld [vmem:[#allocation8 + $0x530] sm:$0xff]
        %v1292 = vld [vmem:[#allocation8 + $0x538] sm:$0xff]
        %v1293 = vld [vmem:[#allocation8 + $0x540] sm:$0xff]
        %v1294 = vld [vmem:[#allocation8 + $0x548] sm:$0xff]
        %v1295 = vld [vmem:[#allocation8 + $0x550] sm:$0xff]
        %v1296 = vld [vmem:[#allocation8 + $0x558] sm:$0xff]
        %v1297 = vld [vmem:[#allocation8 + $0x560] sm:$0xff]
        %v1298 = vld [vmem:[#allocation8 + $0x568] sm:$0xff]
        %v1299 = vld [vmem:[#allocation8 + $0x570] sm:$0xff]
        %v1300 = vld [vmem:[#allocation8 + $0x578] sm:$0xff]
        %v1301 = vld [vmem:[#allocation8 + $0x580] sm:$0xff]
        %v1302 = vld [vmem:[#allocation8 + $0x588] sm:$0xff]
        %v1303 = vld [vmem:[#allocation8 + $0x590] sm:$0xff]
        %v1304 = vld [vmem:[#allocation8 + $0x598] sm:$0xff]
        %v1305 = vld [vmem:[#allocation8 + $0x5a0] sm:$0xff]
        %v1306 = vld [vmem:[#allocation8 + $0x5a8] sm:$0xff]
        %v1307 = vld [vmem:[#allocation8 + $0x5b0] sm:$0xff]
        %v1308 = vld [vmem:[#allocation8 + $0x5b8] sm:$0xff]
        %v1309 = vld [vmem:[#allocation8 + $0x5c0] sm:$0xff]
        %v1310 = vld [vmem:[#allocation8 + $0x5c8] sm:$0xff]
        %v1311 = vld [vmem:[#allocation8 + $0x5d0] sm:$0xff]
        %v1312 = vld [vmem:[#allocation8 + $0x5d8] sm:$0xff]
        %v1313 = vld [vmem:[#allocation8 + $0x5e0] sm:$0xff]
        %v1314 = vld [vmem:[#allocation8 + $0x5e8] sm:$0xff]
        %v1315 = vld [vmem:[#allocation8 + $0x5f0] sm:$0xff]
        %v1316 = vld [vmem:[#allocation8 + $0x5f8] sm:$0xff]
        %v1317 = vld [vmem:[#allocation8 + $0x600] sm:$0xff]
        %v1318 = vld [vmem:[#allocation8 + $0x608] sm:$0xff]
        %v1319 = vld [vmem:[#allocation8 + $0x610] sm:$0xff]
        %v1320 = vld [vmem:[#allocation8 + $0x618] sm:$0xff]
        %v1321 = vld [vmem:[#allocation8 + $0x620] sm:$0xff]
        %v1322 = vld [vmem:[#allocation8 + $0x628] sm:$0xff]
        %v1323 = vld [vmem:[#allocation8 + $0x630] sm:$0xff]
        %v1324 = vld [vmem:[#allocation8 + $0x638] sm:$0xff]
        %v1325 = vld [vmem:[#allocation8 + $0x640] sm:$0xff]
        %v1326 = vld [vmem:[#allocation8 + $0x648] sm:$0xff]
        %v1327 = vld [vmem:[#allocation8 + $0x650] sm:$0xff]
        %v1328 = vld [vmem:[#allocation8 + $0x658] sm:$0xff]
        %v1329 = vld [vmem:[#allocation8 + $0x660] sm:$0xff]
        %v1330 = vld [vmem:[#allocation8 + $0x668] sm:$0xff]
        %v1331 = vld [vmem:[#allocation8 + $0x670] sm:$0xff]
        %v1332 = vld [vmem:[#allocation8 + $0x678] sm:$0xff]
        %v1333 = vld [vmem:[#allocation8 + $0x680] sm:$0xff]
        %v1334 = vld [vmem:[#allocation8 + $0x688] sm:$0xff]
        %v1335 = vld [vmem:[#allocation8 + $0x690] sm:$0xff]
        %v1336 = vld [vmem:[#allocation8 + $0x698] sm:$0xff]
        %v1337 = vld [vmem:[#allocation8 + $0x6a0] sm:$0xff]
        %v1338 = vld [vmem:[#allocation8 + $0x6a8] sm:$0xff]
        %v1339 = vld [vmem:[#allocation8 + $0x6b0] sm:$0xff]
        %v1340 = vld [vmem:[#allocation8 + $0x6b8] sm:$0xff]
        %v1341 = vld [vmem:[#allocation8 + $0x6c0] sm:$0xff]
        %v1342 = vld [vmem:[#allocation8 + $0x6c8] sm:$0xff]
        %v1343 = vld [vmem:[#allocation8 + $0x6d0] sm:$0xff]
        %v1344 = vld [vmem:[#allocation8 + $0x6d8] sm:$0xff]
        %v1345 = vld [vmem:[#allocation8 + $0x6e0] sm:$0xff]
        %v1346 = vld [vmem:[#allocation8 + $0x6e8] sm:$0xff]
        %v1347 = vld [vmem:[#allocation8 + $0x6f0] sm:$0xff]
        %v1348 = vld [vmem:[#allocation8 + $0x6f8] sm:$0xff]
        %v1349 = vld [vmem:[#allocation8 + $0x700] sm:$0xff]
        %v1350 = vld [vmem:[#allocation8 + $0x708] sm:$0xff]
        %v1351 = vld [vmem:[#allocation8 + $0x710] sm:$0xff]
        %v1352 = vld [vmem:[#allocation8 + $0x718] sm:$0xff]
        %v1353 = vld [vmem:[#allocation8 + $0x720] sm:$0xff]
        %v1354 = vld [vmem:[#allocation8 + $0x728] sm:$0xff]
        %v1355 = vld [vmem:[#allocation8 + $0x730] sm:$0xff]
        %v1356 = vld [vmem:[#allocation8 + $0x738] sm:$0xff]
        %v1357 = vld [vmem:[#allocation8 + $0x740] sm:$0xff]
        %v1358 = vld [vmem:[#allocation8 + $0x748] sm:$0xff]
        %v1359 = vld [vmem:[#allocation8 + $0x750] sm:$0xff]
        %v1360 = vld [vmem:[#allocation8 + $0x758] sm:$0xff]
        %v1361 = vld [vmem:[#allocation8 + $0x760] sm:$0xff]
        %v1362 = vld [vmem:[#allocation8 + $0x768] sm:$0xff]
        %v1363 = vld [vmem:[#allocation8 + $0x770] sm:$0xff]
        %v1364 = vld [vmem:[#allocation8 + $0x778] sm:$0xff]
        %v1365 = vld [vmem:[#allocation8 + $0x780] sm:$0xff]
        %v1366 = vld [vmem:[#allocation8 + $0x788] sm:$0xff]
        %v1367 = vld [vmem:[#allocation8 + $0x790] sm:$0xff]
        %v1368 = vld [vmem:[#allocation8 + $0x798] sm:$0xff]
        %v1369 = vld [vmem:[#allocation8 + $0x7a0] sm:$0xff]
        %v1370 = vld [vmem:[#allocation8 + $0x7a8] sm:$0xff]
        %v1371 = vld [vmem:[#allocation8 + $0x7b0] sm:$0xff]
        %v1372 = vld [vmem:[#allocation8 + $0x7b8] sm:$0xff]
        %v1373 = vld [vmem:[#allocation8 + $0x7c0] sm:$0xff]
        %v1374 = vld [vmem:[#allocation8 + $0x7c8] sm:$0xff]
        %v1375 = vld [vmem:[#allocation8 + $0x7d0] sm:$0xff]
        %v1376 = vld [vmem:[#allocation8 + $0x7d8] sm:$0xff]
        %v1377 = vld [vmem:[#allocation8 + $0x7e0] sm:$0xff]
        %v1378 = vld [vmem:[#allocation8 + $0x7e8] sm:$0xff]
        %v1379 = vld [vmem:[#allocation8 + $0x7f0] sm:$0xff]
        %v1380 = vld [vmem:[#allocation8 + $0x7f8] sm:$0xff]
        %1381 = vmatprep.subr.mxu0 %v1186
        %1382 = vmatpush1.msra.mxu0 %v1185
        %1383 = vmatprep.subr.mxu0 %v1182
        %1384 = vmatpush1.msra.mxu0 %v1181
        %1385 = vmatprep.subr.mxu0 %v1178
        %1386 = vmatpush1.msra.mxu0 %v1177
        %1387 = vmatprep.subr.mxu0 %v1174
        %1388 = vmatpush1.msra.mxu0 %v1173
        %1389 = vmatprep.subr.mxu0 %v1170
        %1390 = vmatpush1.msra.mxu0 %v1169
        %1391 = vmatprep.subr.mxu0 %v1166
        %1392 = vmatpush1.msra.mxu0 %v1165
        %1393 = vmatprep.subr.mxu0 %v1162
        %1394 = vmatpush1.msra.mxu0 %v1161
        %1395 = vmatprep.subr.mxu0 %v1158
        %1396 = vmatpush1.msra.mxu0 %v1157
        %1397 = vmatprep.subr.mxu0 %v1154
        %1398 = vmatpush1.msra.mxu0 %v1153
        %1399 = vmatprep.subr.mxu0 %v1150
        %1400 = vmatpush1.msra.mxu0 %v1149
        %1401 = vmatprep.subr.mxu0 %v1146
        %1402 = vmatpush1.msra.mxu0 %v1145
        %1403 = vmatprep.subr.mxu0 %v1142
        %1404 = vmatpush1.msra.mxu0 %v1141
        %1405 = vmatprep.subr.mxu0 %v1138
        %1406 = vmatpush1.msra.mxu0 %v1137
        %1407 = vmatprep.subr.mxu0 %v1134
        %1408 = vmatpush1.msra.mxu0 %v1133
        %1409 = vmatprep.subr.mxu0 %v1130
        %1410 = vmatpush1.msra.mxu0 %v1129
        %1411 = vmatprep.subr.mxu0 %v1126
        %1412 = vmatpush1.msra.mxu0 %v1125
        %1413 = vmatprep.subr.mxu0 %v1250
        %1414 = vmatpush2.msra.mxu0 %v1249
        %1415 = vmatprep.subr.mxu0 %v1246
        %1416 = vmatpush2.msra.mxu0 %v1245
        %1417 = vmatprep.subr.mxu0 %v1242
        %1418 = vmatpush2.msra.mxu0 %v1241
        %1419 = vmatprep.subr.mxu0 %v1238
        %1420 = vmatpush2.msra.mxu0 %v1237
        %1421 = vmatprep.subr.mxu0 %v1234
        %1422 = vmatpush2.msra.mxu0 %v1233
        %1423 = vmatprep.subr.mxu0 %v1230
        %1424 = vmatpush2.msra.mxu0 %v1229
        %1425 = vmatprep.subr.mxu0 %v1226
        %1426 = vmatpush2.msra.mxu0 %v1225
        %1427 = vmatprep.subr.mxu0 %v1222
        %1428 = vmatpush2.msra.mxu0 %v1221
        %1429 = vmatprep.subr.mxu0 %v1218
        %1430 = vmatpush2.msra.mxu0 %v1217
        %1431 = vmatprep.subr.mxu0 %v1214
        %1432 = vmatpush2.msra.mxu0 %v1213
        %1433 = vmatprep.subr.mxu0 %v1210
        %1434 = vmatpush2.msra.mxu0 %v1209
        %1435 = vmatprep.subr.mxu0 %v1206
        %1436 = vmatpush2.msra.mxu0 %v1205
        %1437 = vmatprep.subr.mxu0 %v1202
        %1438 = vmatpush2.msra.mxu0 %v1201
        %1439 = vmatprep.subr.mxu0 %v1198
        %1440 = vmatpush2.msra.mxu0 %v1197
        %1441 = vmatprep.subr.mxu0 %v1194
        %1442 = vmatpush2.msra.mxu0 %v1193
        %1443 = vmatprep.subr.mxu0 %v1190
        %1444 = vmatpush2.msra.mxu0 %v1189
        %1445 = vmatprep.mubr.f32.mxu0 %v1094
        %1446 = vmatmul.mubr.f32.gmra.mxu0 %v1093
        %v1447 = vpop.f32.mrf.mxu0
        %v1448 = vadd.f32 0.0, %v1447
        %v1449 = vpop.f32.mrf.mxu0
        %v1450 = vadd.f32 0.0, %v1449
        %1451 = vmatprep.mubr.f32.mxu0 %v1098
        %1452 = vmatmul.mubr.f32.gmra.mxu0 %v1097
        %v1453 = vpop.f32.mrf.mxu0
        %v1454 = vadd.f32 0.0, %v1453
        %v1455 = vpop.f32.mrf.mxu0
        %v1456 = vadd.f32 0.0, %v1455
        %1457 = vmatprep.mubr.f32.mxu0 %v1102
        %1458 = vmatmul.mubr.f32.gmra.mxu0 %v1101
        %v1459 = vpop.f32.mrf.mxu0
        %v1460 = vadd.f32 0.0, %v1459
        %v1461 = vpop.f32.mrf.mxu0
        %v1462 = vadd.f32 0.0, %v1461
        %1463 = vmatprep.mubr.f32.mxu0 %v1106
        %1464 = vmatmul.mubr.f32.gmra.mxu0 %v1105
        %v1465 = vpop.f32.mrf.mxu0
        %v1466 = vadd.f32 0.0, %v1465
        %v1467 = vpop.f32.mrf.mxu0
        %v1468 = vadd.f32 0.0, %v1467
        %1469 = vmatprep.mubr.f32.mxu0 %v1110
        %1470 = vmatmul.mubr.f32.gmra.mxu0 %v1109
        %v1471 = vpop.f32.mrf.mxu0
        %v1472 = vadd.f32 0.0, %v1471
        %v1473 = vpop.f32.mrf.mxu0
        %v1474 = vadd.f32 0.0, %v1473
        %1475 = vmatprep.mubr.f32.mxu0 %v1114
        %1476 = vmatmul.mubr.f32.gmra.mxu0 %v1113
        %v1477 = vpop.f32.mrf.mxu0
        %v1478 = vadd.f32 0.0, %v1477
        %v1479 = vpop.f32.mrf.mxu0
        %v1480 = vadd.f32 0.0, %v1479
        %1481 = vmatprep.mubr.f32.mxu0 %v1118
        %1482 = vmatmul.mubr.f32.gmra.mxu0 %v1117
        %v1483 = vpop.f32.mrf.mxu0
        %v1484 = vadd.f32 0.0, %v1483
        %v1485 = vpop.f32.mrf.mxu0
        %v1486 = vadd.f32 0.0, %v1485
        %1487 = vmatprep.mubr.f32.mxu0 %v1122
        %1488 = vmatmul.mubr.f32.gmra.mxu0 %v1121
        %v1489 = vpop.f32.mrf.mxu0
        %v1490 = vadd.f32 0.0, %v1489
        %v1491 = vpop.f32.mrf.mxu0
        %v1492 = vadd.f32 0.0, %v1491
        %1493 = vdwg.mxu0
        %1494 = vmatprep.subr.mxu0 %v1314
        %1495 = vmatpush1.msra.mxu0 %v1313
        %1496 = vmatprep.subr.mxu0 %v1310
        %1497 = vmatpush1.msra.mxu0 %v1309
        %1498 = vmatprep.subr.mxu0 %v1306
        %1499 = vmatpush1.msra.mxu0 %v1305
        %1500 = vmatprep.subr.mxu0 %v1302
        %1501 = vmatpush1.msra.mxu0 %v1301
        %1502 = vmatprep.subr.mxu0 %v1298
        %1503 = vmatpush1.msra.mxu0 %v1297
        %1504 = vmatprep.subr.mxu0 %v1294
        %1505 = vmatpush1.msra.mxu0 %v1293
        %1506 = vmatprep.subr.mxu0 %v1290
        %1507 = vmatpush1.msra.mxu0 %v1289
        %1508 = vmatprep.subr.mxu0 %v1286
        %1509 = vmatpush1.msra.mxu0 %v1285
        %1510 = vmatprep.subr.mxu0 %v1282
        %1511 = vmatpush1.msra.mxu0 %v1281
        %1512 = vmatprep.subr.mxu0 %v1278
        %1513 = vmatpush1.msra.mxu0 %v1277
        %1514 = vmatprep.subr.mxu0 %v1274
        %1515 = vmatpush1.msra.mxu0 %v1273
        %1516 = vmatprep.subr.mxu0 %v1270
        %1517 = vmatpush1.msra.mxu0 %v1269
        %1518 = vmatprep.subr.mxu0 %v1266
        %1519 = vmatpush1.msra.mxu0 %v1265
        %1520 = vmatprep.subr.mxu0 %v1262
        %1521 = vmatpush1.msra.mxu0 %v1261
        %1522 = vmatprep.subr.mxu0 %v1258
        %1523 = vmatpush1.msra.mxu0 %v1257
        %1524 = vmatprep.subr.mxu0 %v1254
        %1525 = vmatpush1.msra.mxu0 %v1253
        %1526 = vmatprep.subr.mxu0 %v1378
        %1527 = vmatpush2.msra.mxu0 %v1377
        %1528 = vmatprep.subr.mxu0 %v1374
        %1529 = vmatpush2.msra.mxu0 %v1373
        %1530 = vmatprep.subr.mxu0 %v1370
        %1531 = vmatpush2.msra.mxu0 %v1369
        %1532 = vmatprep.subr.mxu0 %v1366
        %1533 = vmatpush2.msra.mxu0 %v1365
        %1534 = vmatprep.subr.mxu0 %v1362
        %1535 = vmatpush2.msra.mxu0 %v1361
        %1536 = vmatprep.subr.mxu0 %v1358
        %1537 = vmatpush2.msra.mxu0 %v1357
        %1538 = vmatprep.subr.mxu0 %v1354
        %1539 = vmatpush2.msra.mxu0 %v1353
        %1540 = vmatprep.subr.mxu0 %v1350
        %1541 = vmatpush2.msra.mxu0 %v1349
        %1542 = vmatprep.subr.mxu0 %v1346
        %1543 = vmatpush2.msra.mxu0 %v1345
        %1544 = vmatprep.subr.mxu0 %v1342
        %1545 = vmatpush2.msra.mxu0 %v1341
        %1546 = vmatprep.subr.mxu0 %v1338
        %1547 = vmatpush2.msra.mxu0 %v1337
        %1548 = vmatprep.subr.mxu0 %v1334
        %1549 = vmatpush2.msra.mxu0 %v1333
        %1550 = vmatprep.subr.mxu0 %v1330
        %1551 = vmatpush2.msra.mxu0 %v1329
        %1552 = vmatprep.subr.mxu0 %v1326
        %1553 = vmatpush2.msra.mxu0 %v1325
        %1554 = vmatprep.subr.mxu0 %v1322
        %1555 = vmatpush2.msra.mxu0 %v1321
        %1556 = vmatprep.subr.mxu0 %v1318
        %1557 = vmatpush2.msra.mxu0 %v1317
        %1558 = vmatprep.mubr.f32.mxu0 %v1096
        %1559 = vmatmul.mubr.f32.gmra.mxu0 %v1095
        %v1560 = vpop.f32.mrf.mxu0
        %v1561 = vadd.f32 %v1448, %v1560
        %v1562 = vpop.f32.mrf.mxu0
        %v1563 = vadd.f32 %v1450, %v1562
        %1564 = vmatprep.mubr.f32.mxu0 %v1100
        %1565 = vmatmul.mubr.f32.gmra.mxu0 %v1099
        %v1566 = vpop.f32.mrf.mxu0
        %v1567 = vadd.f32 %v1454, %v1566
        %v1568 = vpop.f32.mrf.mxu0
        %v1569 = vadd.f32 %v1456, %v1568
        %1570 = vmatprep.mubr.f32.mxu0 %v1104
        %1571 = vmatmul.mubr.f32.gmra.mxu0 %v1103
        %v1572 = vpop.f32.mrf.mxu0
        %v1573 = vadd.f32 %v1460, %v1572
        %v1574 = vpop.f32.mrf.mxu0
        %v1575 = vadd.f32 %v1462, %v1574
        %1576 = vmatprep.mubr.f32.mxu0 %v1108
        %1577 = vmatmul.mubr.f32.gmra.mxu0 %v1107
        %v1578 = vpop.f32.mrf.mxu0
        %v1579 = vadd.f32 %v1466, %v1578
        %v1580 = vpop.f32.mrf.mxu0
        %v1581 = vadd.f32 %v1468, %v1580
        %1582 = vmatprep.mubr.f32.mxu0 %v1112
        %1583 = vmatmul.mubr.f32.gmra.mxu0 %v1111
        %v1584 = vpop.f32.mrf.mxu0
        %v1585 = vadd.f32 %v1472, %v1584
        %v1586 = vpop.f32.mrf.mxu0
        %v1587 = vadd.f32 %v1474, %v1586
        %1588 = vmatprep.mubr.f32.mxu0 %v1116
        %1589 = vmatmul.mubr.f32.gmra.mxu0 %v1115
        %v1590 = vpop.f32.mrf.mxu0
        %v1591 = vadd.f32 %v1478, %v1590
        %v1592 = vpop.f32.mrf.mxu0
        %v1593 = vadd.f32 %v1480, %v1592
        %1594 = vmatprep.mubr.f32.mxu0 %v1120
        %1595 = vmatmul.mubr.f32.gmra.mxu0 %v1119
        %v1596 = vpop.f32.mrf.mxu0
        %v1597 = vadd.f32 %v1484, %v1596
        %v1598 = vpop.f32.mrf.mxu0
        %v1599 = vadd.f32 %v1486, %v1598
        %1600 = vmatprep.mubr.f32.mxu0 %v1124
        %1601 = vmatmul.mubr.f32.gmra.mxu0 %v1123
        %v1602 = vpop.f32.mrf.mxu0
        %v1603 = vadd.f32 %v1490, %v1602
        %v1604 = vpop.f32.mrf.mxu0
        %v1605 = vadd.f32 %v1492, %v1604
        %1606 = vdwg.mxu0
        %1607 = vmatprep.subr.mxu0 %v1188
        %1608 = vmatpush1.msra.mxu0 %v1187
        %1609 = vmatprep.subr.mxu0 %v1184
        %1610 = vmatpush1.msra.mxu0 %v1183
        %1611 = vmatprep.subr.mxu0 %v1180
        %1612 = vmatpush1.msra.mxu0 %v1179
        %1613 = vmatprep.subr.mxu0 %v1176
        %1614 = vmatpush1.msra.mxu0 %v1175
        %1615 = vmatprep.subr.mxu0 %v1172
        %1616 = vmatpush1.msra.mxu0 %v1171
        %1617 = vmatprep.subr.mxu0 %v1168
        %1618 = vmatpush1.msra.mxu0 %v1167
        %1619 = vmatprep.subr.mxu0 %v1164
        %1620 = vmatpush1.msra.mxu0 %v1163
        %1621 = vmatprep.subr.mxu0 %v1160
        %1622 = vmatpush1.msra.mxu0 %v1159
        %1623 = vmatprep.subr.mxu0 %v1156
        %1624 = vmatpush1.msra.mxu0 %v1155
        %1625 = vmatprep.subr.mxu0 %v1152
        %1626 = vmatpush1.msra.mxu0 %v1151
        %1627 = vmatprep.subr.mxu0 %v1148
        %1628 = vmatpush1.msra.mxu0 %v1147
        %1629 = vmatprep.subr.mxu0 %v1144
        %1630 = vmatpush1.msra.mxu0 %v1143
        %1631 = vmatprep.subr.mxu0 %v1140
        %1632 = vmatpush1.msra.mxu0 %v1139
        %1633 = vmatprep.subr.mxu0 %v1136
        %1634 = vmatpush1.msra.mxu0 %v1135
        %1635 = vmatprep.subr.mxu0 %v1132
        %1636 = vmatpush1.msra.mxu0 %v1131
        %1637 = vmatprep.subr.mxu0 %v1128
        %1638 = vmatpush1.msra.mxu0 %v1127
        %1639 = vmatprep.subr.mxu0 %v1252
        %1640 = vmatpush2.msra.mxu0 %v1251
        %1641 = vmatprep.subr.mxu0 %v1248
        %1642 = vmatpush2.msra.mxu0 %v1247
        %1643 = vmatprep.subr.mxu0 %v1244
        %1644 = vmatpush2.msra.mxu0 %v1243
        %1645 = vmatprep.subr.mxu0 %v1240
        %1646 = vmatpush2.msra.mxu0 %v1239
        %1647 = vmatprep.subr.mxu0 %v1236
        %1648 = vmatpush2.msra.mxu0 %v1235
        %1649 = vmatprep.subr.mxu0 %v1232
        %1650 = vmatpush2.msra.mxu0 %v1231
        %1651 = vmatprep.subr.mxu0 %v1228
        %1652 = vmatpush2.msra.mxu0 %v1227
        %1653 = vmatprep.subr.mxu0 %v1224
        %1654 = vmatpush2.msra.mxu0 %v1223
        %1655 = vmatprep.subr.mxu0 %v1220
        %1656 = vmatpush2.msra.mxu0 %v1219
        %1657 = vmatprep.subr.mxu0 %v1216
        %1658 = vmatpush2.msra.mxu0 %v1215
        %1659 = vmatprep.subr.mxu0 %v1212
        %1660 = vmatpush2.msra.mxu0 %v1211
        %1661 = vmatprep.subr.mxu0 %v1208
        %1662 = vmatpush2.msra.mxu0 %v1207
        %1663 = vmatprep.subr.mxu0 %v1204
        %1664 = vmatpush2.msra.mxu0 %v1203
        %1665 = vmatprep.subr.mxu0 %v1200
        %1666 = vmatpush2.msra.mxu0 %v1199
        %1667 = vmatprep.subr.mxu0 %v1196
        %1668 = vmatpush2.msra.mxu0 %v1195
        %1669 = vmatprep.subr.mxu0 %v1192
        %1670 = vmatpush2.msra.mxu0 %v1191
        %1671 = vmatprep.mubr.f32.mxu0 %v1094
        %1672 = vmatmul.mubr.f32.gmra.mxu0 %v1093
        %v1673 = vpop.f32.mrf.mxu0
        %v1674 = vadd.f32 0.0, %v1673
        %v1675 = vpop.f32.mrf.mxu0
        %v1676 = vadd.f32 0.0, %v1675
        %1677 = vmatprep.mubr.f32.mxu0 %v1098
        %1678 = vmatmul.mubr.f32.gmra.mxu0 %v1097
        %v1679 = vpop.f32.mrf.mxu0
        %v1680 = vadd.f32 0.0, %v1679
        %v1681 = vpop.f32.mrf.mxu0
        %v1682 = vadd.f32 0.0, %v1681
        %1683 = vmatprep.mubr.f32.mxu0 %v1102
        %1684 = vmatmul.mubr.f32.gmra.mxu0 %v1101
        %v1685 = vpop.f32.mrf.mxu0
        %v1686 = vadd.f32 0.0, %v1685
        %v1687 = vpop.f32.mrf.mxu0
        %v1688 = vadd.f32 0.0, %v1687
        %1689 = vmatprep.mubr.f32.mxu0 %v1106
        %1690 = vmatmul.mubr.f32.gmra.mxu0 %v1105
        %v1691 = vpop.f32.mrf.mxu0
        %v1692 = vadd.f32 0.0, %v1691
        %v1693 = vpop.f32.mrf.mxu0
        %v1694 = vadd.f32 0.0, %v1693
        %1695 = vmatprep.mubr.f32.mxu0 %v1110
        %1696 = vmatmul.mubr.f32.gmra.mxu0 %v1109
        %v1697 = vpop.f32.mrf.mxu0
        %v1698 = vadd.f32 0.0, %v1697
        %v1699 = vpop.f32.mrf.mxu0
        %v1700 = vadd.f32 0.0, %v1699
        %1701 = vmatprep.mubr.f32.mxu0 %v1114
        %1702 = vmatmul.mubr.f32.gmra.mxu0 %v1113
        %v1703 = vpop.f32.mrf.mxu0
        %v1704 = vadd.f32 0.0, %v1703
        %v1705 = vpop.f32.mrf.mxu0
        %v1706 = vadd.f32 0.0, %v1705
        %1707 = vmatprep.mubr.f32.mxu0 %v1118
        %1708 = vmatmul.mubr.f32.gmra.mxu0 %v1117
        %v1709 = vpop.f32.mrf.mxu0
        %v1710 = vadd.f32 0.0, %v1709
        %v1711 = vpop.f32.mrf.mxu0
        %v1712 = vadd.f32 0.0, %v1711
        %1713 = vmatprep.mubr.f32.mxu0 %v1122
        %1714 = vmatmul.mubr.f32.gmra.mxu0 %v1121
        %v1715 = vpop.f32.mrf.mxu0
        %v1716 = vadd.f32 0.0, %v1715
        %v1717 = vpop.f32.mrf.mxu0
        %v1718 = vadd.f32 0.0, %v1717
        %1719 = vdwg.mxu0
        %1720 = vmatprep.subr.mxu0 %v1316
        %1721 = vmatpush1.msra.mxu0 %v1315
        %1722 = vmatprep.subr.mxu0 %v1312
        %1723 = vmatpush1.msra.mxu0 %v1311
        %1724 = vmatprep.subr.mxu0 %v1308
        %1725 = vmatpush1.msra.mxu0 %v1307
        %1726 = vmatprep.subr.mxu0 %v1304
        %1727 = vmatpush1.msra.mxu0 %v1303
        %1728 = vmatprep.subr.mxu0 %v1300
        %1729 = vmatpush1.msra.mxu0 %v1299
        %1730 = vmatprep.subr.mxu0 %v1296
        %1731 = vmatpush1.msra.mxu0 %v1295
        %1732 = vmatprep.subr.mxu0 %v1292
        %1733 = vmatpush1.msra.mxu0 %v1291
        %1734 = vmatprep.subr.mxu0 %v1288
        %1735 = vmatpush1.msra.mxu0 %v1287
        %1736 = vmatprep.subr.mxu0 %v1284
        %1737 = vmatpush1.msra.mxu0 %v1283
        %1738 = vmatprep.subr.mxu0 %v1280
        %1739 = vmatpush1.msra.mxu0 %v1279
        %1740 = vmatprep.subr.mxu0 %v1276
        %1741 = vmatpush1.msra.mxu0 %v1275
        %1742 = vmatprep.subr.mxu0 %v1272
        %1743 = vmatpush1.msra.mxu0 %v1271
        %1744 = vmatprep.subr.mxu0 %v1268
        %1745 = vmatpush1.msra.mxu0 %v1267
        %1746 = vmatprep.subr.mxu0 %v1264
        %1747 = vmatpush1.msra.mxu0 %v1263
        %1748 = vmatprep.subr.mxu0 %v1260
        %1749 = vmatpush1.msra.mxu0 %v1259
        %1750 = vmatprep.subr.mxu0 %v1256
        %1751 = vmatpush1.msra.mxu0 %v1255
        %1752 = vmatprep.subr.mxu0 %v1380
        %1753 = vmatpush2.msra.mxu0 %v1379
        %1754 = vmatprep.subr.mxu0 %v1376
        %1755 = vmatpush2.msra.mxu0 %v1375
        %1756 = vmatprep.subr.mxu0 %v1372
        %1757 = vmatpush2.msra.mxu0 %v1371
        %1758 = vmatprep.subr.mxu0 %v1368
        %1759 = vmatpush2.msra.mxu0 %v1367
        %1760 = vmatprep.subr.mxu0 %v1364
        %1761 = vmatpush2.msra.mxu0 %v1363
        %1762 = vmatprep.subr.mxu0 %v1360
        %1763 = vmatpush2.msra.mxu0 %v1359
        %1764 = vmatprep.subr.mxu0 %v1356
        %1765 = vmatpush2.msra.mxu0 %v1355
        %1766 = vmatprep.subr.mxu0 %v1352
        %1767 = vmatpush2.msra.mxu0 %v1351
        %1768 = vmatprep.subr.mxu0 %v1348
        %1769 = vmatpush2.msra.mxu0 %v1347
        %1770 = vmatprep.subr.mxu0 %v1344
        %1771 = vmatpush2.msra.mxu0 %v1343
        %1772 = vmatprep.subr.mxu0 %v1340
        %1773 = vmatpush2.msra.mxu0 %v1339
        %1774 = vmatprep.subr.mxu0 %v1336
        %1775 = vmatpush2.msra.mxu0 %v1335
        %1776 = vmatprep.subr.mxu0 %v1332
        %1777 = vmatpush2.msra.mxu0 %v1331
        %1778 = vmatprep.subr.mxu0 %v1328
        %1779 = vmatpush2.msra.mxu0 %v1327
        %1780 = vmatprep.subr.mxu0 %v1324
        %1781 = vmatpush2.msra.mxu0 %v1323
        %1782 = vmatprep.subr.mxu0 %v1320
        %1783 = vmatpush2.msra.mxu0 %v1319
        %1784 = vmatprep.mubr.f32.mxu0 %v1096
        %1785 = vmatmul.mubr.f32.gmra.mxu0 %v1095
        %v1786 = vpop.f32.mrf.mxu0
        %v1787 = vadd.f32 %v1674, %v1786
        %v1788 = vpop.f32.mrf.mxu0
        %v1789 = vadd.f32 %v1676, %v1788
        %1790 = vmatprep.mubr.f32.mxu0 %v1100
        %1791 = vmatmul.mubr.f32.gmra.mxu0 %v1099
        %v1792 = vpop.f32.mrf.mxu0
        %v1793 = vadd.f32 %v1680, %v1792
        %v1794 = vpop.f32.mrf.mxu0
        %v1795 = vadd.f32 %v1682, %v1794
        %1796 = vmatprep.mubr.f32.mxu0 %v1104
        %1797 = vmatmul.mubr.f32.gmra.mxu0 %v1103
        %v1798 = vpop.f32.mrf.mxu0
        %v1799 = vadd.f32 %v1686, %v1798
        %v1800 = vpop.f32.mrf.mxu0
        %v1801 = vadd.f32 %v1688, %v1800
        %1802 = vmatprep.mubr.f32.mxu0 %v1108
        %1803 = vmatmul.mubr.f32.gmra.mxu0 %v1107
        %v1804 = vpop.f32.mrf.mxu0
        %v1805 = vadd.f32 %v1692, %v1804
        %v1806 = vpop.f32.mrf.mxu0
        %v1807 = vadd.f32 %v1694, %v1806
        %1808 = vmatprep.mubr.f32.mxu0 %v1112
        %1809 = vmatmul.mubr.f32.gmra.mxu0 %v1111
        %v1810 = vpop.f32.mrf.mxu0
        %v1811 = vadd.f32 %v1698, %v1810
        %v1812 = vpop.f32.mrf.mxu0
        %v1813 = vadd.f32 %v1700, %v1812
        %1814 = vmatprep.mubr.f32.mxu0 %v1116
        %1815 = vmatmul.mubr.f32.gmra.mxu0 %v1115
        %v1816 = vpop.f32.mrf.mxu0
        %v1817 = vadd.f32 %v1704, %v1816
        %v1818 = vpop.f32.mrf.mxu0
        %v1819 = vadd.f32 %v1706, %v1818
        %1820 = vmatprep.mubr.f32.mxu0 %v1120
        %1821 = vmatmul.mubr.f32.gmra.mxu0 %v1119
        %v1822 = vpop.f32.mrf.mxu0
        %v1823 = vadd.f32 %v1710, %v1822
        %v1824 = vpop.f32.mrf.mxu0
        %v1825 = vadd.f32 %v1712, %v1824
        %1826 = vmatprep.mubr.f32.mxu0 %v1124
        %1827 = vmatmul.mubr.f32.gmra.mxu0 %v1123
        %v1828 = vpop.f32.mrf.mxu0
        %v1829 = vadd.f32 %v1716, %v1828
        %v1830 = vpop.f32.mrf.mxu0
        %v1831 = vadd.f32 %v1718, %v1830
        %1832 = vdwg.mxu0
        %1841 = vrot.lane.b32.xlu0 %v821, 64
        %v1842 = vpop.permute.xlu0 %1841
        %1843 = vrot.lane.b32.xlu0 %v827, 64
        %v1844 = vpop.permute.xlu0 %1843
        %1845 = vrot.lane.b32.xlu0 %v833, 64
        %v1846 = vpop.permute.xlu0 %1845
        %1847 = vrot.lane.b32.xlu0 %v839, 64
        %v1848 = vpop.permute.xlu0 %1847
        %1849 = vrot.lane.b32.xlu0 %v845, 64
        %v1850 = vpop.permute.xlu0 %1849
        %1851 = vrot.lane.b32.xlu0 %v851, 64
        %v1852 = vpop.permute.xlu0 %1851
        %1853 = vrot.lane.b32.xlu0 %v857, 64
        %v1854 = vpop.permute.xlu0 %1853
        %1855 = vrot.lane.b32.xlu0 %v863, 64
        %v1856 = vpop.permute.xlu0 %1855
        %1865 = vrot.lane.b32.xlu0 %v823, 64
        %v1866 = vpop.permute.xlu0 %1865
        %1867 = vrot.lane.b32.xlu0 %v829, 64
        %v1868 = vpop.permute.xlu0 %1867
        %1869 = vrot.lane.b32.xlu0 %v835, 64
        %v1870 = vpop.permute.xlu0 %1869
        %1871 = vrot.lane.b32.xlu0 %v841, 64
        %v1872 = vpop.permute.xlu0 %1871
        %1873 = vrot.lane.b32.xlu0 %v847, 64
        %v1874 = vpop.permute.xlu0 %1873
        %1875 = vrot.lane.b32.xlu0 %v853, 64
        %v1876 = vpop.permute.xlu0 %1875
        %1877 = vrot.lane.b32.xlu0 %v859, 64
        %v1878 = vpop.permute.xlu0 %1877
        %1879 = vrot.lane.b32.xlu0 %v865, 64
        %v1880 = vpop.permute.xlu0 %1879
        %1889 = vrot.lane.b32.xlu0 %v1047, 64
        %v1890 = vpop.permute.xlu0 %1889
        %1891 = vrot.lane.b32.xlu0 %v1053, 64
        %v1892 = vpop.permute.xlu0 %1891
        %1893 = vrot.lane.b32.xlu0 %v1059, 64
        %v1894 = vpop.permute.xlu0 %1893
        %1895 = vrot.lane.b32.xlu0 %v1065, 64
        %v1896 = vpop.permute.xlu0 %1895
        %1897 = vrot.lane.b32.xlu0 %v1071, 64
        %v1898 = vpop.permute.xlu0 %1897
        %1899 = vrot.lane.b32.xlu0 %v1077, 64
        %v1900 = vpop.permute.xlu0 %1899
        %1901 = vrot.lane.b32.xlu0 %v1083, 64
        %v1902 = vpop.permute.xlu0 %1901
        %1903 = vrot.lane.b32.xlu0 %v1089, 64
        %v1904 = vpop.permute.xlu0 %1903
        %1913 = vrot.lane.b32.xlu0 %v1049, 64
        %v1914 = vpop.permute.xlu0 %1913
        %1915 = vrot.lane.b32.xlu0 %v1055, 64
        %v1916 = vpop.permute.xlu0 %1915
        %1917 = vrot.lane.b32.xlu0 %v1061, 64
        %v1918 = vpop.permute.xlu0 %1917
        %1919 = vrot.lane.b32.xlu0 %v1067, 64
        %v1920 = vpop.permute.xlu0 %1919
        %1921 = vrot.lane.b32.xlu0 %v1073, 64
        %v1922 = vpop.permute.xlu0 %1921
        %1923 = vrot.lane.b32.xlu0 %v1079, 64
        %v1924 = vpop.permute.xlu0 %1923
        %1925 = vrot.lane.b32.xlu0 %v1085, 64
        %v1926 = vpop.permute.xlu0 %1925
        %1927 = vrot.lane.b32.xlu0 %v1091, 64
        %v1928 = vpop.permute.xlu0 %1927
        %1937 = vrot.lane.b32.xlu0 %v1561, 64
        %v1938 = vpop.permute.xlu0 %1937
        %1939 = vrot.lane.b32.xlu0 %v1567, 64
        %v1940 = vpop.permute.xlu0 %1939
        %1941 = vrot.lane.b32.xlu0 %v1573, 64
        %v1942 = vpop.permute.xlu0 %1941
        %1943 = vrot.lane.b32.xlu0 %v1579, 64
        %v1944 = vpop.permute.xlu0 %1943
        %1945 = vrot.lane.b32.xlu0 %v1585, 64
        %v1946 = vpop.permute.xlu0 %1945
        %1947 = vrot.lane.b32.xlu0 %v1591, 64
        %v1948 = vpop.permute.xlu0 %1947
        %1949 = vrot.lane.b32.xlu0 %v1597, 64
        %v1950 = vpop.permute.xlu0 %1949
        %1951 = vrot.lane.b32.xlu0 %v1603, 64
        %v1952 = vpop.permute.xlu0 %1951
        %1961 = vrot.lane.b32.xlu0 %v1563, 64
        %v1962 = vpop.permute.xlu0 %1961
        %1963 = vrot.lane.b32.xlu0 %v1569, 64
        %v1964 = vpop.permute.xlu0 %1963
        %1965 = vrot.lane.b32.xlu0 %v1575, 64
        %v1966 = vpop.permute.xlu0 %1965
        %1967 = vrot.lane.b32.xlu0 %v1581, 64
        %v1968 = vpop.permute.xlu0 %1967
        %1969 = vrot.lane.b32.xlu0 %v1587, 64
        %v1970 = vpop.permute.xlu0 %1969
        %1971 = vrot.lane.b32.xlu0 %v1593, 64
        %v1972 = vpop.permute.xlu0 %1971
        %1973 = vrot.lane.b32.xlu0 %v1599, 64
        %v1974 = vpop.permute.xlu0 %1973
        %1975 = vrot.lane.b32.xlu0 %v1605, 64
        %v1976 = vpop.permute.xlu0 %1975
        %1985 = vrot.lane.b32.xlu0 %v1787, 64
        %v1986 = vpop.permute.xlu0 %1985
        %1987 = vrot.lane.b32.xlu0 %v1793, 64
        %v1988 = vpop.permute.xlu0 %1987
        %1989 = vrot.lane.b32.xlu0 %v1799, 64
        %v1990 = vpop.permute.xlu0 %1989
        %1991 = vrot.lane.b32.xlu0 %v1805, 64
        %v1992 = vpop.permute.xlu0 %1991
        %1993 = vrot.lane.b32.xlu0 %v1811, 64
        %v1994 = vpop.permute.xlu0 %1993
        %1995 = vrot.lane.b32.xlu0 %v1817, 64
        %v1996 = vpop.permute.xlu0 %1995
        %1997 = vrot.lane.b32.xlu0 %v1823, 64
        %v1998 = vpop.permute.xlu0 %1997
        %1999 = vrot.lane.b32.xlu0 %v1829, 64
        %v2000 = vpop.permute.xlu0 %1999
        %2009 = vrot.lane.b32.xlu0 %v1789, 64
        %v2010 = vpop.permute.xlu0 %2009
        %2011 = vrot.lane.b32.xlu0 %v1795, 64
        %v2012 = vpop.permute.xlu0 %2011
        %2013 = vrot.lane.b32.xlu0 %v1801, 64
        %v2014 = vpop.permute.xlu0 %2013
        %2015 = vrot.lane.b32.xlu0 %v1807, 64
        %v2016 = vpop.permute.xlu0 %2015
        %2017 = vrot.lane.b32.xlu0 %v1813, 64
        %v2018 = vpop.permute.xlu0 %2017
        %2019 = vrot.lane.b32.xlu0 %v1819, 64
        %v2020 = vpop.permute.xlu0 %2019
        %2021 = vrot.lane.b32.xlu0 %v1825, 64
        %v2022 = vpop.permute.xlu0 %2021
        %2023 = vrot.lane.b32.xlu0 %v1831, 64
        %v2024 = vpop.permute.xlu0 %2023
        %vm2025 = vcmask 523264
        %v2026 = vsel %vm2025, %v821, 0
        %v2028 = vsel %vm2025, %v827, 0
        %v2030 = vsel %vm2025, %v833, 0
        %v2032 = vsel %vm2025, %v839, 0
        %v2034 = vsel %vm2025, %v845, 0
        %v2036 = vsel %vm2025, %v851, 0
        %v2038 = vsel %vm2025, %v857, 0
        %v2040 = vsel %vm2025, %v863, 0
        %v2042 = vsel %vm2025, %v1561, 0
        %v2044 = vsel %vm2025, %v1567, 0
        %v2046 = vsel %vm2025, %v1573, 0
        %v2048 = vsel %vm2025, %v1579, 0
        %v2050 = vsel %vm2025, %v1585, 0
        %v2052 = vsel %vm2025, %v1591, 0
        %v2054 = vsel %vm2025, %v1597, 0
        %v2056 = vsel %vm2025, %v1603, 0
        %2058 = vmatprep.subr.mxu0 0.0
        %2059 = vmatpush1.xpose.msra.mxu0 0.0
        %2060 = vmatprep.subr.mxu0 0.0
        %2061 = vmatpush1.xpose.msra.mxu0 0.0
        %2062 = vmatprep.subr.mxu0 0.0
        %2063 = vmatpush1.xpose.msra.mxu0 0.0
        %2064 = vmatprep.subr.mxu0 0.0
        %2065 = vmatpush1.xpose.msra.mxu0 0.0
        %2066 = vmatprep.subr.mxu0 0.0
        %2067 = vmatpush1.xpose.msra.mxu0 0.0
        %2068 = vmatprep.subr.mxu0 0.0
        %2069 = vmatpush1.xpose.msra.mxu0 0.0
        %2070 = vmatprep.subr.mxu0 0.0
        %2071 = vmatpush1.xpose.msra.mxu0 0.0
        %2072 = vmatprep.subr.mxu0 0.0
        %2073 = vmatpush1.xpose.msra.mxu0 0.0
        %2074 = vmatprep.subr.mxu0 0.0
        %2075 = vmatpush1.xpose.msra.mxu0 %v2056
        %2076 = vmatprep.subr.mxu0 0.0
        %2077 = vmatpush1.xpose.msra.mxu0 %v2054
        %2078 = vmatprep.subr.mxu0 0.0
        %2079 = vmatpush1.xpose.msra.mxu0 %v2052
        %2080 = vmatprep.subr.mxu0 0.0
        %2081 = vmatpush1.xpose.msra.mxu0 %v2050
        %2082 = vmatprep.subr.mxu0 0.0
        %2083 = vmatpush1.xpose.msra.mxu0 %v2048
        %2084 = vmatprep.subr.mxu0 0.0
        %2085 = vmatpush1.xpose.msra.mxu0 %v2046
        %2086 = vmatprep.subr.mxu0 0.0
        %2087 = vmatpush1.xpose.msra.mxu0 %v2044
        %2088 = vmatprep.subr.mxu0 0.0
        %2089 = vmatpush1.xpose.msra.mxu0 %v2042
        %2090 = vmatprep.subr.mxu0 0.0
        %2091 = vmatpush2.xpose.msra.mxu0 0.0
        %2092 = vmatprep.subr.mxu0 0.0
        %2093 = vmatpush2.xpose.msra.mxu0 0.0
        %2094 = vmatprep.subr.mxu0 0.0
        %2095 = vmatpush2.xpose.msra.mxu0 0.0
        %2096 = vmatprep.subr.mxu0 0.0
        %2097 = vmatpush2.xpose.msra.mxu0 0.0
        %2098 = vmatprep.subr.mxu0 0.0
        %2099 = vmatpush2.xpose.msra.mxu0 0.0
        %2100 = vmatprep.subr.mxu0 0.0
        %2101 = vmatpush2.xpose.msra.mxu0 0.0
        %2102 = vmatprep.subr.mxu0 0.0
        %2103 = vmatpush2.xpose.msra.mxu0 0.0
        %2104 = vmatprep.subr.mxu0 0.0
        %2105 = vmatpush2.xpose.msra.mxu0 0.0
        %2106 = vmatprep.subr.mxu0 0.0
        %2107 = vmatpush2.xpose.msra.mxu0 0.0
        %2108 = vmatprep.subr.mxu0 0.0
        %2109 = vmatpush2.xpose.msra.mxu0 0.0
        %2110 = vmatprep.subr.mxu0 0.0
        %2111 = vmatpush2.xpose.msra.mxu0 0.0
        %2112 = vmatprep.subr.mxu0 0.0
        %2113 = vmatpush2.xpose.msra.mxu0 0.0
        %2114 = vmatprep.subr.mxu0 0.0
        %2115 = vmatpush2.xpose.msra.mxu0 0.0
        %2116 = vmatprep.subr.mxu0 0.0
        %2117 = vmatpush2.xpose.msra.mxu0 0.0
        %2118 = vmatprep.subr.mxu0 0.0
        %2119 = vmatpush2.xpose.msra.mxu0 0.0
        %2120 = vmatprep.subr.mxu0 0.0
        %2121 = vmatpush2.xpose.msra.mxu0 0.0
        %2122 = vmatprep.mubr.f32.mxu0 0.0
        %2123 = vmatmul.mubr.f32.gmra.mxu0 %v2026
        %v2124 = vpop.f32.mrf.mxu0
        %v2125 = vadd.f32 0.0, %v2124
        %v2126 = vpop.f32.mrf.mxu0
        %2127 = vmatprep.mubr.f32.mxu0 0.0
        %2128 = vmatmul.mubr.f32.gmra.mxu0 %v2028
        %v2129 = vpop.f32.mrf.mxu0
        %v2130 = vadd.f32 0.0, %v2129
        %v2131 = vpop.f32.mrf.mxu0
        %2132 = vmatprep.mubr.f32.mxu0 0.0
        %2133 = vmatmul.mubr.f32.gmra.mxu0 %v2030
        %v2134 = vpop.f32.mrf.mxu0
        %v2135 = vadd.f32 0.0, %v2134
        %v2136 = vpop.f32.mrf.mxu0
        %2137 = vmatprep.mubr.f32.mxu0 0.0
        %2138 = vmatmul.mubr.f32.gmra.mxu0 %v2032
        %v2139 = vpop.f32.mrf.mxu0
        %v2140 = vadd.f32 0.0, %v2139
        %v2141 = vpop.f32.mrf.mxu0
        %2142 = vmatprep.mubr.f32.mxu0 0.0
        %2143 = vmatmul.mubr.f32.gmra.mxu0 %v2034
        %v2144 = vpop.f32.mrf.mxu0
        %v2145 = vadd.f32 0.0, %v2144
        %v2146 = vpop.f32.mrf.mxu0
        %2147 = vmatprep.mubr.f32.mxu0 0.0
        %2148 = vmatmul.mubr.f32.gmra.mxu0 %v2036
        %v2149 = vpop.f32.mrf.mxu0
        %v2150 = vadd.f32 0.0, %v2149
        %v2151 = vpop.f32.mrf.mxu0
        %2152 = vmatprep.mubr.f32.mxu0 0.0
        %2153 = vmatmul.mubr.f32.gmra.mxu0 %v2038
        %v2154 = vpop.f32.mrf.mxu0
        %v2155 = vadd.f32 0.0, %v2154
        %v2156 = vpop.f32.mrf.mxu0
        %2157 = vmatprep.mubr.f32.mxu0 0.0
        %2158 = vmatmul.mubr.f32.gmra.mxu0 %v2040
        %v2159 = vpop.f32.mrf.mxu0
        %v2160 = vadd.f32 0.0, %v2159
        %v2161 = vpop.f32.mrf.mxu0
        %2162 = vdwg.mxu0
        %v2163 = vsel %vm2025, %v1842, 0
        %v2165 = vsel %vm2025, %v1844, 0
        %v2167 = vsel %vm2025, %v1846, 0
        %v2169 = vsel %vm2025, %v1848, 0
        %v2171 = vsel %vm2025, %v1850, 0
        %v2173 = vsel %vm2025, %v1852, 0
        %v2175 = vsel %vm2025, %v1854, 0
        %v2177 = vsel %vm2025, %v1856, 0
        %v2179 = vsel %vm2025, %v1938, 0
        %v2181 = vsel %vm2025, %v1940, 0
        %v2183 = vsel %vm2025, %v1942, 0
        %v2185 = vsel %vm2025, %v1944, 0
        %v2187 = vsel %vm2025, %v1946, 0
        %v2189 = vsel %vm2025, %v1948, 0
        %v2191 = vsel %vm2025, %v1950, 0
        %v2193 = vsel %vm2025, %v1952, 0
        %2195 = vmatprep.subr.mxu0 0.0
        %2196 = vmatpush1.xpose.msra.mxu0 0.0
        %2197 = vmatprep.subr.mxu0 0.0
        %2198 = vmatpush1.xpose.msra.mxu0 0.0
        %2199 = vmatprep.subr.mxu0 0.0
        %2200 = vmatpush1.xpose.msra.mxu0 0.0
        %2201 = vmatprep.subr.mxu0 0.0
        %2202 = vmatpush1.xpose.msra.mxu0 0.0
        %2203 = vmatprep.subr.mxu0 0.0
        %2204 = vmatpush1.xpose.msra.mxu0 0.0
        %2205 = vmatprep.subr.mxu0 0.0
        %2206 = vmatpush1.xpose.msra.mxu0 0.0
        %2207 = vmatprep.subr.mxu0 0.0
        %2208 = vmatpush1.xpose.msra.mxu0 0.0
        %2209 = vmatprep.subr.mxu0 0.0
        %2210 = vmatpush1.xpose.msra.mxu0 0.0
        %2211 = vmatprep.subr.mxu0 0.0
        %2212 = vmatpush1.xpose.msra.mxu0 %v2193
        %2213 = vmatprep.subr.mxu0 0.0
        %2214 = vmatpush1.xpose.msra.mxu0 %v2191
        %2215 = vmatprep.subr.mxu0 0.0
        %2216 = vmatpush1.xpose.msra.mxu0 %v2189
        %2217 = vmatprep.subr.mxu0 0.0
        %2218 = vmatpush1.xpose.msra.mxu0 %v2187
        %2219 = vmatprep.subr.mxu0 0.0
        %2220 = vmatpush1.xpose.msra.mxu0 %v2185
        %2221 = vmatprep.subr.mxu0 0.0
        %2222 = vmatpush1.xpose.msra.mxu0 %v2183
        %2223 = vmatprep.subr.mxu0 0.0
        %2224 = vmatpush1.xpose.msra.mxu0 %v2181
        %2225 = vmatprep.subr.mxu0 0.0
        %2226 = vmatpush1.xpose.msra.mxu0 %v2179
        %2227 = vmatprep.subr.mxu0 0.0
        %2228 = vmatpush2.xpose.msra.mxu0 0.0
        %2229 = vmatprep.subr.mxu0 0.0
        %2230 = vmatpush2.xpose.msra.mxu0 0.0
        %2231 = vmatprep.subr.mxu0 0.0
        %2232 = vmatpush2.xpose.msra.mxu0 0.0
        %2233 = vmatprep.subr.mxu0 0.0
        %2234 = vmatpush2.xpose.msra.mxu0 0.0
        %2235 = vmatprep.subr.mxu0 0.0
        %2236 = vmatpush2.xpose.msra.mxu0 0.0
        %2237 = vmatprep.subr.mxu0 0.0
        %2238 = vmatpush2.xpose.msra.mxu0 0.0
        %2239 = vmatprep.subr.mxu0 0.0
        %2240 = vmatpush2.xpose.msra.mxu0 0.0
        %2241 = vmatprep.subr.mxu0 0.0
        %2242 = vmatpush2.xpose.msra.mxu0 0.0
        %2243 = vmatprep.subr.mxu0 0.0
        %2244 = vmatpush2.xpose.msra.mxu0 0.0
        %2245 = vmatprep.subr.mxu0 0.0
        %2246 = vmatpush2.xpose.msra.mxu0 0.0
        %2247 = vmatprep.subr.mxu0 0.0
        %2248 = vmatpush2.xpose.msra.mxu0 0.0
        %2249 = vmatprep.subr.mxu0 0.0
        %2250 = vmatpush2.xpose.msra.mxu0 0.0
        %2251 = vmatprep.subr.mxu0 0.0
        %2252 = vmatpush2.xpose.msra.mxu0 0.0
        %2253 = vmatprep.subr.mxu0 0.0
        %2254 = vmatpush2.xpose.msra.mxu0 0.0
        %2255 = vmatprep.subr.mxu0 0.0
        %2256 = vmatpush2.xpose.msra.mxu0 0.0
        %2257 = vmatprep.subr.mxu0 0.0
        %2258 = vmatpush2.xpose.msra.mxu0 0.0
        %2259 = vmatprep.mubr.f32.mxu0 0.0
        %2260 = vmatmul.mubr.f32.gmra.mxu0 %v2163
        %v2261 = vpop.f32.mrf.mxu0
        %v2262 = vadd.f32 0.0, %v2261
        %v2263 = vpop.f32.mrf.mxu0
        %2264 = vmatprep.mubr.f32.mxu0 0.0
        %2265 = vmatmul.mubr.f32.gmra.mxu0 %v2165
        %v2266 = vpop.f32.mrf.mxu0
        %v2267 = vadd.f32 0.0, %v2266
        %v2268 = vpop.f32.mrf.mxu0
        %2269 = vmatprep.mubr.f32.mxu0 0.0
        %2270 = vmatmul.mubr.f32.gmra.mxu0 %v2167
        %v2271 = vpop.f32.mrf.mxu0
        %v2272 = vadd.f32 0.0, %v2271
        %v2273 = vpop.f32.mrf.mxu0
        %2274 = vmatprep.mubr.f32.mxu0 0.0
        %2275 = vmatmul.mubr.f32.gmra.mxu0 %v2169
        %v2276 = vpop.f32.mrf.mxu0
        %v2277 = vadd.f32 0.0, %v2276
        %v2278 = vpop.f32.mrf.mxu0
        %2279 = vmatprep.mubr.f32.mxu0 0.0
        %2280 = vmatmul.mubr.f32.gmra.mxu0 %v2171
        %v2281 = vpop.f32.mrf.mxu0
        %v2282 = vadd.f32 0.0, %v2281
        %v2283 = vpop.f32.mrf.mxu0
        %2284 = vmatprep.mubr.f32.mxu0 0.0
        %2285 = vmatmul.mubr.f32.gmra.mxu0 %v2173
        %v2286 = vpop.f32.mrf.mxu0
        %v2287 = vadd.f32 0.0, %v2286
        %v2288 = vpop.f32.mrf.mxu0
        %2289 = vmatprep.mubr.f32.mxu0 0.0
        %2290 = vmatmul.mubr.f32.gmra.mxu0 %v2175
        %v2291 = vpop.f32.mrf.mxu0
        %v2292 = vadd.f32 0.0, %v2291
        %v2293 = vpop.f32.mrf.mxu0
        %2294 = vmatprep.mubr.f32.mxu0 0.0
        %2295 = vmatmul.mubr.f32.gmra.mxu0 %v2177
        %v2296 = vpop.f32.mrf.mxu0
        %v2297 = vadd.f32 0.0, %v2296
        %v2298 = vpop.f32.mrf.mxu0
        %2299 = vdwg.mxu0
        %v2300 = vsel %vm2025, %v823, 0
        %v2302 = vsel %vm2025, %v829, 0
        %v2304 = vsel %vm2025, %v835, 0
        %v2306 = vsel %vm2025, %v841, 0
        %v2308 = vsel %vm2025, %v847, 0
        %v2310 = vsel %vm2025, %v853, 0
        %v2312 = vsel %vm2025, %v859, 0
        %v2314 = vsel %vm2025, %v865, 0
        %v2316 = vsel %vm2025, %v1563, 0
        %v2318 = vsel %vm2025, %v1569, 0
        %v2320 = vsel %vm2025, %v1575, 0
        %v2322 = vsel %vm2025, %v1581, 0
        %v2324 = vsel %vm2025, %v1587, 0
        %v2326 = vsel %vm2025, %v1593, 0
        %v2328 = vsel %vm2025, %v1599, 0
        %v2330 = vsel %vm2025, %v1605, 0
        %2332 = vmatprep.subr.mxu0 0.0
        %2333 = vmatpush1.xpose.msra.mxu0 0.0
        %2334 = vmatprep.subr.mxu0 0.0
        %2335 = vmatpush1.xpose.msra.mxu0 0.0
        %2336 = vmatprep.subr.mxu0 0.0
        %2337 = vmatpush1.xpose.msra.mxu0 0.0
        %2338 = vmatprep.subr.mxu0 0.0
        %2339 = vmatpush1.xpose.msra.mxu0 0.0
        %2340 = vmatprep.subr.mxu0 0.0
        %2341 = vmatpush1.xpose.msra.mxu0 0.0
        %2342 = vmatprep.subr.mxu0 0.0
        %2343 = vmatpush1.xpose.msra.mxu0 0.0
        %2344 = vmatprep.subr.mxu0 0.0
        %2345 = vmatpush1.xpose.msra.mxu0 0.0
        %2346 = vmatprep.subr.mxu0 0.0
        %2347 = vmatpush1.xpose.msra.mxu0 0.0
        %2348 = vmatprep.subr.mxu0 0.0
        %2349 = vmatpush1.xpose.msra.mxu0 %v2330
        %2350 = vmatprep.subr.mxu0 0.0
        %2351 = vmatpush1.xpose.msra.mxu0 %v2328
        %2352 = vmatprep.subr.mxu0 0.0
        %2353 = vmatpush1.xpose.msra.mxu0 %v2326
        %2354 = vmatprep.subr.mxu0 0.0
        %2355 = vmatpush1.xpose.msra.mxu0 %v2324
        %2356 = vmatprep.subr.mxu0 0.0
        %2357 = vmatpush1.xpose.msra.mxu0 %v2322
        %2358 = vmatprep.subr.mxu0 0.0
        %2359 = vmatpush1.xpose.msra.mxu0 %v2320
        %2360 = vmatprep.subr.mxu0 0.0
        %2361 = vmatpush1.xpose.msra.mxu0 %v2318
        %2362 = vmatprep.subr.mxu0 0.0
        %2363 = vmatpush1.xpose.msra.mxu0 %v2316
        %2364 = vmatprep.subr.mxu0 0.0
        %2365 = vmatpush2.xpose.msra.mxu0 0.0
        %2366 = vmatprep.subr.mxu0 0.0
        %2367 = vmatpush2.xpose.msra.mxu0 0.0
        %2368 = vmatprep.subr.mxu0 0.0
        %2369 = vmatpush2.xpose.msra.mxu0 0.0
        %2370 = vmatprep.subr.mxu0 0.0
        %2371 = vmatpush2.xpose.msra.mxu0 0.0
        %2372 = vmatprep.subr.mxu0 0.0
        %2373 = vmatpush2.xpose.msra.mxu0 0.0
        %2374 = vmatprep.subr.mxu0 0.0
        %2375 = vmatpush2.xpose.msra.mxu0 0.0
        %2376 = vmatprep.subr.mxu0 0.0
        %2377 = vmatpush2.xpose.msra.mxu0 0.0
        %2378 = vmatprep.subr.mxu0 0.0
        %2379 = vmatpush2.xpose.msra.mxu0 0.0
        %2380 = vmatprep.subr.mxu0 0.0
        %2381 = vmatpush2.xpose.msra.mxu0 0.0
        %2382 = vmatprep.subr.mxu0 0.0
        %2383 = vmatpush2.xpose.msra.mxu0 0.0
        %2384 = vmatprep.subr.mxu0 0.0
        %2385 = vmatpush2.xpose.msra.mxu0 0.0
        %2386 = vmatprep.subr.mxu0 0.0
        %2387 = vmatpush2.xpose.msra.mxu0 0.0
        %2388 = vmatprep.subr.mxu0 0.0
        %2389 = vmatpush2.xpose.msra.mxu0 0.0
        %2390 = vmatprep.subr.mxu0 0.0
        %2391 = vmatpush2.xpose.msra.mxu0 0.0
        %2392 = vmatprep.subr.mxu0 0.0
        %2393 = vmatpush2.xpose.msra.mxu0 0.0
        %2394 = vmatprep.subr.mxu0 0.0
        %2395 = vmatpush2.xpose.msra.mxu0 0.0
        %2396 = vmatprep.mubr.f32.mxu0 0.0
        %2397 = vmatmul.mubr.f32.gmra.mxu0 %v2300
        %v2398 = vpop.f32.mrf.mxu0
        %v2399 = vadd.f32 0.0, %v2398
        %v2400 = vpop.f32.mrf.mxu0
        %2401 = vmatprep.mubr.f32.mxu0 0.0
        %2402 = vmatmul.mubr.f32.gmra.mxu0 %v2302
        %v2403 = vpop.f32.mrf.mxu0
        %v2404 = vadd.f32 0.0, %v2403
        %v2405 = vpop.f32.mrf.mxu0
        %2406 = vmatprep.mubr.f32.mxu0 0.0
        %2407 = vmatmul.mubr.f32.gmra.mxu0 %v2304
        %v2408 = vpop.f32.mrf.mxu0
        %v2409 = vadd.f32 0.0, %v2408
        %v2410 = vpop.f32.mrf.mxu0
        %2411 = vmatprep.mubr.f32.mxu0 0.0
        %2412 = vmatmul.mubr.f32.gmra.mxu0 %v2306
        %v2413 = vpop.f32.mrf.mxu0
        %v2414 = vadd.f32 0.0, %v2413
        %v2415 = vpop.f32.mrf.mxu0
        %2416 = vmatprep.mubr.f32.mxu0 0.0
        %2417 = vmatmul.mubr.f32.gmra.mxu0 %v2308
        %v2418 = vpop.f32.mrf.mxu0
        %v2419 = vadd.f32 0.0, %v2418
        %v2420 = vpop.f32.mrf.mxu0
        %2421 = vmatprep.mubr.f32.mxu0 0.0
        %2422 = vmatmul.mubr.f32.gmra.mxu0 %v2310
        %v2423 = vpop.f32.mrf.mxu0
        %v2424 = vadd.f32 0.0, %v2423
        %v2425 = vpop.f32.mrf.mxu0
        %2426 = vmatprep.mubr.f32.mxu0 0.0
        %2427 = vmatmul.mubr.f32.gmra.mxu0 %v2312
        %v2428 = vpop.f32.mrf.mxu0
        %v2429 = vadd.f32 0.0, %v2428
        %v2430 = vpop.f32.mrf.mxu0
        %2431 = vmatprep.mubr.f32.mxu0 0.0
        %2432 = vmatmul.mubr.f32.gmra.mxu0 %v2314
        %v2433 = vpop.f32.mrf.mxu0
        %v2434 = vadd.f32 0.0, %v2433
        %v2435 = vpop.f32.mrf.mxu0
        %2436 = vdwg.mxu0
        %v2437 = vsel %vm2025, %v1866, 0
        %v2439 = vsel %vm2025, %v1868, 0
        %v2441 = vsel %vm2025, %v1870, 0
        %v2443 = vsel %vm2025, %v1872, 0
        %v2445 = vsel %vm2025, %v1874, 0
        %v2447 = vsel %vm2025, %v1876, 0
        %v2449 = vsel %vm2025, %v1878, 0
        %v2451 = vsel %vm2025, %v1880, 0
        %v2453 = vsel %vm2025, %v1962, 0
        %v2455 = vsel %vm2025, %v1964, 0
        %v2457 = vsel %vm2025, %v1966, 0
        %v2459 = vsel %vm2025, %v1968, 0
        %v2461 = vsel %vm2025, %v1970, 0
        %v2463 = vsel %vm2025, %v1972, 0
        %v2465 = vsel %vm2025, %v1974, 0
        %v2467 = vsel %vm2025, %v1976, 0
        %2469 = vmatprep.subr.mxu0 0.0
        %2470 = vmatpush1.xpose.msra.mxu0 0.0
        %2471 = vmatprep.subr.mxu0 0.0
        %2472 = vmatpush1.xpose.msra.mxu0 0.0
        %2473 = vmatprep.subr.mxu0 0.0
        %2474 = vmatpush1.xpose.msra.mxu0 0.0
        %2475 = vmatprep.subr.mxu0 0.0
        %2476 = vmatpush1.xpose.msra.mxu0 0.0
        %2477 = vmatprep.subr.mxu0 0.0
        %2478 = vmatpush1.xpose.msra.mxu0 0.0
        %2479 = vmatprep.subr.mxu0 0.0
        %2480 = vmatpush1.xpose.msra.mxu0 0.0
        %2481 = vmatprep.subr.mxu0 0.0
        %2482 = vmatpush1.xpose.msra.mxu0 0.0
        %2483 = vmatprep.subr.mxu0 0.0
        %2484 = vmatpush1.xpose.msra.mxu0 0.0
        %2485 = vmatprep.subr.mxu0 0.0
        %2486 = vmatpush1.xpose.msra.mxu0 %v2467
        %2487 = vmatprep.subr.mxu0 0.0
        %2488 = vmatpush1.xpose.msra.mxu0 %v2465
        %2489 = vmatprep.subr.mxu0 0.0
        %2490 = vmatpush1.xpose.msra.mxu0 %v2463
        %2491 = vmatprep.subr.mxu0 0.0
        %2492 = vmatpush1.xpose.msra.mxu0 %v2461
        %2493 = vmatprep.subr.mxu0 0.0
        %2494 = vmatpush1.xpose.msra.mxu0 %v2459
        %2495 = vmatprep.subr.mxu0 0.0
        %2496 = vmatpush1.xpose.msra.mxu0 %v2457
        %2497 = vmatprep.subr.mxu0 0.0
        %2498 = vmatpush1.xpose.msra.mxu0 %v2455
        %2499 = vmatprep.subr.mxu0 0.0
        %2500 = vmatpush1.xpose.msra.mxu0 %v2453
        %2501 = vmatprep.subr.mxu0 0.0
        %2502 = vmatpush2.xpose.msra.mxu0 0.0
        %2503 = vmatprep.subr.mxu0 0.0
        %2504 = vmatpush2.xpose.msra.mxu0 0.0
        %2505 = vmatprep.subr.mxu0 0.0
        %2506 = vmatpush2.xpose.msra.mxu0 0.0
        %2507 = vmatprep.subr.mxu0 0.0
        %2508 = vmatpush2.xpose.msra.mxu0 0.0
        %2509 = vmatprep.subr.mxu0 0.0
        %2510 = vmatpush2.xpose.msra.mxu0 0.0
        %2511 = vmatprep.subr.mxu0 0.0
        %2512 = vmatpush2.xpose.msra.mxu0 0.0
        %2513 = vmatprep.subr.mxu0 0.0
        %2514 = vmatpush2.xpose.msra.mxu0 0.0
        %2515 = vmatprep.subr.mxu0 0.0
        %2516 = vmatpush2.xpose.msra.mxu0 0.0
        %2517 = vmatprep.subr.mxu0 0.0
        %2518 = vmatpush2.xpose.msra.mxu0 0.0
        %2519 = vmatprep.subr.mxu0 0.0
        %2520 = vmatpush2.xpose.msra.mxu0 0.0
        %2521 = vmatprep.subr.mxu0 0.0
        %2522 = vmatpush2.xpose.msra.mxu0 0.0
        %2523 = vmatprep.subr.mxu0 0.0
        %2524 = vmatpush2.xpose.msra.mxu0 0.0
        %2525 = vmatprep.subr.mxu0 0.0
        %2526 = vmatpush2.xpose.msra.mxu0 0.0
        %2527 = vmatprep.subr.mxu0 0.0
        %2528 = vmatpush2.xpose.msra.mxu0 0.0
        %2529 = vmatprep.subr.mxu0 0.0
        %2530 = vmatpush2.xpose.msra.mxu0 0.0
        %2531 = vmatprep.subr.mxu0 0.0
        %2532 = vmatpush2.xpose.msra.mxu0 0.0
        %2533 = vmatprep.mubr.f32.mxu0 0.0
        %2534 = vmatmul.mubr.f32.gmra.mxu0 %v2437
        %v2535 = vpop.f32.mrf.mxu0
        %v2536 = vadd.f32 0.0, %v2535
        %v2537 = vpop.f32.mrf.mxu0
        %2538 = vmatprep.mubr.f32.mxu0 0.0
        %2539 = vmatmul.mubr.f32.gmra.mxu0 %v2439
        %v2540 = vpop.f32.mrf.mxu0
        %v2541 = vadd.f32 0.0, %v2540
        %v2542 = vpop.f32.mrf.mxu0
        %2543 = vmatprep.mubr.f32.mxu0 0.0
        %2544 = vmatmul.mubr.f32.gmra.mxu0 %v2441
        %v2545 = vpop.f32.mrf.mxu0
        %v2546 = vadd.f32 0.0, %v2545
        %v2547 = vpop.f32.mrf.mxu0
        %2548 = vmatprep.mubr.f32.mxu0 0.0
        %2549 = vmatmul.mubr.f32.gmra.mxu0 %v2443
        %v2550 = vpop.f32.mrf.mxu0
        %v2551 = vadd.f32 0.0, %v2550
        %v2552 = vpop.f32.mrf.mxu0
        %2553 = vmatprep.mubr.f32.mxu0 0.0
        %2554 = vmatmul.mubr.f32.gmra.mxu0 %v2445
        %v2555 = vpop.f32.mrf.mxu0
        %v2556 = vadd.f32 0.0, %v2555
        %v2557 = vpop.f32.mrf.mxu0
        %2558 = vmatprep.mubr.f32.mxu0 0.0
        %2559 = vmatmul.mubr.f32.gmra.mxu0 %v2447
        %v2560 = vpop.f32.mrf.mxu0
        %v2561 = vadd.f32 0.0, %v2560
        %v2562 = vpop.f32.mrf.mxu0
        %2563 = vmatprep.mubr.f32.mxu0 0.0
        %2564 = vmatmul.mubr.f32.gmra.mxu0 %v2449
        %v2565 = vpop.f32.mrf.mxu0
        %v2566 = vadd.f32 0.0, %v2565
        %v2567 = vpop.f32.mrf.mxu0
        %2568 = vmatprep.mubr.f32.mxu0 0.0
        %2569 = vmatmul.mubr.f32.gmra.mxu0 %v2451
        %v2570 = vpop.f32.mrf.mxu0
        %v2571 = vadd.f32 0.0, %v2570
        %v2572 = vpop.f32.mrf.mxu0
        %2573 = vdwg.mxu0
        %v2574 = vsel %vm2025, %v1047, 0
        %v2576 = vsel %vm2025, %v1053, 0
        %v2578 = vsel %vm2025, %v1059, 0
        %v2580 = vsel %vm2025, %v1065, 0
        %v2582 = vsel %vm2025, %v1071, 0
        %v2584 = vsel %vm2025, %v1077, 0
        %v2586 = vsel %vm2025, %v1083, 0
        %v2588 = vsel %vm2025, %v1089, 0
        %v2590 = vsel %vm2025, %v1787, 0
        %v2592 = vsel %vm2025, %v1793, 0
        %v2594 = vsel %vm2025, %v1799, 0
        %v2596 = vsel %vm2025, %v1805, 0
        %v2598 = vsel %vm2025, %v1811, 0
        %v2600 = vsel %vm2025, %v1817, 0
        %v2602 = vsel %vm2025, %v1823, 0
        %v2604 = vsel %vm2025, %v1829, 0
        %2606 = vmatprep.subr.mxu0 0.0
        %2607 = vmatpush1.xpose.msra.mxu0 0.0
        %2608 = vmatprep.subr.mxu0 0.0
        %2609 = vmatpush1.xpose.msra.mxu0 0.0
        %2610 = vmatprep.subr.mxu0 0.0
        %2611 = vmatpush1.xpose.msra.mxu0 0.0
        %2612 = vmatprep.subr.mxu0 0.0
        %2613 = vmatpush1.xpose.msra.mxu0 0.0
        %2614 = vmatprep.subr.mxu0 0.0
        %2615 = vmatpush1.xpose.msra.mxu0 0.0
        %2616 = vmatprep.subr.mxu0 0.0
        %2617 = vmatpush1.xpose.msra.mxu0 0.0
        %2618 = vmatprep.subr.mxu0 0.0
        %2619 = vmatpush1.xpose.msra.mxu0 0.0
        %2620 = vmatprep.subr.mxu0 0.0
        %2621 = vmatpush1.xpose.msra.mxu0 0.0
        %2622 = vmatprep.subr.mxu0 0.0
        %2623 = vmatpush1.xpose.msra.mxu0 %v2604
        %2624 = vmatprep.subr.mxu0 0.0
        %2625 = vmatpush1.xpose.msra.mxu0 %v2602
        %2626 = vmatprep.subr.mxu0 0.0
        %2627 = vmatpush1.xpose.msra.mxu0 %v2600
        %2628 = vmatprep.subr.mxu0 0.0
        %2629 = vmatpush1.xpose.msra.mxu0 %v2598
        %2630 = vmatprep.subr.mxu0 0.0
        %2631 = vmatpush1.xpose.msra.mxu0 %v2596
        %2632 = vmatprep.subr.mxu0 0.0
        %2633 = vmatpush1.xpose.msra.mxu0 %v2594
        %2634 = vmatprep.subr.mxu0 0.0
        %2635 = vmatpush1.xpose.msra.mxu0 %v2592
        %2636 = vmatprep.subr.mxu0 0.0
        %2637 = vmatpush1.xpose.msra.mxu0 %v2590
        %2638 = vmatprep.subr.mxu0 0.0
        %2639 = vmatpush2.xpose.msra.mxu0 0.0
        %2640 = vmatprep.subr.mxu0 0.0
        %2641 = vmatpush2.xpose.msra.mxu0 0.0
        %2642 = vmatprep.subr.mxu0 0.0
        %2643 = vmatpush2.xpose.msra.mxu0 0.0
        %2644 = vmatprep.subr.mxu0 0.0
        %2645 = vmatpush2.xpose.msra.mxu0 0.0
        %2646 = vmatprep.subr.mxu0 0.0
        %2647 = vmatpush2.xpose.msra.mxu0 0.0
        %2648 = vmatprep.subr.mxu0 0.0
        %2649 = vmatpush2.xpose.msra.mxu0 0.0
        %2650 = vmatprep.subr.mxu0 0.0
        %2651 = vmatpush2.xpose.msra.mxu0 0.0
        %2652 = vmatprep.subr.mxu0 0.0
        %2653 = vmatpush2.xpose.msra.mxu0 0.0
        %2654 = vmatprep.subr.mxu0 0.0
        %2655 = vmatpush2.xpose.msra.mxu0 0.0
        %2656 = vmatprep.subr.mxu0 0.0
        %2657 = vmatpush2.xpose.msra.mxu0 0.0
        %2658 = vmatprep.subr.mxu0 0.0
        %2659 = vmatpush2.xpose.msra.mxu0 0.0
        %2660 = vmatprep.subr.mxu0 0.0
        %2661 = vmatpush2.xpose.msra.mxu0 0.0
        %2662 = vmatprep.subr.mxu0 0.0
        %2663 = vmatpush2.xpose.msra.mxu0 0.0
        %2664 = vmatprep.subr.mxu0 0.0
        %2665 = vmatpush2.xpose.msra.mxu0 0.0
        %2666 = vmatprep.subr.mxu0 0.0
        %2667 = vmatpush2.xpose.msra.mxu0 0.0
        %2668 = vmatprep.subr.mxu0 0.0
        %2669 = vmatpush2.xpose.msra.mxu0 0.0
        %2670 = vmatprep.mubr.f32.mxu0 0.0
        %2671 = vmatmul.mubr.f32.gmra.mxu0 %v2574
        %v2672 = vpop.f32.mrf.mxu0
        %v2673 = vadd.f32 0.0, %v2672
        %v2674 = vpop.f32.mrf.mxu0
        %2675 = vmatprep.mubr.f32.mxu0 0.0
        %2676 = vmatmul.mubr.f32.gmra.mxu0 %v2576
        %v2677 = vpop.f32.mrf.mxu0
        %v2678 = vadd.f32 0.0, %v2677
        %v2679 = vpop.f32.mrf.mxu0
        %2680 = vmatprep.mubr.f32.mxu0 0.0
        %2681 = vmatmul.mubr.f32.gmra.mxu0 %v2578
        %v2682 = vpop.f32.mrf.mxu0
        %v2683 = vadd.f32 0.0, %v2682
        %v2684 = vpop.f32.mrf.mxu0
        %2685 = vmatprep.mubr.f32.mxu0 0.0
        %2686 = vmatmul.mubr.f32.gmra.mxu0 %v2580
        %v2687 = vpop.f32.mrf.mxu0
        %v2688 = vadd.f32 0.0, %v2687
        %v2689 = vpop.f32.mrf.mxu0
        %2690 = vmatprep.mubr.f32.mxu0 0.0
        %2691 = vmatmul.mubr.f32.gmra.mxu0 %v2582
        %v2692 = vpop.f32.mrf.mxu0
        %v2693 = vadd.f32 0.0, %v2692
        %v2694 = vpop.f32.mrf.mxu0
        %2695 = vmatprep.mubr.f32.mxu0 0.0
        %2696 = vmatmul.mubr.f32.gmra.mxu0 %v2584
        %v2697 = vpop.f32.mrf.mxu0
        %v2698 = vadd.f32 0.0, %v2697
        %v2699 = vpop.f32.mrf.mxu0
        %2700 = vmatprep.mubr.f32.mxu0 0.0
        %2701 = vmatmul.mubr.f32.gmra.mxu0 %v2586
        %v2702 = vpop.f32.mrf.mxu0
        %v2703 = vadd.f32 0.0, %v2702
        %v2704 = vpop.f32.mrf.mxu0
        %2705 = vmatprep.mubr.f32.mxu0 0.0
        %2706 = vmatmul.mubr.f32.gmra.mxu0 %v2588
        %v2707 = vpop.f32.mrf.mxu0
        %v2708 = vadd.f32 0.0, %v2707
        %v2709 = vpop.f32.mrf.mxu0
        %2710 = vdwg.mxu0
        %v2711 = vsel %vm2025, %v1890, 0
        %v2713 = vsel %vm2025, %v1892, 0
        %v2715 = vsel %vm2025, %v1894, 0
        %v2717 = vsel %vm2025, %v1896, 0
        %v2719 = vsel %vm2025, %v1898, 0
        %v2721 = vsel %vm2025, %v1900, 0
        %v2723 = vsel %vm2025, %v1902, 0
        %v2725 = vsel %vm2025, %v1904, 0
        %v2727 = vsel %vm2025, %v1986, 0
        %v2729 = vsel %vm2025, %v1988, 0
        %v2731 = vsel %vm2025, %v1990, 0
        %v2733 = vsel %vm2025, %v1992, 0
        %v2735 = vsel %vm2025, %v1994, 0
        %v2737 = vsel %vm2025, %v1996, 0
        %v2739 = vsel %vm2025, %v1998, 0
        %v2741 = vsel %vm2025, %v2000, 0
        %2743 = vmatprep.subr.mxu0 0.0
        %2744 = vmatpush1.xpose.msra.mxu0 0.0
        %2745 = vmatprep.subr.mxu0 0.0
        %2746 = vmatpush1.xpose.msra.mxu0 0.0
        %2747 = vmatprep.subr.mxu0 0.0
        %2748 = vmatpush1.xpose.msra.mxu0 0.0
        %2749 = vmatprep.subr.mxu0 0.0
        %2750 = vmatpush1.xpose.msra.mxu0 0.0
        %2751 = vmatprep.subr.mxu0 0.0
        %2752 = vmatpush1.xpose.msra.mxu0 0.0
        %2753 = vmatprep.subr.mxu0 0.0
        %2754 = vmatpush1.xpose.msra.mxu0 0.0
        %2755 = vmatprep.subr.mxu0 0.0
        %2756 = vmatpush1.xpose.msra.mxu0 0.0
        %2757 = vmatprep.subr.mxu0 0.0
        %2758 = vmatpush1.xpose.msra.mxu0 0.0
        %2759 = vmatprep.subr.mxu0 0.0
        %2760 = vmatpush1.xpose.msra.mxu0 %v2741
        %2761 = vmatprep.subr.mxu0 0.0
        %2762 = vmatpush1.xpose.msra.mxu0 %v2739
        %2763 = vmatprep.subr.mxu0 0.0
        %2764 = vmatpush1.xpose.msra.mxu0 %v2737
        %2765 = vmatprep.subr.mxu0 0.0
        %2766 = vmatpush1.xpose.msra.mxu0 %v2735
        %2767 = vmatprep.subr.mxu0 0.0
        %2768 = vmatpush1.xpose.msra.mxu0 %v2733
        %2769 = vmatprep.subr.mxu0 0.0
        %2770 = vmatpush1.xpose.msra.mxu0 %v2731
        %2771 = vmatprep.subr.mxu0 0.0
        %2772 = vmatpush1.xpose.msra.mxu0 %v2729
        %2773 = vmatprep.subr.mxu0 0.0
        %2774 = vmatpush1.xpose.msra.mxu0 %v2727
        %2775 = vmatprep.subr.mxu0 0.0
        %2776 = vmatpush2.xpose.msra.mxu0 0.0
        %2777 = vmatprep.subr.mxu0 0.0
        %2778 = vmatpush2.xpose.msra.mxu0 0.0
        %2779 = vmatprep.subr.mxu0 0.0
        %2780 = vmatpush2.xpose.msra.mxu0 0.0
        %2781 = vmatprep.subr.mxu0 0.0
        %2782 = vmatpush2.xpose.msra.mxu0 0.0
        %2783 = vmatprep.subr.mxu0 0.0
        %2784 = vmatpush2.xpose.msra.mxu0 0.0
        %2785 = vmatprep.subr.mxu0 0.0
        %2786 = vmatpush2.xpose.msra.mxu0 0.0
        %2787 = vmatprep.subr.mxu0 0.0
        %2788 = vmatpush2.xpose.msra.mxu0 0.0
        %2789 = vmatprep.subr.mxu0 0.0
        %2790 = vmatpush2.xpose.msra.mxu0 0.0
        %2791 = vmatprep.subr.mxu0 0.0
        %2792 = vmatpush2.xpose.msra.mxu0 0.0
        %2793 = vmatprep.subr.mxu0 0.0
        %2794 = vmatpush2.xpose.msra.mxu0 0.0
        %2795 = vmatprep.subr.mxu0 0.0
        %2796 = vmatpush2.xpose.msra.mxu0 0.0
        %2797 = vmatprep.subr.mxu0 0.0
        %2798 = vmatpush2.xpose.msra.mxu0 0.0
        %2799 = vmatprep.subr.mxu0 0.0
        %2800 = vmatpush2.xpose.msra.mxu0 0.0
        %2801 = vmatprep.subr.mxu0 0.0
        %2802 = vmatpush2.xpose.msra.mxu0 0.0
        %2803 = vmatprep.subr.mxu0 0.0
        %2804 = vmatpush2.xpose.msra.mxu0 0.0
        %2805 = vmatprep.subr.mxu0 0.0
        %2806 = vmatpush2.xpose.msra.mxu0 0.0
        %2807 = vmatprep.mubr.f32.mxu0 0.0
        %2808 = vmatmul.mubr.f32.gmra.mxu0 %v2711
        %v2809 = vpop.f32.mrf.mxu0
        %v2810 = vadd.f32 0.0, %v2809
        %v2811 = vpop.f32.mrf.mxu0
        %2812 = vmatprep.mubr.f32.mxu0 0.0
        %2813 = vmatmul.mubr.f32.gmra.mxu0 %v2713
        %v2814 = vpop.f32.mrf.mxu0
        %v2815 = vadd.f32 0.0, %v2814
        %v2816 = vpop.f32.mrf.mxu0
        %2817 = vmatprep.mubr.f32.mxu0 0.0
        %2818 = vmatmul.mubr.f32.gmra.mxu0 %v2715
        %v2819 = vpop.f32.mrf.mxu0
        %v2820 = vadd.f32 0.0, %v2819
        %v2821 = vpop.f32.mrf.mxu0
        %2822 = vmatprep.mubr.f32.mxu0 0.0
        %2823 = vmatmul.mubr.f32.gmra.mxu0 %v2717
        %v2824 = vpop.f32.mrf.mxu0
        %v2825 = vadd.f32 0.0, %v2824
        %v2826 = vpop.f32.mrf.mxu0
        %2827 = vmatprep.mubr.f32.mxu0 0.0
        %2828 = vmatmul.mubr.f32.gmra.mxu0 %v2719
        %v2829 = vpop.f32.mrf.mxu0
        %v2830 = vadd.f32 0.0, %v2829
        %v2831 = vpop.f32.mrf.mxu0
        %2832 = vmatprep.mubr.f32.mxu0 0.0
        %2833 = vmatmul.mubr.f32.gmra.mxu0 %v2721
        %v2834 = vpop.f32.mrf.mxu0
        %v2835 = vadd.f32 0.0, %v2834
        %v2836 = vpop.f32.mrf.mxu0
        %2837 = vmatprep.mubr.f32.mxu0 0.0
        %2838 = vmatmul.mubr.f32.gmra.mxu0 %v2723
        %v2839 = vpop.f32.mrf.mxu0
        %v2840 = vadd.f32 0.0, %v2839
        %v2841 = vpop.f32.mrf.mxu0
        %2842 = vmatprep.mubr.f32.mxu0 0.0
        %2843 = vmatmul.mubr.f32.gmra.mxu0 %v2725
        %v2844 = vpop.f32.mrf.mxu0
        %v2845 = vadd.f32 0.0, %v2844
        %v2846 = vpop.f32.mrf.mxu0
        %2847 = vdwg.mxu0
        %v2848 = vsel %vm2025, %v1049, 0
        %v2850 = vsel %vm2025, %v1055, 0
        %v2852 = vsel %vm2025, %v1061, 0
        %v2854 = vsel %vm2025, %v1067, 0
        %v2856 = vsel %vm2025, %v1073, 0
        %v2858 = vsel %vm2025, %v1079, 0
        %v2860 = vsel %vm2025, %v1085, 0
        %v2862 = vsel %vm2025, %v1091, 0
        %v2864 = vsel %vm2025, %v1789, 0
        %v2866 = vsel %vm2025, %v1795, 0
        %v2868 = vsel %vm2025, %v1801, 0
        %v2870 = vsel %vm2025, %v1807, 0
        %v2872 = vsel %vm2025, %v1813, 0
        %v2874 = vsel %vm2025, %v1819, 0
        %v2876 = vsel %vm2025, %v1825, 0
        %v2878 = vsel %vm2025, %v1831, 0
        %2880 = vmatprep.subr.mxu0 0.0
        %2881 = vmatpush1.xpose.msra.mxu0 0.0
        %2882 = vmatprep.subr.mxu0 0.0
        %2883 = vmatpush1.xpose.msra.mxu0 0.0
        %2884 = vmatprep.subr.mxu0 0.0
        %2885 = vmatpush1.xpose.msra.mxu0 0.0
        %2886 = vmatprep.subr.mxu0 0.0
        %2887 = vmatpush1.xpose.msra.mxu0 0.0
        %2888 = vmatprep.subr.mxu0 0.0
        %2889 = vmatpush1.xpose.msra.mxu0 0.0
        %2890 = vmatprep.subr.mxu0 0.0
        %2891 = vmatpush1.xpose.msra.mxu0 0.0
        %2892 = vmatprep.subr.mxu0 0.0
        %2893 = vmatpush1.xpose.msra.mxu0 0.0
        %2894 = vmatprep.subr.mxu0 0.0
        %2895 = vmatpush1.xpose.msra.mxu0 0.0
        %2896 = vmatprep.subr.mxu0 0.0
        %2897 = vmatpush1.xpose.msra.mxu0 %v2878
        %2898 = vmatprep.subr.mxu0 0.0
        %2899 = vmatpush1.xpose.msra.mxu0 %v2876
        %2900 = vmatprep.subr.mxu0 0.0
        %2901 = vmatpush1.xpose.msra.mxu0 %v2874
        %2902 = vmatprep.subr.mxu0 0.0
        %2903 = vmatpush1.xpose.msra.mxu0 %v2872
        %2904 = vmatprep.subr.mxu0 0.0
        %2905 = vmatpush1.xpose.msra.mxu0 %v2870
        %2906 = vmatprep.subr.mxu0 0.0
        %2907 = vmatpush1.xpose.msra.mxu0 %v2868
        %2908 = vmatprep.subr.mxu0 0.0
        %2909 = vmatpush1.xpose.msra.mxu0 %v2866
        %2910 = vmatprep.subr.mxu0 0.0
        %2911 = vmatpush1.xpose.msra.mxu0 %v2864
        %2912 = vmatprep.subr.mxu0 0.0
        %2913 = vmatpush2.xpose.msra.mxu0 0.0
        %2914 = vmatprep.subr.mxu0 0.0
        %2915 = vmatpush2.xpose.msra.mxu0 0.0
        %2916 = vmatprep.subr.mxu0 0.0
        %2917 = vmatpush2.xpose.msra.mxu0 0.0
        %2918 = vmatprep.subr.mxu0 0.0
        %2919 = vmatpush2.xpose.msra.mxu0 0.0
        %2920 = vmatprep.subr.mxu0 0.0
        %2921 = vmatpush2.xpose.msra.mxu0 0.0
        %2922 = vmatprep.subr.mxu0 0.0
        %2923 = vmatpush2.xpose.msra.mxu0 0.0
        %2924 = vmatprep.subr.mxu0 0.0
        %2925 = vmatpush2.xpose.msra.mxu0 0.0
        %2926 = vmatprep.subr.mxu0 0.0
        %2927 = vmatpush2.xpose.msra.mxu0 0.0
        %2928 = vmatprep.subr.mxu0 0.0
        %2929 = vmatpush2.xpose.msra.mxu0 0.0
        %2930 = vmatprep.subr.mxu0 0.0
        %2931 = vmatpush2.xpose.msra.mxu0 0.0
        %2932 = vmatprep.subr.mxu0 0.0
        %2933 = vmatpush2.xpose.msra.mxu0 0.0
        %2934 = vmatprep.subr.mxu0 0.0
        %2935 = vmatpush2.xpose.msra.mxu0 0.0
        %2936 = vmatprep.subr.mxu0 0.0
        %2937 = vmatpush2.xpose.msra.mxu0 0.0
        %2938 = vmatprep.subr.mxu0 0.0
        %2939 = vmatpush2.xpose.msra.mxu0 0.0
        %2940 = vmatprep.subr.mxu0 0.0
        %2941 = vmatpush2.xpose.msra.mxu0 0.0
        %2942 = vmatprep.subr.mxu0 0.0
        %2943 = vmatpush2.xpose.msra.mxu0 0.0
        %2944 = vmatprep.mubr.f32.mxu0 0.0
        %2945 = vmatmul.mubr.f32.gmra.mxu0 %v2848
        %v2946 = vpop.f32.mrf.mxu0
        %v2947 = vadd.f32 0.0, %v2946
        %v2948 = vpop.f32.mrf.mxu0
        %2949 = vmatprep.mubr.f32.mxu0 0.0
        %2950 = vmatmul.mubr.f32.gmra.mxu0 %v2850
        %v2951 = vpop.f32.mrf.mxu0
        %v2952 = vadd.f32 0.0, %v2951
        %v2953 = vpop.f32.mrf.mxu0
        %2954 = vmatprep.mubr.f32.mxu0 0.0
        %2955 = vmatmul.mubr.f32.gmra.mxu0 %v2852
        %v2956 = vpop.f32.mrf.mxu0
        %v2957 = vadd.f32 0.0, %v2956
        %v2958 = vpop.f32.mrf.mxu0
        %2959 = vmatprep.mubr.f32.mxu0 0.0
        %2960 = vmatmul.mubr.f32.gmra.mxu0 %v2854
        %v2961 = vpop.f32.mrf.mxu0
        %v2962 = vadd.f32 0.0, %v2961
        %v2963 = vpop.f32.mrf.mxu0
        %2964 = vmatprep.mubr.f32.mxu0 0.0
        %2965 = vmatmul.mubr.f32.gmra.mxu0 %v2856
        %v2966 = vpop.f32.mrf.mxu0
        %v2967 = vadd.f32 0.0, %v2966
        %v2968 = vpop.f32.mrf.mxu0
        %2969 = vmatprep.mubr.f32.mxu0 0.0
        %2970 = vmatmul.mubr.f32.gmra.mxu0 %v2858
        %v2971 = vpop.f32.mrf.mxu0
        %v2972 = vadd.f32 0.0, %v2971
        %v2973 = vpop.f32.mrf.mxu0
        %2974 = vmatprep.mubr.f32.mxu0 0.0
        %2975 = vmatmul.mubr.f32.gmra.mxu0 %v2860
        %v2976 = vpop.f32.mrf.mxu0
        %v2977 = vadd.f32 0.0, %v2976
        %v2978 = vpop.f32.mrf.mxu0
        %2979 = vmatprep.mubr.f32.mxu0 0.0
        %2980 = vmatmul.mubr.f32.gmra.mxu0 %v2862
        %v2981 = vpop.f32.mrf.mxu0
        %v2982 = vadd.f32 0.0, %v2981
        %v2983 = vpop.f32.mrf.mxu0
        %2984 = vdwg.mxu0
        %v2985 = vsel %vm2025, %v1914, 0
        %v2987 = vsel %vm2025, %v1916, 0
        %v2989 = vsel %vm2025, %v1918, 0
        %v2991 = vsel %vm2025, %v1920, 0
        %v2993 = vsel %vm2025, %v1922, 0
        %v2995 = vsel %vm2025, %v1924, 0
        %v2997 = vsel %vm2025, %v1926, 0
        %v2999 = vsel %vm2025, %v1928, 0
        %v3001 = vsel %vm2025, %v2010, 0
        %v3003 = vsel %vm2025, %v2012, 0
        %v3005 = vsel %vm2025, %v2014, 0
        %v3007 = vsel %vm2025, %v2016, 0
        %v3009 = vsel %vm2025, %v2018, 0
        %v3011 = vsel %vm2025, %v2020, 0
        %v3013 = vsel %vm2025, %v2022, 0
        %v3015 = vsel %vm2025, %v2024, 0
        %3017 = vmatprep.subr.mxu0 0.0
        %3018 = vmatpush1.xpose.msra.mxu0 0.0
        %3019 = vmatprep.subr.mxu0 0.0
        %3020 = vmatpush1.xpose.msra.mxu0 0.0
        %3021 = vmatprep.subr.mxu0 0.0
        %3022 = vmatpush1.xpose.msra.mxu0 0.0
        %3023 = vmatprep.subr.mxu0 0.0
        %3024 = vmatpush1.xpose.msra.mxu0 0.0
        %3025 = vmatprep.subr.mxu0 0.0
        %3026 = vmatpush1.xpose.msra.mxu0 0.0
        %3027 = vmatprep.subr.mxu0 0.0
        %3028 = vmatpush1.xpose.msra.mxu0 0.0
        %3029 = vmatprep.subr.mxu0 0.0
        %3030 = vmatpush1.xpose.msra.mxu0 0.0
        %3031 = vmatprep.subr.mxu0 0.0
        %3032 = vmatpush1.xpose.msra.mxu0 0.0
        %3033 = vmatprep.subr.mxu0 0.0
        %3034 = vmatpush1.xpose.msra.mxu0 %v3015
        %3035 = vmatprep.subr.mxu0 0.0
        %3036 = vmatpush1.xpose.msra.mxu0 %v3013
        %3037 = vmatprep.subr.mxu0 0.0
        %3038 = vmatpush1.xpose.msra.mxu0 %v3011
        %3039 = vmatprep.subr.mxu0 0.0
        %3040 = vmatpush1.xpose.msra.mxu0 %v3009
        %3041 = vmatprep.subr.mxu0 0.0
        %3042 = vmatpush1.xpose.msra.mxu0 %v3007
        %3043 = vmatprep.subr.mxu0 0.0
        %3044 = vmatpush1.xpose.msra.mxu0 %v3005
        %3045 = vmatprep.subr.mxu0 0.0
        %3046 = vmatpush1.xpose.msra.mxu0 %v3003
        %3047 = vmatprep.subr.mxu0 0.0
        %3048 = vmatpush1.xpose.msra.mxu0 %v3001
        %3049 = vmatprep.subr.mxu0 0.0
        %3050 = vmatpush2.xpose.msra.mxu0 0.0
        %3051 = vmatprep.subr.mxu0 0.0
        %3052 = vmatpush2.xpose.msra.mxu0 0.0
        %3053 = vmatprep.subr.mxu0 0.0
        %3054 = vmatpush2.xpose.msra.mxu0 0.0
        %3055 = vmatprep.subr.mxu0 0.0
        %3056 = vmatpush2.xpose.msra.mxu0 0.0
        %3057 = vmatprep.subr.mxu0 0.0
        %3058 = vmatpush2.xpose.msra.mxu0 0.0
        %3059 = vmatprep.subr.mxu0 0.0
        %3060 = vmatpush2.xpose.msra.mxu0 0.0
        %3061 = vmatprep.subr.mxu0 0.0
        %3062 = vmatpush2.xpose.msra.mxu0 0.0
        %3063 = vmatprep.subr.mxu0 0.0
        %3064 = vmatpush2.xpose.msra.mxu0 0.0
        %3065 = vmatprep.subr.mxu0 0.0
        %3066 = vmatpush2.xpose.msra.mxu0 0.0
        %3067 = vmatprep.subr.mxu0 0.0
        %3068 = vmatpush2.xpose.msra.mxu0 0.0
        %3069 = vmatprep.subr.mxu0 0.0
        %3070 = vmatpush2.xpose.msra.mxu0 0.0
        %3071 = vmatprep.subr.mxu0 0.0
        %3072 = vmatpush2.xpose.msra.mxu0 0.0
        %3073 = vmatprep.subr.mxu0 0.0
        %3074 = vmatpush2.xpose.msra.mxu0 0.0
        %3075 = vmatprep.subr.mxu0 0.0
        %3076 = vmatpush2.xpose.msra.mxu0 0.0
        %3077 = vmatprep.subr.mxu0 0.0
        %3078 = vmatpush2.xpose.msra.mxu0 0.0
        %3079 = vmatprep.subr.mxu0 0.0
        %3080 = vmatpush2.xpose.msra.mxu0 0.0
        %3081 = vmatprep.mubr.f32.mxu0 0.0
        %3082 = vmatmul.mubr.f32.gmra.mxu0 %v2985
        %v3083 = vpop.f32.mrf.mxu0
        %v3084 = vadd.f32 0.0, %v3083
        %v3085 = vpop.f32.mrf.mxu0
        %3086 = vmatprep.mubr.f32.mxu0 0.0
        %3087 = vmatmul.mubr.f32.gmra.mxu0 %v2987
        %v3088 = vpop.f32.mrf.mxu0
        %v3089 = vadd.f32 0.0, %v3088
        %v3090 = vpop.f32.mrf.mxu0
        %3091 = vmatprep.mubr.f32.mxu0 0.0
        %3092 = vmatmul.mubr.f32.gmra.mxu0 %v2989
        %v3093 = vpop.f32.mrf.mxu0
        %v3094 = vadd.f32 0.0, %v3093
        %v3095 = vpop.f32.mrf.mxu0
        %3096 = vmatprep.mubr.f32.mxu0 0.0
        %3097 = vmatmul.mubr.f32.gmra.mxu0 %v2991
        %v3098 = vpop.f32.mrf.mxu0
        %v3099 = vadd.f32 0.0, %v3098
        %v3100 = vpop.f32.mrf.mxu0
        %3101 = vmatprep.mubr.f32.mxu0 0.0
        %3102 = vmatmul.mubr.f32.gmra.mxu0 %v2993
        %v3103 = vpop.f32.mrf.mxu0
        %v3104 = vadd.f32 0.0, %v3103
        %v3105 = vpop.f32.mrf.mxu0
        %3106 = vmatprep.mubr.f32.mxu0 0.0
        %3107 = vmatmul.mubr.f32.gmra.mxu0 %v2995
        %v3108 = vpop.f32.mrf.mxu0
        %v3109 = vadd.f32 0.0, %v3108
        %v3110 = vpop.f32.mrf.mxu0
        %3111 = vmatprep.mubr.f32.mxu0 0.0
        %3112 = vmatmul.mubr.f32.gmra.mxu0 %v2997
        %v3113 = vpop.f32.mrf.mxu0
        %v3114 = vadd.f32 0.0, %v3113
        %v3115 = vpop.f32.mrf.mxu0
        %3116 = vmatprep.mubr.f32.mxu0 0.0
        %3117 = vmatmul.mubr.f32.gmra.mxu0 %v2999
        %v3118 = vpop.f32.mrf.mxu0
        %v3119 = vadd.f32 0.0, %v3118
        %v3120 = vpop.f32.mrf.mxu0
        %3121 = vdwg.mxu0
        %v3122 = vmul.f32 %v2125, 0.125
        %v3123 = vmul.f32 %v2130, 0.125
        %v3124 = vmul.f32 %v2135, 0.125
        %v3125 = vmul.f32 %v2140, 0.125
        %v3126 = vmul.f32 %v2145, 0.125
        %v3127 = vmul.f32 %v2150, 0.125
        %v3128 = vmul.f32 %v2155, 0.125
        %v3129 = vmul.f32 %v2160, 0.125
        %v3130 = vmul.f32 %v2262, 0.125
        %v3131 = vmul.f32 %v2267, 0.125
        %v3132 = vmul.f32 %v2272, 0.125
        %v3133 = vmul.f32 %v2277, 0.125
        %v3134 = vmul.f32 %v2282, 0.125
        %v3135 = vmul.f32 %v2287, 0.125
        %v3136 = vmul.f32 %v2292, 0.125
        %v3137 = vmul.f32 %v2297, 0.125
        %v3138 = vmul.f32 %v2399, 0.125
        %v3139 = vmul.f32 %v2404, 0.125
        %v3140 = vmul.f32 %v2409, 0.125
        %v3141 = vmul.f32 %v2414, 0.125
        %v3142 = vmul.f32 %v2419, 0.125
        %v3143 = vmul.f32 %v2424, 0.125
        %v3144 = vmul.f32 %v2429, 0.125
        %v3145 = vmul.f32 %v2434, 0.125
        %v3146 = vmul.f32 %v2536, 0.125
        %v3147 = vmul.f32 %v2541, 0.125
        %v3148 = vmul.f32 %v2546, 0.125
        %v3149 = vmul.f32 %v2551, 0.125
        %v3150 = vmul.f32 %v2556, 0.125
        %v3151 = vmul.f32 %v2561, 0.125
        %v3152 = vmul.f32 %v2566, 0.125
        %v3153 = vmul.f32 %v2571, 0.125
        %v3154 = vmul.f32 %v2673, 0.125
        %v3155 = vmul.f32 %v2678, 0.125
        %v3156 = vmul.f32 %v2683, 0.125
        %v3157 = vmul.f32 %v2688, 0.125
        %v3158 = vmul.f32 %v2693, 0.125
        %v3159 = vmul.f32 %v2698, 0.125
        %v3160 = vmul.f32 %v2703, 0.125
        %v3161 = vmul.f32 %v2708, 0.125
        %v3162 = vmul.f32 %v2810, 0.125
        %v3163 = vmul.f32 %v2815, 0.125
        %v3164 = vmul.f32 %v2820, 0.125
        %v3165 = vmul.f32 %v2825, 0.125
        %v3166 = vmul.f32 %v2830, 0.125
        %v3167 = vmul.f32 %v2835, 0.125
        %v3168 = vmul.f32 %v2840, 0.125
        %v3169 = vmul.f32 %v2845, 0.125
        %v3170 = vmul.f32 %v2947, 0.125
        %v3171 = vmul.f32 %v2952, 0.125
        %v3172 = vmul.f32 %v2957, 0.125
        %v3173 = vmul.f32 %v2962, 0.125
        %v3174 = vmul.f32 %v2967, 0.125
        %v3175 = vmul.f32 %v2972, 0.125
        %v3176 = vmul.f32 %v2977, 0.125
        %v3177 = vmul.f32 %v2982, 0.125
        %v3178 = vmul.f32 %v3084, 0.125
        %v3179 = vmul.f32 %v3089, 0.125
        %v3180 = vmul.f32 %v3094, 0.125
        %v3181 = vmul.f32 %v3099, 0.125
        %v3182 = vmul.f32 %v3104, 0.125
        %v3183 = vmul.f32 %v3109, 0.125
        %v3184 = vmul.f32 %v3114, 0.125
        %v3185 = vmul.f32 %v3119, 0.125
        %v3186 = vsel %vm2025, %v3122, -inf
        %3187 = vmax.xlane.f32.xlu0 %v3186
        %v3188 = vpop.xlane.xlu0 %3187
        %v3189 = vsel %vm2025, %v3123, -inf
        %3190 = vmax.xlane.f32.xlu0 %v3189
        %v3191 = vpop.xlane.xlu0 %3190
        %v3192 = vsel %vm2025, %v3124, -inf
        %3193 = vmax.xlane.f32.xlu0 %v3192
        %v3194 = vpop.xlane.xlu0 %3193
        %v3195 = vsel %vm2025, %v3125, -inf
        %3196 = vmax.xlane.f32.xlu0 %v3195
        %v3197 = vpop.xlane.xlu0 %3196
        %v3198 = vsel %vm2025, %v3126, -inf
        %3199 = vmax.xlane.f32.xlu0 %v3198
        %v3200 = vpop.xlane.xlu0 %3199
        %v3201 = vsel %vm2025, %v3127, -inf
        %3202 = vmax.xlane.f32.xlu0 %v3201
        %v3203 = vpop.xlane.xlu0 %3202
        %v3204 = vsel %vm2025, %v3128, -inf
        %3205 = vmax.xlane.f32.xlu0 %v3204
        %v3206 = vpop.xlane.xlu0 %3205
        %v3207 = vsel %vm2025, %v3129, -inf
        %3208 = vmax.xlane.f32.xlu0 %v3207
        %v3209 = vpop.xlane.xlu0 %3208
        %v3210 = vsel %vm2025, %v3130, -inf
        %3211 = vmax.xlane.f32.xlu0 %v3210
        %v3212 = vpop.xlane.xlu0 %3211
        %v3213 = vsel %vm2025, %v3131, -inf
        %3214 = vmax.xlane.f32.xlu0 %v3213
        %v3215 = vpop.xlane.xlu0 %3214
        %v3216 = vsel %vm2025, %v3132, -inf
        %3217 = vmax.xlane.f32.xlu0 %v3216
        %v3218 = vpop.xlane.xlu0 %3217
        %v3219 = vsel %vm2025, %v3133, -inf
        %3220 = vmax.xlane.f32.xlu0 %v3219
        %v3221 = vpop.xlane.xlu0 %3220
        %v3222 = vsel %vm2025, %v3134, -inf
        %3223 = vmax.xlane.f32.xlu0 %v3222
        %v3224 = vpop.xlane.xlu0 %3223
        %v3225 = vsel %vm2025, %v3135, -inf
        %3226 = vmax.xlane.f32.xlu0 %v3225
        %v3227 = vpop.xlane.xlu0 %3226
        %v3228 = vsel %vm2025, %v3136, -inf
        %3229 = vmax.xlane.f32.xlu0 %v3228
        %v3230 = vpop.xlane.xlu0 %3229
        %v3231 = vsel %vm2025, %v3137, -inf
        %3232 = vmax.xlane.f32.xlu0 %v3231
        %v3233 = vpop.xlane.xlu0 %3232
        %v3234 = vsel %vm2025, %v3138, -inf
        %3235 = vmax.xlane.f32.xlu0 %v3234
        %v3236 = vpop.xlane.xlu0 %3235
        %v3237 = vsel %vm2025, %v3139, -inf
        %3238 = vmax.xlane.f32.xlu0 %v3237
        %v3239 = vpop.xlane.xlu0 %3238
        %v3240 = vsel %vm2025, %v3140, -inf
        %3241 = vmax.xlane.f32.xlu0 %v3240
        %v3242 = vpop.xlane.xlu0 %3241
        %v3243 = vsel %vm2025, %v3141, -inf
        %3244 = vmax.xlane.f32.xlu0 %v3243
        %v3245 = vpop.xlane.xlu0 %3244
        %v3246 = vsel %vm2025, %v3142, -inf
        %3247 = vmax.xlane.f32.xlu0 %v3246
        %v3248 = vpop.xlane.xlu0 %3247
        %v3249 = vsel %vm2025, %v3143, -inf
        %3250 = vmax.xlane.f32.xlu0 %v3249
        %v3251 = vpop.xlane.xlu0 %3250
        %v3252 = vsel %vm2025, %v3144, -inf
        %3253 = vmax.xlane.f32.xlu0 %v3252
        %v3254 = vpop.xlane.xlu0 %3253
        %v3255 = vsel %vm2025, %v3145, -inf
        %3256 = vmax.xlane.f32.xlu0 %v3255
        %v3257 = vpop.xlane.xlu0 %3256
        %v3258 = vsel %vm2025, %v3146, -inf
        %3259 = vmax.xlane.f32.xlu0 %v3258
        %v3260 = vpop.xlane.xlu0 %3259
        %v3261 = vsel %vm2025, %v3147, -inf
        %3262 = vmax.xlane.f32.xlu0 %v3261
        %v3263 = vpop.xlane.xlu0 %3262
        %v3264 = vsel %vm2025, %v3148, -inf
        %3265 = vmax.xlane.f32.xlu0 %v3264
        %v3266 = vpop.xlane.xlu0 %3265
        %v3267 = vsel %vm2025, %v3149, -inf
        %3268 = vmax.xlane.f32.xlu0 %v3267
        %v3269 = vpop.xlane.xlu0 %3268
        %v3270 = vsel %vm2025, %v3150, -inf
        %3271 = vmax.xlane.f32.xlu0 %v3270
        %v3272 = vpop.xlane.xlu0 %3271
        %v3273 = vsel %vm2025, %v3151, -inf
        %3274 = vmax.xlane.f32.xlu0 %v3273
        %v3275 = vpop.xlane.xlu0 %3274
        %v3276 = vsel %vm2025, %v3152, -inf
        %3277 = vmax.xlane.f32.xlu0 %v3276
        %v3278 = vpop.xlane.xlu0 %3277
        %v3279 = vsel %vm2025, %v3153, -inf
        %3280 = vmax.xlane.f32.xlu0 %v3279
        %v3281 = vpop.xlane.xlu0 %3280
        %v3282 = vsel %vm2025, %v3154, -inf
        %3283 = vmax.xlane.f32.xlu0 %v3282
        %v3284 = vpop.xlane.xlu0 %3283
        %v3285 = vsel %vm2025, %v3155, -inf
        %3286 = vmax.xlane.f32.xlu0 %v3285
        %v3287 = vpop.xlane.xlu0 %3286
        %v3288 = vsel %vm2025, %v3156, -inf
        %3289 = vmax.xlane.f32.xlu0 %v3288
        %v3290 = vpop.xlane.xlu0 %3289
        %v3291 = vsel %vm2025, %v3157, -inf
        %3292 = vmax.xlane.f32.xlu0 %v3291
        %v3293 = vpop.xlane.xlu0 %3292
        %v3294 = vsel %vm2025, %v3158, -inf
        %3295 = vmax.xlane.f32.xlu0 %v3294
        %v3296 = vpop.xlane.xlu0 %3295
        %v3297 = vsel %vm2025, %v3159, -inf
        %3298 = vmax.xlane.f32.xlu0 %v3297
        %v3299 = vpop.xlane.xlu0 %3298
        %v3300 = vsel %vm2025, %v3160, -inf
        %3301 = vmax.xlane.f32.xlu0 %v3300
        %v3302 = vpop.xlane.xlu0 %3301
        %v3303 = vsel %vm2025, %v3161, -inf
        %3304 = vmax.xlane.f32.xlu0 %v3303
        %v3305 = vpop.xlane.xlu0 %3304
        %v3306 = vsel %vm2025, %v3162, -inf
        %3307 = vmax.xlane.f32.xlu0 %v3306
        %v3308 = vpop.xlane.xlu0 %3307
        %v3309 = vsel %vm2025, %v3163, -inf
        %3310 = vmax.xlane.f32.xlu0 %v3309
        %v3311 = vpop.xlane.xlu0 %3310
        %v3312 = vsel %vm2025, %v3164, -inf
        %3313 = vmax.xlane.f32.xlu0 %v3312
        %v3314 = vpop.xlane.xlu0 %3313
        %v3315 = vsel %vm2025, %v3165, -inf
        %3316 = vmax.xlane.f32.xlu0 %v3315
        %v3317 = vpop.xlane.xlu0 %3316
        %v3318 = vsel %vm2025, %v3166, -inf
        %3319 = vmax.xlane.f32.xlu0 %v3318
        %v3320 = vpop.xlane.xlu0 %3319
        %v3321 = vsel %vm2025, %v3167, -inf
        %3322 = vmax.xlane.f32.xlu0 %v3321
        %v3323 = vpop.xlane.xlu0 %3322
        %v3324 = vsel %vm2025, %v3168, -inf
        %3325 = vmax.xlane.f32.xlu0 %v3324
        %v3326 = vpop.xlane.xlu0 %3325
        %v3327 = vsel %vm2025, %v3169, -inf
        %3328 = vmax.xlane.f32.xlu0 %v3327
        %v3329 = vpop.xlane.xlu0 %3328
        %v3330 = vsel %vm2025, %v3170, -inf
        %3331 = vmax.xlane.f32.xlu0 %v3330
        %v3332 = vpop.xlane.xlu0 %3331
        %v3333 = vsel %vm2025, %v3171, -inf
        %3334 = vmax.xlane.f32.xlu0 %v3333
        %v3335 = vpop.xlane.xlu0 %3334
        %v3336 = vsel %vm2025, %v3172, -inf
        %3337 = vmax.xlane.f32.xlu0 %v3336
        %v3338 = vpop.xlane.xlu0 %3337
        %v3339 = vsel %vm2025, %v3173, -inf
        %3340 = vmax.xlane.f32.xlu0 %v3339
        %v3341 = vpop.xlane.xlu0 %3340
        %v3342 = vsel %vm2025, %v3174, -inf
        %3343 = vmax.xlane.f32.xlu0 %v3342
        %v3344 = vpop.xlane.xlu0 %3343
        %v3345 = vsel %vm2025, %v3175, -inf
        %3346 = vmax.xlane.f32.xlu0 %v3345
        %v3347 = vpop.xlane.xlu0 %3346
        %v3348 = vsel %vm2025, %v3176, -inf
        %3349 = vmax.xlane.f32.xlu0 %v3348
        %v3350 = vpop.xlane.xlu0 %3349
        %v3351 = vsel %vm2025, %v3177, -inf
        %3352 = vmax.xlane.f32.xlu0 %v3351
        %v3353 = vpop.xlane.xlu0 %3352
        %v3354 = vsel %vm2025, %v3178, -inf
        %3355 = vmax.xlane.f32.xlu0 %v3354
        %v3356 = vpop.xlane.xlu0 %3355
        %v3357 = vsel %vm2025, %v3179, -inf
        %3358 = vmax.xlane.f32.xlu0 %v3357
        %v3359 = vpop.xlane.xlu0 %3358
        %v3360 = vsel %vm2025, %v3180, -inf
        %3361 = vmax.xlane.f32.xlu0 %v3360
        %v3362 = vpop.xlane.xlu0 %3361
        %v3363 = vsel %vm2025, %v3181, -inf
        %3364 = vmax.xlane.f32.xlu0 %v3363
        %v3365 = vpop.xlane.xlu0 %3364
        %v3366 = vsel %vm2025, %v3182, -inf
        %3367 = vmax.xlane.f32.xlu0 %v3366
        %v3368 = vpop.xlane.xlu0 %3367
        %v3369 = vsel %vm2025, %v3183, -inf
        %3370 = vmax.xlane.f32.xlu0 %v3369
        %v3371 = vpop.xlane.xlu0 %3370
        %v3372 = vsel %vm2025, %v3184, -inf
        %3373 = vmax.xlane.f32.xlu0 %v3372
        %v3374 = vpop.xlane.xlu0 %3373
        %v3375 = vsel %vm2025, %v3185, -inf
        %3376 = vmax.xlane.f32.xlu0 %v3375
        %v3377 = vpop.xlane.xlu0 %3376
        %v3378 = vsub.f32 %v3122, %v3188
        %v3379 = vsub.f32 %v3123, %v3191
        %v3380 = vsub.f32 %v3124, %v3194
        %v3381 = vsub.f32 %v3125, %v3197
        %v3382 = vsub.f32 %v3126, %v3200
        %v3383 = vsub.f32 %v3127, %v3203
        %v3384 = vsub.f32 %v3128, %v3206
        %v3385 = vsub.f32 %v3129, %v3209
        %v3386 = vsub.f32 %v3130, %v3212
        %v3387 = vsub.f32 %v3131, %v3215
        %v3388 = vsub.f32 %v3132, %v3218
        %v3389 = vsub.f32 %v3133, %v3221
        %v3390 = vsub.f32 %v3134, %v3224
        %v3391 = vsub.f32 %v3135, %v3227
        %v3392 = vsub.f32 %v3136, %v3230
        %v3393 = vsub.f32 %v3137, %v3233
        %v3394 = vsub.f32 %v3138, %v3236
        %v3395 = vsub.f32 %v3139, %v3239
        %v3396 = vsub.f32 %v3140, %v3242
        %v3397 = vsub.f32 %v3141, %v3245
        %v3398 = vsub.f32 %v3142, %v3248
        %v3399 = vsub.f32 %v3143, %v3251
        %v3400 = vsub.f32 %v3144, %v3254
        %v3401 = vsub.f32 %v3145, %v3257
        %v3402 = vsub.f32 %v3146, %v3260
        %v3403 = vsub.f32 %v3147, %v3263
        %v3404 = vsub.f32 %v3148, %v3266
        %v3405 = vsub.f32 %v3149, %v3269
        %v3406 = vsub.f32 %v3150, %v3272
        %v3407 = vsub.f32 %v3151, %v3275
        %v3408 = vsub.f32 %v3152, %v3278
        %v3409 = vsub.f32 %v3153, %v3281
        %v3410 = vsub.f32 %v3154, %v3284
        %v3411 = vsub.f32 %v3155, %v3287
        %v3412 = vsub.f32 %v3156, %v3290
        %v3413 = vsub.f32 %v3157, %v3293
        %v3414 = vsub.f32 %v3158, %v3296
        %v3415 = vsub.f32 %v3159, %v3299
        %v3416 = vsub.f32 %v3160, %v3302
        %v3417 = vsub.f32 %v3161, %v3305
        %v3418 = vsub.f32 %v3162, %v3308
        %v3419 = vsub.f32 %v3163, %v3311
        %v3420 = vsub.f32 %v3164, %v3314
        %v3421 = vsub.f32 %v3165, %v3317
        %v3422 = vsub.f32 %v3166, %v3320
        %v3423 = vsub.f32 %v3167, %v3323
        %v3424 = vsub.f32 %v3168, %v3326
        %v3425 = vsub.f32 %v3169, %v3329
        %v3426 = vsub.f32 %v3170, %v3332
        %v3427 = vsub.f32 %v3171, %v3335
        %v3428 = vsub.f32 %v3172, %v3338
        %v3429 = vsub.f32 %v3173, %v3341
        %v3430 = vsub.f32 %v3174, %v3344
        %v3431 = vsub.f32 %v3175, %v3347
        %v3432 = vsub.f32 %v3176, %v3350
        %v3433 = vsub.f32 %v3177, %v3353
        %v3434 = vsub.f32 %v3178, %v3356
        %v3435 = vsub.f32 %v3179, %v3359
        %v3436 = vsub.f32 %v3180, %v3362
        %v3437 = vsub.f32 %v3181, %v3365
        %v3438 = vsub.f32 %v3182, %v3368
        %v3439 = vsub.f32 %v3183, %v3371
        %v3440 = vsub.f32 %v3184, %v3374
        %v3441 = vsub.f32 %v3185, %v3377
        %v3442 = vmul.f32 %v3378, 1.442695
        %v3443 = vpow.pop %v3442
        %v3444 = vmul.f32 %v3379, 1.442695
        %v3445 = vpow.pop %v3444
        %v3446 = vmul.f32 %v3380, 1.442695
        %v3447 = vpow.pop %v3446
        %v3448 = vmul.f32 %v3381, 1.442695
        %v3449 = vpow.pop %v3448
        %v3450 = vmul.f32 %v3382, 1.442695
        %v3451 = vpow.pop %v3450
        %v3452 = vmul.f32 %v3383, 1.442695
        %v3453 = vpow.pop %v3452
        %v3454 = vmul.f32 %v3384, 1.442695
        %v3455 = vpow.pop %v3454
        %v3456 = vmul.f32 %v3385, 1.442695
        %v3457 = vpow.pop %v3456
        %v3458 = vmul.f32 %v3386, 1.442695
        %v3459 = vpow.pop %v3458
        %v3460 = vmul.f32 %v3387, 1.442695
        %v3461 = vpow.pop %v3460
        %v3462 = vmul.f32 %v3388, 1.442695
        %v3463 = vpow.pop %v3462
        %v3464 = vmul.f32 %v3389, 1.442695
        %v3465 = vpow.pop %v3464
        %v3466 = vmul.f32 %v3390, 1.442695
        %v3467 = vpow.pop %v3466
        %v3468 = vmul.f32 %v3391, 1.442695
        %v3469 = vpow.pop %v3468
        %v3470 = vmul.f32 %v3392, 1.442695
        %v3471 = vpow.pop %v3470
        %v3472 = vmul.f32 %v3393, 1.442695
        %v3473 = vpow.pop %v3472
        %v3474 = vmul.f32 %v3394, 1.442695
        %v3475 = vpow.pop %v3474
        %v3476 = vmul.f32 %v3395, 1.442695
        %v3477 = vpow.pop %v3476
        %v3478 = vmul.f32 %v3396, 1.442695
        %v3479 = vpow.pop %v3478
        %v3480 = vmul.f32 %v3397, 1.442695
        %v3481 = vpow.pop %v3480
        %v3482 = vmul.f32 %v3398, 1.442695
        %v3483 = vpow.pop %v3482
        %v3484 = vmul.f32 %v3399, 1.442695
        %v3485 = vpow.pop %v3484
        %v3486 = vmul.f32 %v3400, 1.442695
        %v3487 = vpow.pop %v3486
        %v3488 = vmul.f32 %v3401, 1.442695
        %v3489 = vpow.pop %v3488
        %v3490 = vmul.f32 %v3402, 1.442695
        %v3491 = vpow.pop %v3490
        %v3492 = vmul.f32 %v3403, 1.442695
        %v3493 = vpow.pop %v3492
        %v3494 = vmul.f32 %v3404, 1.442695
        %v3495 = vpow.pop %v3494
        %v3496 = vmul.f32 %v3405, 1.442695
        %v3497 = vpow.pop %v3496
        %v3498 = vmul.f32 %v3406, 1.442695
        %v3499 = vpow.pop %v3498
        %v3500 = vmul.f32 %v3407, 1.442695
        %v3501 = vpow.pop %v3500
        %v3502 = vmul.f32 %v3408, 1.442695
        %v3503 = vpow.pop %v3502
        %v3504 = vmul.f32 %v3409, 1.442695
        %v3505 = vpow.pop %v3504
        %v3506 = vmul.f32 %v3410, 1.442695
        %v3507 = vpow.pop %v3506
        %v3508 = vmul.f32 %v3411, 1.442695
        %v3509 = vpow.pop %v3508
        %v3510 = vmul.f32 %v3412, 1.442695
        %v3511 = vpow.pop %v3510
        %v3512 = vmul.f32 %v3413, 1.442695
        %v3513 = vpow.pop %v3512
        %v3514 = vmul.f32 %v3414, 1.442695
        %v3515 = vpow.pop %v3514
        %v3516 = vmul.f32 %v3415, 1.442695
        %v3517 = vpow.pop %v3516
        %v3518 = vmul.f32 %v3416, 1.442695
        %v3519 = vpow.pop %v3518
        %v3520 = vmul.f32 %v3417, 1.442695
        %v3521 = vpow.pop %v3520
        %v3522 = vmul.f32 %v3418, 1.442695
        %v3523 = vpow.pop %v3522
        %v3524 = vmul.f32 %v3419, 1.442695
        %v3525 = vpow.pop %v3524
        %v3526 = vmul.f32 %v3420, 1.442695
        %v3527 = vpow.pop %v3526
        %v3528 = vmul.f32 %v3421, 1.442695
        %v3529 = vpow.pop %v3528
        %v3530 = vmul.f32 %v3422, 1.442695
        %v3531 = vpow.pop %v3530
        %v3532 = vmul.f32 %v3423, 1.442695
        %v3533 = vpow.pop %v3532
        %v3534 = vmul.f32 %v3424, 1.442695
        %v3535 = vpow.pop %v3534
        %v3536 = vmul.f32 %v3425, 1.442695
        %v3537 = vpow.pop %v3536
        %v3538 = vmul.f32 %v3426, 1.442695
        %v3539 = vpow.pop %v3538
        %v3540 = vmul.f32 %v3427, 1.442695
        %v3541 = vpow.pop %v3540
        %v3542 = vmul.f32 %v3428, 1.442695
        %v3543 = vpow.pop %v3542
        %v3544 = vmul.f32 %v3429, 1.442695
        %v3545 = vpow.pop %v3544
        %v3546 = vmul.f32 %v3430, 1.442695
        %v3547 = vpow.pop %v3546
        %v3548 = vmul.f32 %v3431, 1.442695
        %v3549 = vpow.pop %v3548
        %v3550 = vmul.f32 %v3432, 1.442695
        %v3551 = vpow.pop %v3550
        %v3552 = vmul.f32 %v3433, 1.442695
        %v3553 = vpow.pop %v3552
        %v3554 = vmul.f32 %v3434, 1.442695
        %v3555 = vpow.pop %v3554
        %v3556 = vmul.f32 %v3435, 1.442695
        %v3557 = vpow.pop %v3556
        %v3558 = vmul.f32 %v3436, 1.442695
        %v3559 = vpow.pop %v3558
        %v3560 = vmul.f32 %v3437, 1.442695
        %v3561 = vpow.pop %v3560
        %v3562 = vmul.f32 %v3438, 1.442695
        %v3563 = vpow.pop %v3562
        %v3564 = vmul.f32 %v3439, 1.442695
        %v3565 = vpow.pop %v3564
        %v3566 = vmul.f32 %v3440, 1.442695
        %v3567 = vpow.pop %v3566
        %v3568 = vmul.f32 %v3441, 1.442695
        %v3569 = vpow.pop %v3568
        %v3570 = vsel %vm2025, %v3443, 0.0
        %3571 = vadd.xlane.f32.xlu0 %v3570
        %v3572 = vpop.xlane.xlu0 %3571
        %v3573 = vsel %vm2025, %v3445, 0.0
        %3574 = vadd.xlane.f32.xlu0 %v3573
        %v3575 = vpop.xlane.xlu0 %3574
        %v3576 = vsel %vm2025, %v3447, 0.0
        %3577 = vadd.xlane.f32.xlu0 %v3576
        %v3578 = vpop.xlane.xlu0 %3577
        %v3579 = vsel %vm2025, %v3449, 0.0
        %3580 = vadd.xlane.f32.xlu0 %v3579
        %v3581 = vpop.xlane.xlu0 %3580
        %v3582 = vsel %vm2025, %v3451, 0.0
        %3583 = vadd.xlane.f32.xlu0 %v3582
        %v3584 = vpop.xlane.xlu0 %3583
        %v3585 = vsel %vm2025, %v3453, 0.0
        %3586 = vadd.xlane.f32.xlu0 %v3585
        %v3587 = vpop.xlane.xlu0 %3586
        %v3588 = vsel %vm2025, %v3455, 0.0
        %3589 = vadd.xlane.f32.xlu0 %v3588
        %v3590 = vpop.xlane.xlu0 %3589
        %v3591 = vsel %vm2025, %v3457, 0.0
        %3592 = vadd.xlane.f32.xlu0 %v3591
        %v3593 = vpop.xlane.xlu0 %3592
        %v3594 = vsel %vm2025, %v3459, 0.0
        %3595 = vadd.xlane.f32.xlu0 %v3594
        %v3596 = vpop.xlane.xlu0 %3595
        %v3597 = vsel %vm2025, %v3461, 0.0
        %3598 = vadd.xlane.f32.xlu0 %v3597
        %v3599 = vpop.xlane.xlu0 %3598
        %v3600 = vsel %vm2025, %v3463, 0.0
        %3601 = vadd.xlane.f32.xlu0 %v3600
        %v3602 = vpop.xlane.xlu0 %3601
        %v3603 = vsel %vm2025, %v3465, 0.0
        %3604 = vadd.xlane.f32.xlu0 %v3603
        %v3605 = vpop.xlane.xlu0 %3604
        %v3606 = vsel %vm2025, %v3467, 0.0
        %3607 = vadd.xlane.f32.xlu0 %v3606
        %v3608 = vpop.xlane.xlu0 %3607
        %v3609 = vsel %vm2025, %v3469, 0.0
        %3610 = vadd.xlane.f32.xlu0 %v3609
        %v3611 = vpop.xlane.xlu0 %3610
        %v3612 = vsel %vm2025, %v3471, 0.0
        %3613 = vadd.xlane.f32.xlu0 %v3612
        %v3614 = vpop.xlane.xlu0 %3613
        %v3615 = vsel %vm2025, %v3473, 0.0
        %3616 = vadd.xlane.f32.xlu0 %v3615
        %v3617 = vpop.xlane.xlu0 %3616
        %v3618 = vsel %vm2025, %v3475, 0.0
        %3619 = vadd.xlane.f32.xlu0 %v3618
        %v3620 = vpop.xlane.xlu0 %3619
        %v3621 = vsel %vm2025, %v3477, 0.0
        %3622 = vadd.xlane.f32.xlu0 %v3621
        %v3623 = vpop.xlane.xlu0 %3622
        %v3624 = vsel %vm2025, %v3479, 0.0
        %3625 = vadd.xlane.f32.xlu0 %v3624
        %v3626 = vpop.xlane.xlu0 %3625
        %v3627 = vsel %vm2025, %v3481, 0.0
        %3628 = vadd.xlane.f32.xlu0 %v3627
        %v3629 = vpop.xlane.xlu0 %3628
        %v3630 = vsel %vm2025, %v3483, 0.0
        %3631 = vadd.xlane.f32.xlu0 %v3630
        %v3632 = vpop.xlane.xlu0 %3631
        %v3633 = vsel %vm2025, %v3485, 0.0
        %3634 = vadd.xlane.f32.xlu0 %v3633
        %v3635 = vpop.xlane.xlu0 %3634
        %v3636 = vsel %vm2025, %v3487, 0.0
        %3637 = vadd.xlane.f32.xlu0 %v3636
        %v3638 = vpop.xlane.xlu0 %3637
        %v3639 = vsel %vm2025, %v3489, 0.0
        %3640 = vadd.xlane.f32.xlu0 %v3639
        %v3641 = vpop.xlane.xlu0 %3640
        %v3642 = vsel %vm2025, %v3491, 0.0
        %3643 = vadd.xlane.f32.xlu0 %v3642
        %v3644 = vpop.xlane.xlu0 %3643
        %v3645 = vsel %vm2025, %v3493, 0.0
        %3646 = vadd.xlane.f32.xlu0 %v3645
        %v3647 = vpop.xlane.xlu0 %3646
        %v3648 = vsel %vm2025, %v3495, 0.0
        %3649 = vadd.xlane.f32.xlu0 %v3648
        %v3650 = vpop.xlane.xlu0 %3649
        %v3651 = vsel %vm2025, %v3497, 0.0
        %3652 = vadd.xlane.f32.xlu0 %v3651
        %v3653 = vpop.xlane.xlu0 %3652
        %v3654 = vsel %vm2025, %v3499, 0.0
        %3655 = vadd.xlane.f32.xlu0 %v3654
        %v3656 = vpop.xlane.xlu0 %3655
        %v3657 = vsel %vm2025, %v3501, 0.0
        %3658 = vadd.xlane.f32.xlu0 %v3657
        %v3659 = vpop.xlane.xlu0 %3658
        %v3660 = vsel %vm2025, %v3503, 0.0
        %3661 = vadd.xlane.f32.xlu0 %v3660
        %v3662 = vpop.xlane.xlu0 %3661
        %v3663 = vsel %vm2025, %v3505, 0.0
        %3664 = vadd.xlane.f32.xlu0 %v3663
        %v3665 = vpop.xlane.xlu0 %3664
        %v3666 = vsel %vm2025, %v3507, 0.0
        %3667 = vadd.xlane.f32.xlu0 %v3666
        %v3668 = vpop.xlane.xlu0 %3667
        %v3669 = vsel %vm2025, %v3509, 0.0
        %3670 = vadd.xlane.f32.xlu0 %v3669
        %v3671 = vpop.xlane.xlu0 %3670
        %v3672 = vsel %vm2025, %v3511, 0.0
        %3673 = vadd.xlane.f32.xlu0 %v3672
        %v3674 = vpop.xlane.xlu0 %3673
        %v3675 = vsel %vm2025, %v3513, 0.0
        %3676 = vadd.xlane.f32.xlu0 %v3675
        %v3677 = vpop.xlane.xlu0 %3676
        %v3678 = vsel %vm2025, %v3515, 0.0
        %3679 = vadd.xlane.f32.xlu0 %v3678
        %v3680 = vpop.xlane.xlu0 %3679
        %v3681 = vsel %vm2025, %v3517, 0.0
        %3682 = vadd.xlane.f32.xlu0 %v3681
        %v3683 = vpop.xlane.xlu0 %3682
        %v3684 = vsel %vm2025, %v3519, 0.0
        %3685 = vadd.xlane.f32.xlu0 %v3684
        %v3686 = vpop.xlane.xlu0 %3685
        %v3687 = vsel %vm2025, %v3521, 0.0
        %3688 = vadd.xlane.f32.xlu0 %v3687
        %v3689 = vpop.xlane.xlu0 %3688
        %v3690 = vsel %vm2025, %v3523, 0.0
        %3691 = vadd.xlane.f32.xlu0 %v3690
        %v3692 = vpop.xlane.xlu0 %3691
        %v3693 = vsel %vm2025, %v3525, 0.0
        %3694 = vadd.xlane.f32.xlu0 %v3693
        %v3695 = vpop.xlane.xlu0 %3694
        %v3696 = vsel %vm2025, %v3527, 0.0
        %3697 = vadd.xlane.f32.xlu0 %v3696
        %v3698 = vpop.xlane.xlu0 %3697
        %v3699 = vsel %vm2025, %v3529, 0.0
        %3700 = vadd.xlane.f32.xlu0 %v3699
        %v3701 = vpop.xlane.xlu0 %3700
        %v3702 = vsel %vm2025, %v3531, 0.0
        %3703 = vadd.xlane.f32.xlu0 %v3702
        %v3704 = vpop.xlane.xlu0 %3703
        %v3705 = vsel %vm2025, %v3533, 0.0
        %3706 = vadd.xlane.f32.xlu0 %v3705
        %v3707 = vpop.xlane.xlu0 %3706
        %v3708 = vsel %vm2025, %v3535, 0.0
        %3709 = vadd.xlane.f32.xlu0 %v3708
        %v3710 = vpop.xlane.xlu0 %3709
        %v3711 = vsel %vm2025, %v3537, 0.0
        %3712 = vadd.xlane.f32.xlu0 %v3711
        %v3713 = vpop.xlane.xlu0 %3712
        %v3714 = vsel %vm2025, %v3539, 0.0
        %3715 = vadd.xlane.f32.xlu0 %v3714
        %v3716 = vpop.xlane.xlu0 %3715
        %v3717 = vsel %vm2025, %v3541, 0.0
        %3718 = vadd.xlane.f32.xlu0 %v3717
        %v3719 = vpop.xlane.xlu0 %3718
        %v3720 = vsel %vm2025, %v3543, 0.0
        %3721 = vadd.xlane.f32.xlu0 %v3720
        %v3722 = vpop.xlane.xlu0 %3721
        %v3723 = vsel %vm2025, %v3545, 0.0
        %3724 = vadd.xlane.f32.xlu0 %v3723
        %v3725 = vpop.xlane.xlu0 %3724
        %v3726 = vsel %vm2025, %v3547, 0.0
        %3727 = vadd.xlane.f32.xlu0 %v3726
        %v3728 = vpop.xlane.xlu0 %3727
        %v3729 = vsel %vm2025, %v3549, 0.0
        %3730 = vadd.xlane.f32.xlu0 %v3729
        %v3731 = vpop.xlane.xlu0 %3730
        %v3732 = vsel %vm2025, %v3551, 0.0
        %3733 = vadd.xlane.f32.xlu0 %v3732
        %v3734 = vpop.xlane.xlu0 %3733
        %v3735 = vsel %vm2025, %v3553, 0.0
        %3736 = vadd.xlane.f32.xlu0 %v3735
        %v3737 = vpop.xlane.xlu0 %3736
        %v3738 = vsel %vm2025, %v3555, 0.0
        %3739 = vadd.xlane.f32.xlu0 %v3738
        %v3740 = vpop.xlane.xlu0 %3739
        %v3741 = vsel %vm2025, %v3557, 0.0
        %3742 = vadd.xlane.f32.xlu0 %v3741
        %v3743 = vpop.xlane.xlu0 %3742
        %v3744 = vsel %vm2025, %v3559, 0.0
        %3745 = vadd.xlane.f32.xlu0 %v3744
        %v3746 = vpop.xlane.xlu0 %3745
        %v3747 = vsel %vm2025, %v3561, 0.0
        %3748 = vadd.xlane.f32.xlu0 %v3747
        %v3749 = vpop.xlane.xlu0 %3748
        %v3750 = vsel %vm2025, %v3563, 0.0
        %3751 = vadd.xlane.f32.xlu0 %v3750
        %v3752 = vpop.xlane.xlu0 %3751
        %v3753 = vsel %vm2025, %v3565, 0.0
        %3754 = vadd.xlane.f32.xlu0 %v3753
        %v3755 = vpop.xlane.xlu0 %3754
        %v3756 = vsel %vm2025, %v3567, 0.0
        %3757 = vadd.xlane.f32.xlu0 %v3756
        %v3758 = vpop.xlane.xlu0 %3757
        %v3759 = vsel %vm2025, %v3569, 0.0
        %3760 = vadd.xlane.f32.xlu0 %v3759
        %v3761 = vpop.xlane.xlu0 %3760
        %v3762 = vrcp.pop %v3572
        %v3763 = vrcp.pop %v3575
        %v3764 = vrcp.pop %v3578
        %v3765 = vrcp.pop %v3581
        %v3766 = vrcp.pop %v3584
        %v3767 = vrcp.pop %v3587
        %v3768 = vrcp.pop %v3590
        %v3769 = vrcp.pop %v3593
        %v3770 = vrcp.pop %v3596
        %v3771 = vrcp.pop %v3599
        %v3772 = vrcp.pop %v3602
        %v3773 = vrcp.pop %v3605
        %v3774 = vrcp.pop %v3608
        %v3775 = vrcp.pop %v3611
        %v3776 = vrcp.pop %v3614
        %v3777 = vrcp.pop %v3617
        %v3778 = vrcp.pop %v3620
        %v3779 = vrcp.pop %v3623
        %v3780 = vrcp.pop %v3626
        %v3781 = vrcp.pop %v3629
        %v3782 = vrcp.pop %v3632
        %v3783 = vrcp.pop %v3635
        %v3784 = vrcp.pop %v3638
        %v3785 = vrcp.pop %v3641
        %v3786 = vrcp.pop %v3644
        %v3787 = vrcp.pop %v3647
        %v3788 = vrcp.pop %v3650
        %v3789 = vrcp.pop %v3653
        %v3790 = vrcp.pop %v3656
        %v3791 = vrcp.pop %v3659
        %v3792 = vrcp.pop %v3662
        %v3793 = vrcp.pop %v3665
        %v3794 = vrcp.pop %v3668
        %v3795 = vrcp.pop %v3671
        %v3796 = vrcp.pop %v3674
        %v3797 = vrcp.pop %v3677
        %v3798 = vrcp.pop %v3680
        %v3799 = vrcp.pop %v3683
        %v3800 = vrcp.pop %v3686
        %v3801 = vrcp.pop %v3689
        %v3802 = vrcp.pop %v3692
        %v3803 = vrcp.pop %v3695
        %v3804 = vrcp.pop %v3698
        %v3805 = vrcp.pop %v3701
        %v3806 = vrcp.pop %v3704
        %v3807 = vrcp.pop %v3707
        %v3808 = vrcp.pop %v3710
        %v3809 = vrcp.pop %v3713
        %v3810 = vrcp.pop %v3716
        %v3811 = vrcp.pop %v3719
        %v3812 = vrcp.pop %v3722
        %v3813 = vrcp.pop %v3725
        %v3814 = vrcp.pop %v3728
        %v3815 = vrcp.pop %v3731
        %v3816 = vrcp.pop %v3734
        %v3817 = vrcp.pop %v3737
        %v3818 = vrcp.pop %v3740
        %v3819 = vrcp.pop %v3743
        %v3820 = vrcp.pop %v3746
        %v3821 = vrcp.pop %v3749
        %v3822 = vrcp.pop %v3752
        %v3823 = vrcp.pop %v3755
        %v3824 = vrcp.pop %v3758
        %v3825 = vrcp.pop %v3761
        %v3826 = vmul.f32 %v3443, %v3762
        %v3827 = vmul.f32 %v3445, %v3763
        %v3828 = vmul.f32 %v3447, %v3764
        %v3829 = vmul.f32 %v3449, %v3765
        %v3830 = vmul.f32 %v3451, %v3766
        %v3831 = vmul.f32 %v3453, %v3767
        %v3832 = vmul.f32 %v3455, %v3768
        %v3833 = vmul.f32 %v3457, %v3769
        %v3834 = vmul.f32 %v3459, %v3770
        %v3835 = vmul.f32 %v3461, %v3771
        %v3836 = vmul.f32 %v3463, %v3772
        %v3837 = vmul.f32 %v3465, %v3773
        %v3838 = vmul.f32 %v3467, %v3774
        %v3839 = vmul.f32 %v3469, %v3775
        %v3840 = vmul.f32 %v3471, %v3776
        %v3841 = vmul.f32 %v3473, %v3777
        %v3842 = vmul.f32 %v3475, %v3778
        %v3843 = vmul.f32 %v3477, %v3779
        %v3844 = vmul.f32 %v3479, %v3780
        %v3845 = vmul.f32 %v3481, %v3781
        %v3846 = vmul.f32 %v3483, %v3782
        %v3847 = vmul.f32 %v3485, %v3783
        %v3848 = vmul.f32 %v3487, %v3784
        %v3849 = vmul.f32 %v3489, %v3785
        %v3850 = vmul.f32 %v3491, %v3786
        %v3851 = vmul.f32 %v3493, %v3787
        %v3852 = vmul.f32 %v3495, %v3788
        %v3853 = vmul.f32 %v3497, %v3789
        %v3854 = vmul.f32 %v3499, %v3790
        %v3855 = vmul.f32 %v3501, %v3791
        %v3856 = vmul.f32 %v3503, %v3792
        %v3857 = vmul.f32 %v3505, %v3793
        %v3858 = vmul.f32 %v3507, %v3794
        %v3859 = vmul.f32 %v3509, %v3795
        %v3860 = vmul.f32 %v3511, %v3796
        %v3861 = vmul.f32 %v3513, %v3797
        %v3862 = vmul.f32 %v3515, %v3798
        %v3863 = vmul.f32 %v3517, %v3799
        %v3864 = vmul.f32 %v3519, %v3800
        %v3865 = vmul.f32 %v3521, %v3801
        %v3866 = vmul.f32 %v3523, %v3802
        %v3867 = vmul.f32 %v3525, %v3803
        %v3868 = vmul.f32 %v3527, %v3804
        %v3869 = vmul.f32 %v3529, %v3805
        %v3870 = vmul.f32 %v3531, %v3806
        %v3871 = vmul.f32 %v3533, %v3807
        %v3872 = vmul.f32 %v3535, %v3808
        %v3873 = vmul.f32 %v3537, %v3809
        %v3874 = vmul.f32 %v3539, %v3810
        %v3875 = vmul.f32 %v3541, %v3811
        %v3876 = vmul.f32 %v3543, %v3812
        %v3877 = vmul.f32 %v3545, %v3813
        %v3878 = vmul.f32 %v3547, %v3814
        %v3879 = vmul.f32 %v3549, %v3815
        %v3880 = vmul.f32 %v3551, %v3816
        %v3881 = vmul.f32 %v3553, %v3817
        %v3882 = vmul.f32 %v3555, %v3818
        %v3883 = vmul.f32 %v3557, %v3819
        %v3884 = vmul.f32 %v3559, %v3820
        %v3885 = vmul.f32 %v3561, %v3821
        %v3886 = vmul.f32 %v3563, %v3822
        %v3887 = vmul.f32 %v3565, %v3823
        %v3888 = vmul.f32 %v3567, %v3824
        %v3889 = vmul.f32 %v3569, %v3825
        %3898 = vrot.lane.b32.xlu0 %v3834, 64
        %v3899 = vpop.permute.xlu0 %3898
        %3900 = vrot.lane.b32.xlu0 %v3835, 64
        %v3901 = vpop.permute.xlu0 %3900
        %3902 = vrot.lane.b32.xlu0 %v3836, 64
        %v3903 = vpop.permute.xlu0 %3902
        %3904 = vrot.lane.b32.xlu0 %v3837, 64
        %v3905 = vpop.permute.xlu0 %3904
        %3906 = vrot.lane.b32.xlu0 %v3838, 64
        %v3907 = vpop.permute.xlu0 %3906
        %3908 = vrot.lane.b32.xlu0 %v3839, 64
        %v3909 = vpop.permute.xlu0 %3908
        %3910 = vrot.lane.b32.xlu0 %v3840, 64
        %v3911 = vpop.permute.xlu0 %3910
        %3912 = vrot.lane.b32.xlu0 %v3841, 64
        %v3913 = vpop.permute.xlu0 %3912
        %3930 = vrot.lane.b32.xlu0 %v3850, 64
        %v3931 = vpop.permute.xlu0 %3930
        %3932 = vrot.lane.b32.xlu0 %v3851, 64
        %v3933 = vpop.permute.xlu0 %3932
        %3934 = vrot.lane.b32.xlu0 %v3852, 64
        %v3935 = vpop.permute.xlu0 %3934
        %3936 = vrot.lane.b32.xlu0 %v3853, 64
        %v3937 = vpop.permute.xlu0 %3936
        %3938 = vrot.lane.b32.xlu0 %v3854, 64
        %v3939 = vpop.permute.xlu0 %3938
        %3940 = vrot.lane.b32.xlu0 %v3855, 64
        %v3941 = vpop.permute.xlu0 %3940
        %3942 = vrot.lane.b32.xlu0 %v3856, 64
        %v3943 = vpop.permute.xlu0 %3942
        %3944 = vrot.lane.b32.xlu0 %v3857, 64
        %v3945 = vpop.permute.xlu0 %3944
        %3962 = vrot.lane.b32.xlu0 %v3866, 64
        %v3963 = vpop.permute.xlu0 %3962
        %3964 = vrot.lane.b32.xlu0 %v3867, 64
        %v3965 = vpop.permute.xlu0 %3964
        %3966 = vrot.lane.b32.xlu0 %v3868, 64
        %v3967 = vpop.permute.xlu0 %3966
        %3968 = vrot.lane.b32.xlu0 %v3869, 64
        %v3969 = vpop.permute.xlu0 %3968
        %3970 = vrot.lane.b32.xlu0 %v3870, 64
        %v3971 = vpop.permute.xlu0 %3970
        %3972 = vrot.lane.b32.xlu0 %v3871, 64
        %v3973 = vpop.permute.xlu0 %3972
        %3974 = vrot.lane.b32.xlu0 %v3872, 64
        %v3975 = vpop.permute.xlu0 %3974
        %3976 = vrot.lane.b32.xlu0 %v3873, 64
        %v3977 = vpop.permute.xlu0 %3976
        %3994 = vrot.lane.b32.xlu0 %v3882, 64
        %v3995 = vpop.permute.xlu0 %3994
        %3996 = vrot.lane.b32.xlu0 %v3883, 64
        %v3997 = vpop.permute.xlu0 %3996
        %3998 = vrot.lane.b32.xlu0 %v3884, 64
        %v3999 = vpop.permute.xlu0 %3998
        %4000 = vrot.lane.b32.xlu0 %v3885, 64
        %v4001 = vpop.permute.xlu0 %4000
        %4002 = vrot.lane.b32.xlu0 %v3886, 64
        %v4003 = vpop.permute.xlu0 %4002
        %4004 = vrot.lane.b32.xlu0 %v3887, 64
        %v4005 = vpop.permute.xlu0 %4004
        %4006 = vrot.lane.b32.xlu0 %v3888, 64
        %v4007 = vpop.permute.xlu0 %4006
        %4008 = vrot.lane.b32.xlu0 %v3889, 64
        %v4009 = vpop.permute.xlu0 %4008
        %v4018 = vsel %vm2025, %v3826, %v3899
        %v4019 = vsel %vm2025, %v3827, %v3901
        %v4020 = vsel %vm2025, %v3828, %v3903
        %v4021 = vsel %vm2025, %v3829, %v3905
        %v4022 = vsel %vm2025, %v3830, %v3907
        %v4023 = vsel %vm2025, %v3831, %v3909
        %v4024 = vsel %vm2025, %v3832, %v3911
        %v4025 = vsel %vm2025, %v3833, %v3913
        %v4026 = vsel %vm2025, %v3842, %v3931
        %v4027 = vsel %vm2025, %v3843, %v3933
        %v4028 = vsel %vm2025, %v3844, %v3935
        %v4029 = vsel %vm2025, %v3845, %v3937
        %v4030 = vsel %vm2025, %v3846, %v3939
        %v4031 = vsel %vm2025, %v3847, %v3941
        %v4032 = vsel %vm2025, %v3848, %v3943
        %v4033 = vsel %vm2025, %v3849, %v3945
        %v4034 = vsel %vm2025, %v3858, %v3963
        %v4035 = vsel %vm2025, %v3859, %v3965
        %v4036 = vsel %vm2025, %v3860, %v3967
        %v4037 = vsel %vm2025, %v3861, %v3969
        %v4038 = vsel %vm2025, %v3862, %v3971
        %v4039 = vsel %vm2025, %v3863, %v3973
        %v4040 = vsel %vm2025, %v3864, %v3975
        %v4041 = vsel %vm2025, %v3865, %v3977
        %v4042 = vsel %vm2025, %v3874, %v3995
        %v4043 = vsel %vm2025, %v3875, %v3997
        %v4044 = vsel %vm2025, %v3876, %v3999
        %v4045 = vsel %vm2025, %v3877, %v4001
        %v4046 = vsel %vm2025, %v3878, %v4003
        %v4047 = vsel %vm2025, %v3879, %v4005
        %v4048 = vsel %vm2025, %v3880, %v4007
        %v4049 = vsel %vm2025, %v3881, %v4009
        %v4050 = vld [vmem:[#allocation10] sm:$0xff]
        %v4051 = vld [vmem:[#allocation10 + $0x8] sm:$0xff]
        %v4052 = vld [vmem:[#allocation10 + $0x10] sm:$0xff]
        %v4053 = vld [vmem:[#allocation10 + $0x18] sm:$0xff]
        %v4054 = vld [vmem:[#allocation10 + $0x20] sm:$0xff]
        %v4055 = vld [vmem:[#allocation10 + $0x28] sm:$0xff]
        %v4056 = vld [vmem:[#allocation10 + $0x30] sm:$0xff]
        %v4057 = vld [vmem:[#allocation10 + $0x38] sm:$0xff]
        %v4058 = vld [vmem:[#allocation10 + $0x40] sm:$0xff]
        %v4059 = vld [vmem:[#allocation10 + $0x48] sm:$0xff]
        %v4060 = vld [vmem:[#allocation10 + $0x50] sm:$0xff]
        %v4061 = vld [vmem:[#allocation10 + $0x58] sm:$0xff]
        %v4062 = vld [vmem:[#allocation10 + $0x60] sm:$0xff]
        %v4063 = vld [vmem:[#allocation10 + $0x68] sm:$0xff]
        %v4064 = vld [vmem:[#allocation10 + $0x70] sm:$0xff]
        %v4065 = vld [vmem:[#allocation10 + $0x78] sm:$0xff]
        %v4066 = vld [vmem:[#allocation10 + $0x80] sm:$0xff]
        %v4067 = vld [vmem:[#allocation10 + $0x88] sm:$0xff]
        %v4068 = vld [vmem:[#allocation10 + $0x90] sm:$0xff]
        %v4069 = vld [vmem:[#allocation10 + $0x98] sm:$0xff]
        %v4070 = vld [vmem:[#allocation10 + $0xa0] sm:$0xff]
        %v4071 = vld [vmem:[#allocation10 + $0xa8] sm:$0xff]
        %v4072 = vld [vmem:[#allocation10 + $0xb0] sm:$0xff]
        %v4073 = vld [vmem:[#allocation10 + $0xb8] sm:$0xff]
        %v4074 = vld [vmem:[#allocation10 + $0xc0] sm:$0xff]
        %v4075 = vld [vmem:[#allocation10 + $0xc8] sm:$0xff]
        %v4076 = vld [vmem:[#allocation10 + $0xd0] sm:$0xff]
        %v4077 = vld [vmem:[#allocation10 + $0xd8] sm:$0xff]
        %v4078 = vld [vmem:[#allocation10 + $0xe0] sm:$0xff]
        %v4079 = vld [vmem:[#allocation10 + $0xe8] sm:$0xff]
        %v4080 = vld [vmem:[#allocation10 + $0xf0] sm:$0xff]
        %v4081 = vld [vmem:[#allocation10 + $0xf8] sm:$0xff]
        %v4082 = vld [vmem:[#allocation10 + $0x100] sm:$0xff]
        %v4083 = vld [vmem:[#allocation10 + $0x108] sm:$0xff]
        %v4084 = vld [vmem:[#allocation10 + $0x110] sm:$0xff]
        %v4085 = vld [vmem:[#allocation10 + $0x118] sm:$0xff]
        %v4086 = vld [vmem:[#allocation10 + $0x120] sm:$0xff]
        %v4087 = vld [vmem:[#allocation10 + $0x128] sm:$0xff]
        %v4088 = vld [vmem:[#allocation10 + $0x130] sm:$0xff]
        %v4089 = vld [vmem:[#allocation10 + $0x138] sm:$0xff]
        %v4090 = vld [vmem:[#allocation10 + $0x140] sm:$0xff]
        %v4091 = vld [vmem:[#allocation10 + $0x148] sm:$0xff]
        %v4092 = vld [vmem:[#allocation10 + $0x150] sm:$0xff]
        %v4093 = vld [vmem:[#allocation10 + $0x158] sm:$0xff]
        %v4094 = vld [vmem:[#allocation10 + $0x160] sm:$0xff]
        %v4095 = vld [vmem:[#allocation10 + $0x168] sm:$0xff]
        %v4096 = vld [vmem:[#allocation10 + $0x170] sm:$0xff]
        %v4097 = vld [vmem:[#allocation10 + $0x178] sm:$0xff]
        %v4098 = vld [vmem:[#allocation10 + $0x180] sm:$0xff]
        %v4099 = vld [vmem:[#allocation10 + $0x188] sm:$0xff]
        %v4100 = vld [vmem:[#allocation10 + $0x190] sm:$0xff]
        %v4101 = vld [vmem:[#allocation10 + $0x198] sm:$0xff]
        %v4102 = vld [vmem:[#allocation10 + $0x1a0] sm:$0xff]
        %v4103 = vld [vmem:[#allocation10 + $0x1a8] sm:$0xff]
        %v4104 = vld [vmem:[#allocation10 + $0x1b0] sm:$0xff]
        %v4105 = vld [vmem:[#allocation10 + $0x1b8] sm:$0xff]
        %v4106 = vld [vmem:[#allocation10 + $0x1c0] sm:$0xff]
        %v4107 = vld [vmem:[#allocation10 + $0x1c8] sm:$0xff]
        %v4108 = vld [vmem:[#allocation10 + $0x1d0] sm:$0xff]
        %v4109 = vld [vmem:[#allocation10 + $0x1d8] sm:$0xff]
        %v4110 = vld [vmem:[#allocation10 + $0x1e0] sm:$0xff]
        %v4111 = vld [vmem:[#allocation10 + $0x1e8] sm:$0xff]
        %v4112 = vld [vmem:[#allocation10 + $0x1f0] sm:$0xff]
        %v4113 = vld [vmem:[#allocation10 + $0x1f8] sm:$0xff]
        %v4114 = vld [vmem:[#allocation10 + $0x200] sm:$0xff]
        %v4115 = vld [vmem:[#allocation10 + $0x208] sm:$0xff]
        %v4116 = vld [vmem:[#allocation10 + $0x210] sm:$0xff]
        %v4117 = vld [vmem:[#allocation10 + $0x218] sm:$0xff]
        %v4118 = vld [vmem:[#allocation10 + $0x220] sm:$0xff]
        %v4119 = vld [vmem:[#allocation10 + $0x228] sm:$0xff]
        %v4120 = vld [vmem:[#allocation10 + $0x230] sm:$0xff]
        %v4121 = vld [vmem:[#allocation10 + $0x238] sm:$0xff]
        %v4122 = vld [vmem:[#allocation10 + $0x240] sm:$0xff]
        %v4123 = vld [vmem:[#allocation10 + $0x248] sm:$0xff]
        %v4124 = vld [vmem:[#allocation10 + $0x250] sm:$0xff]
        %v4125 = vld [vmem:[#allocation10 + $0x258] sm:$0xff]
        %v4126 = vld [vmem:[#allocation10 + $0x260] sm:$0xff]
        %v4127 = vld [vmem:[#allocation10 + $0x268] sm:$0xff]
        %v4128 = vld [vmem:[#allocation10 + $0x270] sm:$0xff]
        %v4129 = vld [vmem:[#allocation10 + $0x278] sm:$0xff]
        %v4130 = vld [vmem:[#allocation10 + $0x280] sm:$0xff]
        %v4131 = vld [vmem:[#allocation10 + $0x288] sm:$0xff]
        %v4132 = vld [vmem:[#allocation10 + $0x290] sm:$0xff]
        %v4133 = vld [vmem:[#allocation10 + $0x298] sm:$0xff]
        %v4134 = vld [vmem:[#allocation10 + $0x2a0] sm:$0xff]
        %v4135 = vld [vmem:[#allocation10 + $0x2a8] sm:$0xff]
        %v4136 = vld [vmem:[#allocation10 + $0x2b0] sm:$0xff]
        %v4137 = vld [vmem:[#allocation10 + $0x2b8] sm:$0xff]
        %v4138 = vld [vmem:[#allocation10 + $0x2c0] sm:$0xff]
        %v4139 = vld [vmem:[#allocation10 + $0x2c8] sm:$0xff]
        %v4140 = vld [vmem:[#allocation10 + $0x2d0] sm:$0xff]
        %v4141 = vld [vmem:[#allocation10 + $0x2d8] sm:$0xff]
        %v4142 = vld [vmem:[#allocation10 + $0x2e0] sm:$0xff]
        %v4143 = vld [vmem:[#allocation10 + $0x2e8] sm:$0xff]
        %v4144 = vld [vmem:[#allocation10 + $0x2f0] sm:$0xff]
        %v4145 = vld [vmem:[#allocation10 + $0x2f8] sm:$0xff]
        %v4146 = vld [vmem:[#allocation10 + $0x300] sm:$0xff]
        %v4147 = vld [vmem:[#allocation10 + $0x308] sm:$0xff]
        %v4148 = vld [vmem:[#allocation10 + $0x310] sm:$0xff]
        %v4149 = vld [vmem:[#allocation10 + $0x318] sm:$0xff]
        %v4150 = vld [vmem:[#allocation10 + $0x320] sm:$0xff]
        %v4151 = vld [vmem:[#allocation10 + $0x328] sm:$0xff]
        %v4152 = vld [vmem:[#allocation10 + $0x330] sm:$0xff]
        %v4153 = vld [vmem:[#allocation10 + $0x338] sm:$0xff]
        %v4154 = vld [vmem:[#allocation10 + $0x340] sm:$0xff]
        %v4155 = vld [vmem:[#allocation10 + $0x348] sm:$0xff]
        %v4156 = vld [vmem:[#allocation10 + $0x350] sm:$0xff]
        %v4157 = vld [vmem:[#allocation10 + $0x358] sm:$0xff]
        %v4158 = vld [vmem:[#allocation10 + $0x360] sm:$0xff]
        %v4159 = vld [vmem:[#allocation10 + $0x368] sm:$0xff]
        %v4160 = vld [vmem:[#allocation10 + $0x370] sm:$0xff]
        %v4161 = vld [vmem:[#allocation10 + $0x378] sm:$0xff]
        %v4162 = vld [vmem:[#allocation10 + $0x380] sm:$0xff]
        %v4163 = vld [vmem:[#allocation10 + $0x388] sm:$0xff]
        %v4164 = vld [vmem:[#allocation10 + $0x390] sm:$0xff]
        %v4165 = vld [vmem:[#allocation10 + $0x398] sm:$0xff]
        %v4166 = vld [vmem:[#allocation10 + $0x3a0] sm:$0xff]
        %v4167 = vld [vmem:[#allocation10 + $0x3a8] sm:$0xff]
        %v4168 = vld [vmem:[#allocation10 + $0x3b0] sm:$0xff]
        %v4169 = vld [vmem:[#allocation10 + $0x3b8] sm:$0xff]
        %v4170 = vld [vmem:[#allocation10 + $0x3c0] sm:$0xff]
        %v4171 = vld [vmem:[#allocation10 + $0x3c8] sm:$0xff]
        %v4172 = vld [vmem:[#allocation10 + $0x3d0] sm:$0xff]
        %v4173 = vld [vmem:[#allocation10 + $0x3d8] sm:$0xff]
        %v4174 = vld [vmem:[#allocation10 + $0x3e0] sm:$0xff]
        %v4175 = vld [vmem:[#allocation10 + $0x3e8] sm:$0xff]
        %v4176 = vld [vmem:[#allocation10 + $0x3f0] sm:$0xff]
        %v4177 = vld [vmem:[#allocation10 + $0x3f8] sm:$0xff]
        %v4178 = vld [vmem:[#allocation10 + $0x400] sm:$0xff]
        %v4179 = vld [vmem:[#allocation10 + $0x408] sm:$0xff]
        %v4180 = vld [vmem:[#allocation10 + $0x410] sm:$0xff]
        %v4181 = vld [vmem:[#allocation10 + $0x418] sm:$0xff]
        %v4182 = vld [vmem:[#allocation10 + $0x420] sm:$0xff]
        %v4183 = vld [vmem:[#allocation10 + $0x428] sm:$0xff]
        %v4184 = vld [vmem:[#allocation10 + $0x430] sm:$0xff]
        %v4185 = vld [vmem:[#allocation10 + $0x438] sm:$0xff]
        %v4186 = vld [vmem:[#allocation10 + $0x440] sm:$0xff]
        %v4187 = vld [vmem:[#allocation10 + $0x448] sm:$0xff]
        %v4188 = vld [vmem:[#allocation10 + $0x450] sm:$0xff]
        %v4189 = vld [vmem:[#allocation10 + $0x458] sm:$0xff]
        %v4190 = vld [vmem:[#allocation10 + $0x460] sm:$0xff]
        %v4191 = vld [vmem:[#allocation10 + $0x468] sm:$0xff]
        %v4192 = vld [vmem:[#allocation10 + $0x470] sm:$0xff]
        %v4193 = vld [vmem:[#allocation10 + $0x478] sm:$0xff]
        %v4194 = vld [vmem:[#allocation10 + $0x480] sm:$0xff]
        %v4195 = vld [vmem:[#allocation10 + $0x488] sm:$0xff]
        %v4196 = vld [vmem:[#allocation10 + $0x490] sm:$0xff]
        %v4197 = vld [vmem:[#allocation10 + $0x498] sm:$0xff]
        %v4198 = vld [vmem:[#allocation10 + $0x4a0] sm:$0xff]
        %v4199 = vld [vmem:[#allocation10 + $0x4a8] sm:$0xff]
        %v4200 = vld [vmem:[#allocation10 + $0x4b0] sm:$0xff]
        %v4201 = vld [vmem:[#allocation10 + $0x4b8] sm:$0xff]
        %v4202 = vld [vmem:[#allocation10 + $0x4c0] sm:$0xff]
        %v4203 = vld [vmem:[#allocation10 + $0x4c8] sm:$0xff]
        %v4204 = vld [vmem:[#allocation10 + $0x4d0] sm:$0xff]
        %v4205 = vld [vmem:[#allocation10 + $0x4d8] sm:$0xff]
        %v4206 = vld [vmem:[#allocation10 + $0x4e0] sm:$0xff]
        %v4207 = vld [vmem:[#allocation10 + $0x4e8] sm:$0xff]
        %v4208 = vld [vmem:[#allocation10 + $0x4f0] sm:$0xff]
        %v4209 = vld [vmem:[#allocation10 + $0x4f8] sm:$0xff]
        %v4210 = vld [vmem:[#allocation10 + $0x500] sm:$0xff]
        %v4211 = vld [vmem:[#allocation10 + $0x508] sm:$0xff]
        %v4212 = vld [vmem:[#allocation10 + $0x510] sm:$0xff]
        %v4213 = vld [vmem:[#allocation10 + $0x518] sm:$0xff]
        %v4214 = vld [vmem:[#allocation10 + $0x520] sm:$0xff]
        %v4215 = vld [vmem:[#allocation10 + $0x528] sm:$0xff]
        %v4216 = vld [vmem:[#allocation10 + $0x530] sm:$0xff]
        %v4217 = vld [vmem:[#allocation10 + $0x538] sm:$0xff]
        %v4218 = vld [vmem:[#allocation10 + $0x540] sm:$0xff]
        %v4219 = vld [vmem:[#allocation10 + $0x548] sm:$0xff]
        %v4220 = vld [vmem:[#allocation10 + $0x550] sm:$0xff]
        %v4221 = vld [vmem:[#allocation10 + $0x558] sm:$0xff]
        %v4222 = vld [vmem:[#allocation10 + $0x560] sm:$0xff]
        %v4223 = vld [vmem:[#allocation10 + $0x568] sm:$0xff]
        %v4224 = vld [vmem:[#allocation10 + $0x570] sm:$0xff]
        %v4225 = vld [vmem:[#allocation10 + $0x578] sm:$0xff]
        %v4226 = vld [vmem:[#allocation10 + $0x580] sm:$0xff]
        %v4227 = vld [vmem:[#allocation10 + $0x588] sm:$0xff]
        %v4228 = vld [vmem:[#allocation10 + $0x590] sm:$0xff]
        %v4229 = vld [vmem:[#allocation10 + $0x598] sm:$0xff]
        %v4230 = vld [vmem:[#allocation10 + $0x5a0] sm:$0xff]
        %v4231 = vld [vmem:[#allocation10 + $0x5a8] sm:$0xff]
        %v4232 = vld [vmem:[#allocation10 + $0x5b0] sm:$0xff]
        %v4233 = vld [vmem:[#allocation10 + $0x5b8] sm:$0xff]
        %v4234 = vld [vmem:[#allocation10 + $0x5c0] sm:$0xff]
        %v4235 = vld [vmem:[#allocation10 + $0x5c8] sm:$0xff]
        %v4236 = vld [vmem:[#allocation10 + $0x5d0] sm:$0xff]
        %v4237 = vld [vmem:[#allocation10 + $0x5d8] sm:$0xff]
        %v4238 = vld [vmem:[#allocation10 + $0x5e0] sm:$0xff]
        %v4239 = vld [vmem:[#allocation10 + $0x5e8] sm:$0xff]
        %v4240 = vld [vmem:[#allocation10 + $0x5f0] sm:$0xff]
        %v4241 = vld [vmem:[#allocation10 + $0x5f8] sm:$0xff]
        %v4242 = vld [vmem:[#allocation10 + $0x600] sm:$0xff]
        %v4243 = vld [vmem:[#allocation10 + $0x608] sm:$0xff]
        %v4244 = vld [vmem:[#allocation10 + $0x610] sm:$0xff]
        %v4245 = vld [vmem:[#allocation10 + $0x618] sm:$0xff]
        %v4246 = vld [vmem:[#allocation10 + $0x620] sm:$0xff]
        %v4247 = vld [vmem:[#allocation10 + $0x628] sm:$0xff]
        %v4248 = vld [vmem:[#allocation10 + $0x630] sm:$0xff]
        %v4249 = vld [vmem:[#allocation10 + $0x638] sm:$0xff]
        %v4250 = vld [vmem:[#allocation10 + $0x640] sm:$0xff]
        %v4251 = vld [vmem:[#allocation10 + $0x648] sm:$0xff]
        %v4252 = vld [vmem:[#allocation10 + $0x650] sm:$0xff]
        %v4253 = vld [vmem:[#allocation10 + $0x658] sm:$0xff]
        %v4254 = vld [vmem:[#allocation10 + $0x660] sm:$0xff]
        %v4255 = vld [vmem:[#allocation10 + $0x668] sm:$0xff]
        %v4256 = vld [vmem:[#allocation10 + $0x670] sm:$0xff]
        %v4257 = vld [vmem:[#allocation10 + $0x678] sm:$0xff]
        %v4258 = vld [vmem:[#allocation10 + $0x680] sm:$0xff]
        %v4259 = vld [vmem:[#allocation10 + $0x688] sm:$0xff]
        %v4260 = vld [vmem:[#allocation10 + $0x690] sm:$0xff]
        %v4261 = vld [vmem:[#allocation10 + $0x698] sm:$0xff]
        %v4262 = vld [vmem:[#allocation10 + $0x6a0] sm:$0xff]
        %v4263 = vld [vmem:[#allocation10 + $0x6a8] sm:$0xff]
        %v4264 = vld [vmem:[#allocation10 + $0x6b0] sm:$0xff]
        %v4265 = vld [vmem:[#allocation10 + $0x6b8] sm:$0xff]
        %v4266 = vld [vmem:[#allocation10 + $0x6c0] sm:$0xff]
        %v4267 = vld [vmem:[#allocation10 + $0x6c8] sm:$0xff]
        %v4268 = vld [vmem:[#allocation10 + $0x6d0] sm:$0xff]
        %v4269 = vld [vmem:[#allocation10 + $0x6d8] sm:$0xff]
        %v4270 = vld [vmem:[#allocation10 + $0x6e0] sm:$0xff]
        %v4271 = vld [vmem:[#allocation10 + $0x6e8] sm:$0xff]
        %v4272 = vld [vmem:[#allocation10 + $0x6f0] sm:$0xff]
        %v4273 = vld [vmem:[#allocation10 + $0x6f8] sm:$0xff]
        %v4274 = vld [vmem:[#allocation10 + $0x700] sm:$0xff]
        %v4275 = vld [vmem:[#allocation10 + $0x708] sm:$0xff]
        %v4276 = vld [vmem:[#allocation10 + $0x710] sm:$0xff]
        %v4277 = vld [vmem:[#allocation10 + $0x718] sm:$0xff]
        %v4278 = vld [vmem:[#allocation10 + $0x720] sm:$0xff]
        %v4279 = vld [vmem:[#allocation10 + $0x728] sm:$0xff]
        %v4280 = vld [vmem:[#allocation10 + $0x730] sm:$0xff]
        %v4281 = vld [vmem:[#allocation10 + $0x738] sm:$0xff]
        %v4282 = vld [vmem:[#allocation10 + $0x740] sm:$0xff]
        %v4283 = vld [vmem:[#allocation10 + $0x748] sm:$0xff]
        %v4284 = vld [vmem:[#allocation10 + $0x750] sm:$0xff]
        %v4285 = vld [vmem:[#allocation10 + $0x758] sm:$0xff]
        %v4286 = vld [vmem:[#allocation10 + $0x760] sm:$0xff]
        %v4287 = vld [vmem:[#allocation10 + $0x768] sm:$0xff]
        %v4288 = vld [vmem:[#allocation10 + $0x770] sm:$0xff]
        %v4289 = vld [vmem:[#allocation10 + $0x778] sm:$0xff]
        %v4290 = vld [vmem:[#allocation10 + $0x780] sm:$0xff]
        %v4291 = vld [vmem:[#allocation10 + $0x788] sm:$0xff]
        %v4292 = vld [vmem:[#allocation10 + $0x790] sm:$0xff]
        %v4293 = vld [vmem:[#allocation10 + $0x798] sm:$0xff]
        %v4294 = vld [vmem:[#allocation10 + $0x7a0] sm:$0xff]
        %v4295 = vld [vmem:[#allocation10 + $0x7a8] sm:$0xff]
        %v4296 = vld [vmem:[#allocation10 + $0x7b0] sm:$0xff]
        %v4297 = vld [vmem:[#allocation10 + $0x7b8] sm:$0xff]
        %v4298 = vld [vmem:[#allocation10 + $0x7c0] sm:$0xff]
        %v4299 = vld [vmem:[#allocation10 + $0x7c8] sm:$0xff]
        %v4300 = vld [vmem:[#allocation10 + $0x7d0] sm:$0xff]
        %v4301 = vld [vmem:[#allocation10 + $0x7d8] sm:$0xff]
        %v4302 = vld [vmem:[#allocation10 + $0x7e0] sm:$0xff]
        %v4303 = vld [vmem:[#allocation10 + $0x7e8] sm:$0xff]
        %v4304 = vld [vmem:[#allocation10 + $0x7f0] sm:$0xff]
        %v4305 = vld [vmem:[#allocation10 + $0x7f8] sm:$0xff]
        %v4306 = vld [vmem:[%s5] sm:$0xf]
        %v4308 = vlaneseq
        %v4309 = vshrl.u32 %v4308, 7
        %v4310 = vsub.s32 0, %v4309
        %v4311 = vrot.slane %v4306, %v4310
        %v4312 = vlaneseq
        %v4313 = vshrl.u32 %v4312, 7
        %v4314 = vsub.s32 1, %v4313
        %v4315 = vrot.slane %v4306, %v4314
        %v4316 = vlaneseq
        %v4317 = vshrl.u32 %v4316, 7
        %v4318 = vsub.s32 2, %v4317
        %v4319 = vrot.slane %v4306, %v4318
        %v4320 = vlaneseq
        %v4321 = vshrl.u32 %v4320, 7
        %v4322 = vsub.s32 3, %v4321
        %v4323 = vrot.slane %v4306, %v4322
        %4328 = vmatprep.subr.mxu0 %v4111
        %4329 = vmatpush1.msra.mxu0 %v4110
        %4330 = vmatprep.subr.mxu0 %v4107
        %4331 = vmatpush1.msra.mxu0 %v4106
        %4332 = vmatprep.subr.mxu0 %v4103
        %4333 = vmatpush1.msra.mxu0 %v4102
        %4334 = vmatprep.subr.mxu0 %v4099
        %4335 = vmatpush1.msra.mxu0 %v4098
        %4336 = vmatprep.subr.mxu0 %v4095
        %4337 = vmatpush1.msra.mxu0 %v4094
        %4338 = vmatprep.subr.mxu0 %v4091
        %4339 = vmatpush1.msra.mxu0 %v4090
        %4340 = vmatprep.subr.mxu0 %v4087
        %4341 = vmatpush1.msra.mxu0 %v4086
        %4342 = vmatprep.subr.mxu0 %v4083
        %4343 = vmatpush1.msra.mxu0 %v4082
        %4344 = vmatprep.subr.mxu0 %v4079
        %4345 = vmatpush1.msra.mxu0 %v4078
        %4346 = vmatprep.subr.mxu0 %v4075
        %4347 = vmatpush1.msra.mxu0 %v4074
        %4348 = vmatprep.subr.mxu0 %v4071
        %4349 = vmatpush1.msra.mxu0 %v4070
        %4350 = vmatprep.subr.mxu0 %v4067
        %4351 = vmatpush1.msra.mxu0 %v4066
        %4352 = vmatprep.subr.mxu0 %v4063
        %4353 = vmatpush1.msra.mxu0 %v4062
        %4354 = vmatprep.subr.mxu0 %v4059
        %4355 = vmatpush1.msra.mxu0 %v4058
        %4356 = vmatprep.subr.mxu0 %v4055
        %4357 = vmatpush1.msra.mxu0 %v4054
        %4358 = vmatprep.subr.mxu0 %v4051
        %4359 = vmatpush1.msra.mxu0 %v4050
        %4360 = vmatprep.subr.mxu0 %v4175
        %4361 = vmatpush2.msra.mxu0 %v4174
        %4362 = vmatprep.subr.mxu0 %v4171
        %4363 = vmatpush2.msra.mxu0 %v4170
        %4364 = vmatprep.subr.mxu0 %v4167
        %4365 = vmatpush2.msra.mxu0 %v4166
        %4366 = vmatprep.subr.mxu0 %v4163
        %4367 = vmatpush2.msra.mxu0 %v4162
        %4368 = vmatprep.subr.mxu0 %v4159
        %4369 = vmatpush2.msra.mxu0 %v4158
        %4370 = vmatprep.subr.mxu0 %v4155
        %4371 = vmatpush2.msra.mxu0 %v4154
        %4372 = vmatprep.subr.mxu0 %v4151
        %4373 = vmatpush2.msra.mxu0 %v4150
        %4374 = vmatprep.subr.mxu0 %v4147
        %4375 = vmatpush2.msra.mxu0 %v4146
        %4376 = vmatprep.subr.mxu0 %v4143
        %4377 = vmatpush2.msra.mxu0 %v4142
        %4378 = vmatprep.subr.mxu0 %v4139
        %4379 = vmatpush2.msra.mxu0 %v4138
        %4380 = vmatprep.subr.mxu0 %v4135
        %4381 = vmatpush2.msra.mxu0 %v4134
        %4382 = vmatprep.subr.mxu0 %v4131
        %4383 = vmatpush2.msra.mxu0 %v4130
        %4384 = vmatprep.subr.mxu0 %v4127
        %4385 = vmatpush2.msra.mxu0 %v4126
        %4386 = vmatprep.subr.mxu0 %v4123
        %4387 = vmatpush2.msra.mxu0 %v4122
        %4388 = vmatprep.subr.mxu0 %v4119
        %4389 = vmatpush2.msra.mxu0 %v4118
        %4390 = vmatprep.subr.mxu0 %v4115
        %4391 = vmatpush2.msra.mxu0 %v4114
        %4392 = vmatprep.mubr.f32.mxu0 %v4026
        %4393 = vmatmul.mubr.f32.gmra.mxu0 %v4018
        %v4394 = vpop.f32.mrf.mxu0
        %v4395 = vadd.f32 %v4311, %v4394
        %v4396 = vpop.f32.mrf.mxu0
        %v4397 = vadd.f32 %v4315, %v4396
        %4398 = vmatprep.mubr.f32.mxu0 %v4027
        %4399 = vmatmul.mubr.f32.gmra.mxu0 %v4019
        %v4400 = vpop.f32.mrf.mxu0
        %v4401 = vadd.f32 %v4311, %v4400
        %v4402 = vpop.f32.mrf.mxu0
        %v4403 = vadd.f32 %v4315, %v4402
        %4404 = vmatprep.mubr.f32.mxu0 %v4028
        %4405 = vmatmul.mubr.f32.gmra.mxu0 %v4020
        %v4406 = vpop.f32.mrf.mxu0
        %v4407 = vadd.f32 %v4311, %v4406
        %v4408 = vpop.f32.mrf.mxu0
        %v4409 = vadd.f32 %v4315, %v4408
        %4410 = vmatprep.mubr.f32.mxu0 %v4029
        %4411 = vmatmul.mubr.f32.gmra.mxu0 %v4021
        %v4412 = vpop.f32.mrf.mxu0
        %v4413 = vadd.f32 %v4311, %v4412
        %v4414 = vpop.f32.mrf.mxu0
        %v4415 = vadd.f32 %v4315, %v4414
        %4416 = vmatprep.mubr.f32.mxu0 %v4030
        %4417 = vmatmul.mubr.f32.gmra.mxu0 %v4022
        %v4418 = vpop.f32.mrf.mxu0
        %v4419 = vadd.f32 %v4311, %v4418
        %v4420 = vpop.f32.mrf.mxu0
        %v4421 = vadd.f32 %v4315, %v4420
        %4422 = vmatprep.mubr.f32.mxu0 %v4031
        %4423 = vmatmul.mubr.f32.gmra.mxu0 %v4023
        %v4424 = vpop.f32.mrf.mxu0
        %v4425 = vadd.f32 %v4311, %v4424
        %v4426 = vpop.f32.mrf.mxu0
        %v4427 = vadd.f32 %v4315, %v4426
        %4428 = vmatprep.mubr.f32.mxu0 %v4032
        %4429 = vmatmul.mubr.f32.gmra.mxu0 %v4024
        %v4430 = vpop.f32.mrf.mxu0
        %v4431 = vadd.f32 %v4311, %v4430
        %v4432 = vpop.f32.mrf.mxu0
        %v4433 = vadd.f32 %v4315, %v4432
        %4434 = vmatprep.mubr.f32.mxu0 %v4033
        %4435 = vmatmul.mubr.f32.gmra.mxu0 %v4025
        %v4436 = vpop.f32.mrf.mxu0
        %v4437 = vadd.f32 %v4311, %v4436
        %v4438 = vpop.f32.mrf.mxu0
        %v4439 = vadd.f32 %v4315, %v4438
        %4440 = vdwg.mxu0
        %4441 = vmatprep.subr.mxu0 %v4239
        %4442 = vmatpush1.msra.mxu0 %v4238
        %4443 = vmatprep.subr.mxu0 %v4235
        %4444 = vmatpush1.msra.mxu0 %v4234
        %4445 = vmatprep.subr.mxu0 %v4231
        %4446 = vmatpush1.msra.mxu0 %v4230
        %4447 = vmatprep.subr.mxu0 %v4227
        %4448 = vmatpush1.msra.mxu0 %v4226
        %4449 = vmatprep.subr.mxu0 %v4223
        %4450 = vmatpush1.msra.mxu0 %v4222
        %4451 = vmatprep.subr.mxu0 %v4219
        %4452 = vmatpush1.msra.mxu0 %v4218
        %4453 = vmatprep.subr.mxu0 %v4215
        %4454 = vmatpush1.msra.mxu0 %v4214
        %4455 = vmatprep.subr.mxu0 %v4211
        %4456 = vmatpush1.msra.mxu0 %v4210
        %4457 = vmatprep.subr.mxu0 %v4207
        %4458 = vmatpush1.msra.mxu0 %v4206
        %4459 = vmatprep.subr.mxu0 %v4203
        %4460 = vmatpush1.msra.mxu0 %v4202
        %4461 = vmatprep.subr.mxu0 %v4199
        %4462 = vmatpush1.msra.mxu0 %v4198
        %4463 = vmatprep.subr.mxu0 %v4195
        %4464 = vmatpush1.msra.mxu0 %v4194
        %4465 = vmatprep.subr.mxu0 %v4191
        %4466 = vmatpush1.msra.mxu0 %v4190
        %4467 = vmatprep.subr.mxu0 %v4187
        %4468 = vmatpush1.msra.mxu0 %v4186
        %4469 = vmatprep.subr.mxu0 %v4183
        %4470 = vmatpush1.msra.mxu0 %v4182
        %4471 = vmatprep.subr.mxu0 %v4179
        %4472 = vmatpush1.msra.mxu0 %v4178
        %4473 = vmatprep.subr.mxu0 %v4303
        %4474 = vmatpush2.msra.mxu0 %v4302
        %4475 = vmatprep.subr.mxu0 %v4299
        %4476 = vmatpush2.msra.mxu0 %v4298
        %4477 = vmatprep.subr.mxu0 %v4295
        %4478 = vmatpush2.msra.mxu0 %v4294
        %4479 = vmatprep.subr.mxu0 %v4291
        %4480 = vmatpush2.msra.mxu0 %v4290
        %4481 = vmatprep.subr.mxu0 %v4287
        %4482 = vmatpush2.msra.mxu0 %v4286
        %4483 = vmatprep.subr.mxu0 %v4283
        %4484 = vmatpush2.msra.mxu0 %v4282
        %4485 = vmatprep.subr.mxu0 %v4279
        %4486 = vmatpush2.msra.mxu0 %v4278
        %4487 = vmatprep.subr.mxu0 %v4275
        %4488 = vmatpush2.msra.mxu0 %v4274
        %4489 = vmatprep.subr.mxu0 %v4271
        %4490 = vmatpush2.msra.mxu0 %v4270
        %4491 = vmatprep.subr.mxu0 %v4267
        %4492 = vmatpush2.msra.mxu0 %v4266
        %4493 = vmatprep.subr.mxu0 %v4263
        %4494 = vmatpush2.msra.mxu0 %v4262
        %4495 = vmatprep.subr.mxu0 %v4259
        %4496 = vmatpush2.msra.mxu0 %v4258
        %4497 = vmatprep.subr.mxu0 %v4255
        %4498 = vmatpush2.msra.mxu0 %v4254
        %4499 = vmatprep.subr.mxu0 %v4251
        %4500 = vmatpush2.msra.mxu0 %v4250
        %4501 = vmatprep.subr.mxu0 %v4247
        %4502 = vmatpush2.msra.mxu0 %v4246
        %4503 = vmatprep.subr.mxu0 %v4243
        %4504 = vmatpush2.msra.mxu0 %v4242
        %4505 = vmatprep.mubr.f32.mxu0 %v4042
        %4506 = vmatmul.mubr.f32.gmra.mxu0 %v4034
        %v4507 = vpop.f32.mrf.mxu0
        %v4508 = vadd.f32 %v4395, %v4507
        %v4509 = vpop.f32.mrf.mxu0
        %v4510 = vadd.f32 %v4397, %v4509
        %4511 = vmatprep.mubr.f32.mxu0 %v4043
        %4512 = vmatmul.mubr.f32.gmra.mxu0 %v4035
        %v4513 = vpop.f32.mrf.mxu0
        %v4514 = vadd.f32 %v4401, %v4513
        %v4515 = vpop.f32.mrf.mxu0
        %v4516 = vadd.f32 %v4403, %v4515
        %4517 = vmatprep.mubr.f32.mxu0 %v4044
        %4518 = vmatmul.mubr.f32.gmra.mxu0 %v4036
        %v4519 = vpop.f32.mrf.mxu0
        %v4520 = vadd.f32 %v4407, %v4519
        %v4521 = vpop.f32.mrf.mxu0
        %v4522 = vadd.f32 %v4409, %v4521
        %4523 = vmatprep.mubr.f32.mxu0 %v4045
        %4524 = vmatmul.mubr.f32.gmra.mxu0 %v4037
        %v4525 = vpop.f32.mrf.mxu0
        %v4526 = vadd.f32 %v4413, %v4525
        %v4527 = vpop.f32.mrf.mxu0
        %v4528 = vadd.f32 %v4415, %v4527
        %4529 = vmatprep.mubr.f32.mxu0 %v4046
        %4530 = vmatmul.mubr.f32.gmra.mxu0 %v4038
        %v4531 = vpop.f32.mrf.mxu0
        %v4532 = vadd.f32 %v4419, %v4531
        %v4533 = vpop.f32.mrf.mxu0
        %v4534 = vadd.f32 %v4421, %v4533
        %4535 = vmatprep.mubr.f32.mxu0 %v4047
        %4536 = vmatmul.mubr.f32.gmra.mxu0 %v4039
        %v4537 = vpop.f32.mrf.mxu0
        %v4538 = vadd.f32 %v4425, %v4537
        %v4539 = vpop.f32.mrf.mxu0
        %v4540 = vadd.f32 %v4427, %v4539
        %4541 = vmatprep.mubr.f32.mxu0 %v4048
        %4542 = vmatmul.mubr.f32.gmra.mxu0 %v4040
        %v4543 = vpop.f32.mrf.mxu0
        %v4544 = vadd.f32 %v4431, %v4543
        %v4545 = vpop.f32.mrf.mxu0
        %v4546 = vadd.f32 %v4433, %v4545
        %4547 = vmatprep.mubr.f32.mxu0 %v4049
        %4548 = vmatmul.mubr.f32.gmra.mxu0 %v4041
        %v4549 = vpop.f32.mrf.mxu0
        %v4550 = vadd.f32 %v4437, %v4549
        %v4551 = vpop.f32.mrf.mxu0
        %v4552 = vadd.f32 %v4439, %v4551
        %4553 = vdwg.mxu0
        %4554 = vmatprep.subr.mxu0 %v4113
        %4555 = vmatpush1.msra.mxu0 %v4112
        %4556 = vmatprep.subr.mxu0 %v4109
        %4557 = vmatpush1.msra.mxu0 %v4108
        %4558 = vmatprep.subr.mxu0 %v4105
        %4559 = vmatpush1.msra.mxu0 %v4104
        %4560 = vmatprep.subr.mxu0 %v4101
        %4561 = vmatpush1.msra.mxu0 %v4100
        %4562 = vmatprep.subr.mxu0 %v4097
        %4563 = vmatpush1.msra.mxu0 %v4096
        %4564 = vmatprep.subr.mxu0 %v4093
        %4565 = vmatpush1.msra.mxu0 %v4092
        %4566 = vmatprep.subr.mxu0 %v4089
        %4567 = vmatpush1.msra.mxu0 %v4088
        %4568 = vmatprep.subr.mxu0 %v4085
        %4569 = vmatpush1.msra.mxu0 %v4084
        %4570 = vmatprep.subr.mxu0 %v4081
        %4571 = vmatpush1.msra.mxu0 %v4080
        %4572 = vmatprep.subr.mxu0 %v4077
        %4573 = vmatpush1.msra.mxu0 %v4076
        %4574 = vmatprep.subr.mxu0 %v4073
        %4575 = vmatpush1.msra.mxu0 %v4072
        %4576 = vmatprep.subr.mxu0 %v4069
        %4577 = vmatpush1.msra.mxu0 %v4068
        %4578 = vmatprep.subr.mxu0 %v4065
        %4579 = vmatpush1.msra.mxu0 %v4064
        %4580 = vmatprep.subr.mxu0 %v4061
        %4581 = vmatpush1.msra.mxu0 %v4060
        %4582 = vmatprep.subr.mxu0 %v4057
        %4583 = vmatpush1.msra.mxu0 %v4056
        %4584 = vmatprep.subr.mxu0 %v4053
        %4585 = vmatpush1.msra.mxu0 %v4052
        %4586 = vmatprep.subr.mxu0 %v4177
        %4587 = vmatpush2.msra.mxu0 %v4176
        %4588 = vmatprep.subr.mxu0 %v4173
        %4589 = vmatpush2.msra.mxu0 %v4172
        %4590 = vmatprep.subr.mxu0 %v4169
        %4591 = vmatpush2.msra.mxu0 %v4168
        %4592 = vmatprep.subr.mxu0 %v4165
        %4593 = vmatpush2.msra.mxu0 %v4164
        %4594 = vmatprep.subr.mxu0 %v4161
        %4595 = vmatpush2.msra.mxu0 %v4160
        %4596 = vmatprep.subr.mxu0 %v4157
        %4597 = vmatpush2.msra.mxu0 %v4156
        %4598 = vmatprep.subr.mxu0 %v4153
        %4599 = vmatpush2.msra.mxu0 %v4152
        %4600 = vmatprep.subr.mxu0 %v4149
        %4601 = vmatpush2.msra.mxu0 %v4148
        %4602 = vmatprep.subr.mxu0 %v4145
        %4603 = vmatpush2.msra.mxu0 %v4144
        %4604 = vmatprep.subr.mxu0 %v4141
        %4605 = vmatpush2.msra.mxu0 %v4140
        %4606 = vmatprep.subr.mxu0 %v4137
        %4607 = vmatpush2.msra.mxu0 %v4136
        %4608 = vmatprep.subr.mxu0 %v4133
        %4609 = vmatpush2.msra.mxu0 %v4132
        %4610 = vmatprep.subr.mxu0 %v4129
        %4611 = vmatpush2.msra.mxu0 %v4128
        %4612 = vmatprep.subr.mxu0 %v4125
        %4613 = vmatpush2.msra.mxu0 %v4124
        %4614 = vmatprep.subr.mxu0 %v4121
        %4615 = vmatpush2.msra.mxu0 %v4120
        %4616 = vmatprep.subr.mxu0 %v4117
        %4617 = vmatpush2.msra.mxu0 %v4116
        %4618 = vmatprep.mubr.f32.mxu0 %v4026
        %4619 = vmatmul.mubr.f32.gmra.mxu0 %v4018
        %v4620 = vpop.f32.mrf.mxu0
        %v4621 = vadd.f32 %v4319, %v4620
        %v4622 = vpop.f32.mrf.mxu0
        %v4623 = vadd.f32 %v4323, %v4622
        %4624 = vmatprep.mubr.f32.mxu0 %v4027
        %4625 = vmatmul.mubr.f32.gmra.mxu0 %v4019
        %v4626 = vpop.f32.mrf.mxu0
        %v4627 = vadd.f32 %v4319, %v4626
        %v4628 = vpop.f32.mrf.mxu0
        %v4629 = vadd.f32 %v4323, %v4628
        %4630 = vmatprep.mubr.f32.mxu0 %v4028
        %4631 = vmatmul.mubr.f32.gmra.mxu0 %v4020
        %v4632 = vpop.f32.mrf.mxu0
        %v4633 = vadd.f32 %v4319, %v4632
        %v4634 = vpop.f32.mrf.mxu0
        %v4635 = vadd.f32 %v4323, %v4634
        %4636 = vmatprep.mubr.f32.mxu0 %v4029
        %4637 = vmatmul.mubr.f32.gmra.mxu0 %v4021
        %v4638 = vpop.f32.mrf.mxu0
        %v4639 = vadd.f32 %v4319, %v4638
        %v4640 = vpop.f32.mrf.mxu0
        %v4641 = vadd.f32 %v4323, %v4640
        %4642 = vmatprep.mubr.f32.mxu0 %v4030
        %4643 = vmatmul.mubr.f32.gmra.mxu0 %v4022
        %v4644 = vpop.f32.mrf.mxu0
        %v4645 = vadd.f32 %v4319, %v4644
        %v4646 = vpop.f32.mrf.mxu0
        %v4647 = vadd.f32 %v4323, %v4646
        %4648 = vmatprep.mubr.f32.mxu0 %v4031
        %4649 = vmatmul.mubr.f32.gmra.mxu0 %v4023
        %v4650 = vpop.f32.mrf.mxu0
        %v4651 = vadd.f32 %v4319, %v4650
        %v4652 = vpop.f32.mrf.mxu0
        %v4653 = vadd.f32 %v4323, %v4652
        %4654 = vmatprep.mubr.f32.mxu0 %v4032
        %4655 = vmatmul.mubr.f32.gmra.mxu0 %v4024
        %v4656 = vpop.f32.mrf.mxu0
        %v4657 = vadd.f32 %v4319, %v4656
        %v4658 = vpop.f32.mrf.mxu0
        %v4659 = vadd.f32 %v4323, %v4658
        %4660 = vmatprep.mubr.f32.mxu0 %v4033
        %4661 = vmatmul.mubr.f32.gmra.mxu0 %v4025
        %v4662 = vpop.f32.mrf.mxu0
        %v4663 = vadd.f32 %v4319, %v4662
        %v4664 = vpop.f32.mrf.mxu0
        %v4665 = vadd.f32 %v4323, %v4664
        %4666 = vdwg.mxu0
        %4667 = vmatprep.subr.mxu0 %v4241
        %4668 = vmatpush1.msra.mxu0 %v4240
        %4669 = vmatprep.subr.mxu0 %v4237
        %4670 = vmatpush1.msra.mxu0 %v4236
        %4671 = vmatprep.subr.mxu0 %v4233
        %4672 = vmatpush1.msra.mxu0 %v4232
        %4673 = vmatprep.subr.mxu0 %v4229
        %4674 = vmatpush1.msra.mxu0 %v4228
        %4675 = vmatprep.subr.mxu0 %v4225
        %4676 = vmatpush1.msra.mxu0 %v4224
        %4677 = vmatprep.subr.mxu0 %v4221
        %4678 = vmatpush1.msra.mxu0 %v4220
        %4679 = vmatprep.subr.mxu0 %v4217
        %4680 = vmatpush1.msra.mxu0 %v4216
        %4681 = vmatprep.subr.mxu0 %v4213
        %4682 = vmatpush1.msra.mxu0 %v4212
        %4683 = vmatprep.subr.mxu0 %v4209
        %4684 = vmatpush1.msra.mxu0 %v4208
        %4685 = vmatprep.subr.mxu0 %v4205
        %4686 = vmatpush1.msra.mxu0 %v4204
        %4687 = vmatprep.subr.mxu0 %v4201
        %4688 = vmatpush1.msra.mxu0 %v4200
        %4689 = vmatprep.subr.mxu0 %v4197
        %4690 = vmatpush1.msra.mxu0 %v4196
        %4691 = vmatprep.subr.mxu0 %v4193
        %4692 = vmatpush1.msra.mxu0 %v4192
        %4693 = vmatprep.subr.mxu0 %v4189
        %4694 = vmatpush1.msra.mxu0 %v4188
        %4695 = vmatprep.subr.mxu0 %v4185
        %4696 = vmatpush1.msra.mxu0 %v4184
        %4697 = vmatprep.subr.mxu0 %v4181
        %4698 = vmatpush1.msra.mxu0 %v4180
        %4699 = vmatprep.subr.mxu0 %v4305
        %4700 = vmatpush2.msra.mxu0 %v4304
        %4701 = vmatprep.subr.mxu0 %v4301
        %4702 = vmatpush2.msra.mxu0 %v4300
        %4703 = vmatprep.subr.mxu0 %v4297
        %4704 = vmatpush2.msra.mxu0 %v4296
        %4705 = vmatprep.subr.mxu0 %v4293
        %4706 = vmatpush2.msra.mxu0 %v4292
        %4707 = vmatprep.subr.mxu0 %v4289
        %4708 = vmatpush2.msra.mxu0 %v4288
        %4709 = vmatprep.subr.mxu0 %v4285
        %4710 = vmatpush2.msra.mxu0 %v4284
        %4711 = vmatprep.subr.mxu0 %v4281
        %4712 = vmatpush2.msra.mxu0 %v4280
        %4713 = vmatprep.subr.mxu0 %v4277
        %4714 = vmatpush2.msra.mxu0 %v4276
        %4715 = vmatprep.subr.mxu0 %v4273
        %4716 = vmatpush2.msra.mxu0 %v4272
        %4717 = vmatprep.subr.mxu0 %v4269
        %4718 = vmatpush2.msra.mxu0 %v4268
        %4719 = vmatprep.subr.mxu0 %v4265
        %4720 = vmatpush2.msra.mxu0 %v4264
        %4721 = vmatprep.subr.mxu0 %v4261
        %4722 = vmatpush2.msra.mxu0 %v4260
        %4723 = vmatprep.subr.mxu0 %v4257
        %4724 = vmatpush2.msra.mxu0 %v4256
        %4725 = vmatprep.subr.mxu0 %v4253
        %4726 = vmatpush2.msra.mxu0 %v4252
        %4727 = vmatprep.subr.mxu0 %v4249
        %4728 = vmatpush2.msra.mxu0 %v4248
        %4729 = vmatprep.subr.mxu0 %v4245
        %4730 = vmatpush2.msra.mxu0 %v4244
        %4731 = vmatprep.mubr.f32.mxu0 %v4042
        %4732 = vmatmul.mubr.f32.gmra.mxu0 %v4034
        %v4733 = vpop.f32.mrf.mxu0
        %v4734 = vadd.f32 %v4621, %v4733
        %v4735 = vpop.f32.mrf.mxu0
        %v4736 = vadd.f32 %v4623, %v4735
        %4737 = vmatprep.mubr.f32.mxu0 %v4043
        %4738 = vmatmul.mubr.f32.gmra.mxu0 %v4035
        %v4739 = vpop.f32.mrf.mxu0
        %v4740 = vadd.f32 %v4627, %v4739
        %v4741 = vpop.f32.mrf.mxu0
        %v4742 = vadd.f32 %v4629, %v4741
        %4743 = vmatprep.mubr.f32.mxu0 %v4044
        %4744 = vmatmul.mubr.f32.gmra.mxu0 %v4036
        %v4745 = vpop.f32.mrf.mxu0
        %v4746 = vadd.f32 %v4633, %v4745
        %v4747 = vpop.f32.mrf.mxu0
        %v4748 = vadd.f32 %v4635, %v4747
        %4749 = vmatprep.mubr.f32.mxu0 %v4045
        %4750 = vmatmul.mubr.f32.gmra.mxu0 %v4037
        %v4751 = vpop.f32.mrf.mxu0
        %v4752 = vadd.f32 %v4639, %v4751
        %v4753 = vpop.f32.mrf.mxu0
        %v4754 = vadd.f32 %v4641, %v4753
        %4755 = vmatprep.mubr.f32.mxu0 %v4046
        %4756 = vmatmul.mubr.f32.gmra.mxu0 %v4038
        %v4757 = vpop.f32.mrf.mxu0
        %v4758 = vadd.f32 %v4645, %v4757
        %v4759 = vpop.f32.mrf.mxu0
        %v4760 = vadd.f32 %v4647, %v4759
        %4761 = vmatprep.mubr.f32.mxu0 %v4047
        %4762 = vmatmul.mubr.f32.gmra.mxu0 %v4039
        %v4763 = vpop.f32.mrf.mxu0
        %v4764 = vadd.f32 %v4651, %v4763
        %v4765 = vpop.f32.mrf.mxu0
        %v4766 = vadd.f32 %v4653, %v4765
        %4767 = vmatprep.mubr.f32.mxu0 %v4048
        %4768 = vmatmul.mubr.f32.gmra.mxu0 %v4040
        %v4769 = vpop.f32.mrf.mxu0
        %v4770 = vadd.f32 %v4657, %v4769
        %v4771 = vpop.f32.mrf.mxu0
        %v4772 = vadd.f32 %v4659, %v4771
        %4773 = vmatprep.mubr.f32.mxu0 %v4049
        %4774 = vmatmul.mubr.f32.gmra.mxu0 %v4041
        %v4775 = vpop.f32.mrf.mxu0
        %v4776 = vadd.f32 %v4663, %v4775
        %v4777 = vpop.f32.mrf.mxu0
        %v4778 = vadd.f32 %v4665, %v4777
        %4779 = vdwg.mxu0
        %4780 = vst [vmem:[%s352] sm:$0xff] %v4508
        %4781 = vst [vmem:[%s352 + $0x8] sm:$0xff] %v4510
        %4782 = vst [vmem:[%s352 + $0x10] sm:$0xff] %v4734
        %4783 = vst [vmem:[%s352 + $0x18] sm:$0xff] %v4736
        %4784 = vst [vmem:[%s352 + $0x20] sm:$0xff] %v4514
        %4785 = vst [vmem:[%s352 + $0x28] sm:$0xff] %v4516
        %4786 = vst [vmem:[%s352 + $0x30] sm:$0xff] %v4740
        %4787 = vst [vmem:[%s352 + $0x38] sm:$0xff] %v4742
        %4788 = vst [vmem:[%s352 + $0x40] sm:$0xff] %v4520
        %4789 = vst [vmem:[%s352 + $0x48] sm:$0xff] %v4522
        %4790 = vst [vmem:[%s352 + $0x50] sm:$0xff] %v4746
        %4791 = vst [vmem:[%s352 + $0x58] sm:$0xff] %v4748
        %4792 = vst [vmem:[%s352 + $0x60] sm:$0xff] %v4526
        %4793 = vst [vmem:[%s352 + $0x68] sm:$0xff] %v4528
        %4794 = vst [vmem:[%s352 + $0x70] sm:$0xff] %v4752
        %4795 = vst [vmem:[%s352 + $0x78] sm:$0xff] %v4754
        %4796 = vst [vmem:[%s352 + $0x80] sm:$0xff] %v4532
        %4797 = vst [vmem:[%s352 + $0x88] sm:$0xff] %v4534
        %4798 = vst [vmem:[%s352 + $0x90] sm:$0xff] %v4758
        %4799 = vst [vmem:[%s352 + $0x98] sm:$0xff] %v4760
        %4800 = vst [vmem:[%s352 + $0xa0] sm:$0xff] %v4538
        %4801 = vst [vmem:[%s352 + $0xa8] sm:$0xff] %v4540
        %4802 = vst [vmem:[%s352 + $0xb0] sm:$0xff] %v4764
        %4803 = vst [vmem:[%s352 + $0xb8] sm:$0xff] %v4766
        %4804 = vst [vmem:[%s352 + $0xc0] sm:$0xff] %v4544
        %4805 = vst [vmem:[%s352 + $0xc8] sm:$0xff] %v4546
        %4806 = vst [vmem:[%s352 + $0xd0] sm:$0xff] %v4770
        %4807 = vst [vmem:[%s352 + $0xd8] sm:$0xff] %v4772
        %4808 = vst [vmem:[%s352 + $0xe0] sm:$0xff] %v4550
        %4809 = vst [vmem:[%s352 + $0xe8] sm:$0xff] %v4552
        %4810 = vst [vmem:[%s352 + $0xf0] sm:$0xff] %v4776
        %4811 = vst [vmem:[%s352 + $0xf8] sm:$0xff] %v4778
        %s4812 = sand.u32 %s171, 1
        %s4813 = scalar_lea.sflag [#allocation4], %s4812
        %s4814 = sand.u32 %s171, 1
        %s4815 = smul.addr %s4814, 256
        %s4816 = scalar_lea.vmem [#allocation11], %s4815
        // Predicated region
        $region65: #{tpu_custom_call.1} parent=43 // pred_check
          %p4817 = pneg %p181
        $region66: #{tpu_custom_call.1} parent=43 // pred_check_branch
          %4819 = sbr.rel (%p4817) target = $region68
        $region67: #{tpu_custom_call.1} parent=43 // pred_region
          %s4821 = ssub.s32 4096, 4096
          %4822 = vsyncadd %s4813, %s4821
          %s4823 = smul.addr %s27, 32
          %s4824 = smul.addr %s4823, 128
          %s4825 = scalar_lea.hbm %s6, %s4824
          %s4826 = sshll.u32 %s4816, 4
          %s4827 = int_to_ptr.vmem [resolvable:$true] %s4826
          %4832 = dma.vmem_to_hbm [thread:$0]  %s4827, 4096, %s4825, %s4813, 512, 512, 32
        $region68: #{tpu_custom_call.1} parent=43 // pred_fallthru
          _
      $region44: #{tpu_custom_call.1} parent=5 // pred_fallthru
        _
      %p4833 = scmp.le.s32.totalorder 2, %s22
      // Predicated region
      $region69: #{tpu_custom_call.1} parent=5 // pred_check
        %p4834 = pneg %p4833
      $region70: #{tpu_custom_call.1} parent=5 // pred_check_branch
        %4836 = sbr.rel (%p4834) target = $region72
      $region71: #{tpu_custom_call.1} parent=5 // pred_region
        %s4837 = ssub.s32 %s22, 2
        // Predicated region
        $region73: #{tpu_custom_call.1} parent=71 // pred_check
          %p4838 = pneg %p187
        $region74: #{tpu_custom_call.1} parent=71 // pred_check_branch
          %4840 = sbr.rel (%p4838) target = $region76
        $region75: #{tpu_custom_call.1} parent=71 // pred_region
          %s4841 = sand.u32 %s172, 1
          %s4842 = scalar_lea.sflag [#allocation4], %s4841
          %s4843 = sand.u32 %s172, 1
          %s4844 = smul.addr %s4843, 256
          %s4845 = scalar_lea.vmem [#allocation11], %s4844
          %4846 = dma.done %s4842, 4096
        $region76: #{tpu_custom_call.1} parent=71 // pred_fallthru
          _
      $region72: #{tpu_custom_call.1} parent=5 // pred_fallthru
        _
    $region6: #{tpu_custom_call.1} parent=1 // loop_footer
      %s26 = sadd.s32 1, %s22
    $region7: #{tpu_custom_call.1} parent=1 // loop_footer_branch
      %21 = sbr.rel target = $region3
    $region8: #{tpu_custom_call.1} parent=1 // loop_exit
      _
    %4847 = vsyncpa [#allocation3], 1
    %s4848 = scalar_lea.sflag [#allocation3], 1
    %4849 = vsyncpa %s4848, 1
    %4850 = vsyncpa [#allocation6], 1
    %s4851 = scalar_lea.sflag [#allocation6], 1
    %4852 = vsyncpa %s4851, 1
    %4853 = vsyncpa [#allocation9], 1
    %4854 = vsyncpa [#allocation4], 1
    %s4855 = scalar_lea.sflag [#allocation4], 1
    %4856 = vsyncpa %s4855, 1

</llo_original>
